<compile_context>
chip_gen: v7x
topology: tpu7x:2x2x1
jax: 0.10.0
libtpu: 0.0.40
codegen_flags: <defaults>
</compile_context>

<pallas_src>
import functools

import jax
import jax.numpy as jnp
from jax.experimental import pallas as pl
from jax.experimental.pallas import tpu as pltpu  # noqa: F401  (kept for TODOs below)

# ----------------------------------------------------------------------------
# Hyperparameters (the PyTorch file leaves these as module-level globals;
# chosen small and TPU-friendly: 4*HIDDEN_NUM = 128 lanes).
# ----------------------------------------------------------------------------
EMBEDDING_DIM = 8
HIDDEN_NUM = 32
NUM_LAYER = 2
BIDIRECTIONAL = False          # forward only
DROPOUT = 0.0                  # eval-mode forward: dropout is a no-op
VOCAB = 27 + 1                 # len(Letter_dict) + 1, padding_idx = 0

# TODO(synk): bidirectional=True packed-LSTM path is not implemented (the
# module here instantiates bidirectional=False).


# ----------------------------------------------------------------------------
# Kernel helpers
# ----------------------------------------------------------------------------
def _cell(gates, c):
    """LSTM cell nonlinearity given pre-activation gates (B, 4H) and c (B, H).

    Gate order follows PyTorch: [i, f, g, o].  Full-width sigmoid/tanh on the
    whole (B, 4H) tile (2 EUP ops), then 32-lane static slices.
    """
    H = HIDDEN_NUM
    sig = jax.nn.sigmoid(gates)
    th = jnp.tanh(gates)
    i = sig[:, 0 * H:1 * H]
    f = sig[:, 1 * H:2 * H]
    g = th[:, 2 * H:3 * H]
    o = sig[:, 3 * H:4 * H]
    c_new = f * c + i * g
    h_new = o * jnp.tanh(c_new)
    return h_new, c_new


def lstm_regressor_kernel(T, B,
                          tok_ref, len_ref,
                          emb_ref, wih0_ref, b0_ref,
                          w01_ref, whh1_ref, b1_ref,
                          wfc1_ref, bfc1_ref, wfc2_ref, bfc2_ref,
                          out_ref):
    H = HIDDEN_NUM
    V = emb_ref.shape[0]

    # ---- one-time prep (hoisted out of the time loop) -----------------------
    # Layer-0 input projection folded into the embedding table:
    #   gate_table[v] = emb[v] @ W_ih0^T + (b_ih0 + b_hh0)        (V, 4H)
    gate_table = (jnp.dot(emb_ref[...], wih0_ref[...],
                          preferred_element_type=jnp.float32) + b0_ref[...])
    lane_ids = jax.lax.broadcasted_iota(jnp.int32, (B, V), 1)     # (B, V)
    len_bh = jnp.broadcast_to(len_ref[...], (B, H))               # (B, H) int32
    tok = tok_ref[...]                                            # (B, T) int32
    w01 = w01_ref[...]                                            # (H, 8H) = [Whh0 | Wih1]
    whh1 = whh1_ref[...]                                          # (H, 4H)
    b1 = b1_ref[...]                                              # (1, 4H)

    zeros = jnp.zeros((B, H), jnp.float32)
    h0, c0 = zeros, zeros
    h1, c1 = zeros, zeros

    # ---- wavefront over time: layer 0 at step t, layer 1 at step t-1 -------
    # T is a static Python int -> fully static straight-line code for the LLO
    # scheduler; every slice index is a compile-time constant.
    for t in range(T):
        # layer-0 gate input for step t (depends only on tokens, so it sits
        # off the recurrence's serial chain and overlaps the recurrent matmul)
        oh = (tok[:, t:t + 1] == lane_ids).astype(jnp.float32)    # (B, V) one-hot
        gin0_t = jnp.dot(oh, gate_table,
                         preferred_element_type=jnp.float32)      # (B, 4H), bias folded

        if t == 0:
            gates0 = gin0_t                        # h0 == 0: skip the matmul
        else:
            # packed recurrent matmul: [h0@Whh0 | h0@Wih1] in one MXU issue
            prod0 = jnp.dot(h0, w01, preferred_element_type=jnp.float32)   # (B, 8H)
            gates0 = gin0_t + prod0[:, :4 * H]                    # vreg-boundary slice

            # ---- layer 1 advances to step t-1 (uses pre-update h0 = h0[t-1]
            # via prod0 and the current h1 carry = h1[t-2]) ----
            gates1 = prod0[:, 4 * H:] + b1
            if t >= 2:                              # h1 carry still zero at t == 1
                gates1 = gates1 + jnp.dot(h1, whh1,
                                          preferred_element_type=jnp.float32)
            h1_new, c1_new = _cell(gates1, c1)
            keep1 = len_bh > (t - 1)                # freeze once (t-1) >= length
            h1 = jnp.where(keep1, h1_new, h1)
            c1 = jnp.where(keep1, c1_new, c1)

        # ---- layer 0 advances to step t ----
        h0_new, c0_new = _cell(gates0, c0)
        keep0 = len_bh > t                          # freeze once t >= length
        h0 = jnp.where(keep0, h0_new, h0)
        c0 = jnp.where(keep0, c0_new, c0)

    # ---- final layer-1 step (time T-1) --------------------------------------
    prod0 = jnp.dot(h0, w01, preferred_element_type=jnp.float32)
    gates1 = (prod0[:, 4 * H:] + b1
              + jnp.dot(h1, whh1, preferred_element_type=jnp.float32))
    h1_new, _ = _cell(gates1, c1)
    keep1 = len_bh > (T - 1)
    h1 = jnp.where(keep1, h1_new, h1)

    # ---- MLP head: h_n = [h_layer0 | h_layer1] -> Linear(16) -> ReLU -> Linear(1)
    h_cat = jnp.concatenate([h0, h1], axis=-1)                    # (B, 2H)
    z = jnp.maximum(jnp.dot(h_cat, wfc1_ref[...],
                            preferred_element_type=jnp.float32)
                    + bfc1_ref[...], 0.0)                         # (B, 16)
    out_ref[...] = (jnp.sum(z * wfc2_ref[...], axis=-1, keepdims=True)
                    + bfc2_ref[...])                              # (B, 1)


# ----------------------------------------------------------------------------
# Parameter init (PyTorch-equivalent shapes, pre-transposed / pre-packed once
# at init time so the per-call wrapper does zero XLA work besides pallas_call)
# ----------------------------------------------------------------------------
def init_params(key):
    H, E = HIDDEN_NUM, EMBEDDING_DIM
    ks = jax.random.split(key, 16)
    u = lambda k, shape, s: jax.random.uniform(k, shape, jnp.float32, -s, s)
    s_lstm = 1.0 / (H ** 0.5)
    s_fc1 = 1.0 / (NUM_LAYER * H) ** 0.5

    emb = jax.random.normal(ks[0], (VOCAB, E), jnp.float32)
    emb = emb.at[0].set(0.0)                                      # padding_idx = 0

    # layer 0: W_ih (4H, E), W_hh (4H, H), b = b_ih + b_hh
    wih0_t = u(ks[1], (4 * H, E), s_lstm).T                       # (E, 4H)
    whh0_t = u(ks[2], (4 * H, H), s_lstm).T                       # (H, 4H)
    b0 = (u(ks[3], (4 * H,), s_lstm)
          + u(ks[4], (4 * H,), s_lstm)).reshape(1, 4 * H)
    # layer 1: W_ih (4H, H), W_hh (4H, H)
    wih1_t = u(ks[5], (4 * H, H), s_lstm).T                       # (H, 4H)
    whh1_t = u(ks[6], (4 * H, H), s_lstm).T                       # (H, 4H)
    b1 = (u(ks[7], (4 * H,), s_lstm)
          + u(ks[8], (4 * H,), s_lstm)).reshape(1, 4 * H)

    return {
        "emb": emb,
        "wih0_t": wih0_t,
        "b0": b0,
        # packed recurrent weight for the wavefront loop: [Whh0^T | Wih1^T]
        "w01": jnp.concatenate([whh0_t, wih1_t], axis=1),         # (H, 8H)
        "whh1_t": whh1_t,
        "b1": b1,
        # MLP head: Linear(NUM_LAYER*H -> 16), Linear(16 -> 1)
        "wfc1_t": u(ks[9], (16, NUM_LAYER * H), s_fc1).T,         # (2H, 16)
        "bfc1": u(ks[10], (16,), s_fc1).reshape(1, 16),
        "wfc2_row": u(ks[11], (1, 16), 0.25),                     # (1, 16)
        "bfc2": u(ks[12], (1,), 0.25).reshape(1, 1),
    }


# ----------------------------------------------------------------------------
# Forward: a single no-grid pallas_call, zero wrapper-side compute
# ----------------------------------------------------------------------------
@jax.jit
def net_forward(params, x_tokens, lengths):
    """x_tokens: (B, T) int32 token ids (0 = pad), lengths: (B,) int32."""
    B, T = x_tokens.shape
    lengths2d = lengths.reshape(B, 1).astype(jnp.int32)           # metadata-only reshape

    # TODO(synk): when batch scales, tile the batch with a 1-D grid and
    # dimension_semantics=("parallel",) (uses v7x's 2nd TensorCore), set
    # pltpu.CompilerParams(vmem_limit_bytes=...) explicitly for v5e's 16 MiB
    # default scoped VMEM, and optionally store weights in bf16 on v6e/v7x.
    out = pl.pallas_call(
        functools.partial(lstm_regressor_kernel, T, B),
        out_shape=jax.ShapeDtypeStruct((B, 1), jnp.float32),
    )(x_tokens.astype(jnp.int32), lengths2d,
      params["emb"], params["wih0_t"], params["b0"],
      params["w01"], params["whh1_t"], params["b1"],
      params["wfc1_t"], params["bfc1"], params["wfc2_row"], params["bfc2"])

    return out                                                    # (B, 1)


if __name__ == "__main__":
    key = jax.random.PRNGKey(0)
    k_params, k_tok = jax.random.split(key)

    params = init_params(k_params)

    B, T = 2, 12
    lengths = jnp.array([12, 9], dtype=jnp.int32)   # sorted desc, like pack_padded_sequence
    tokens = jax.random.randint(k_tok, (B, T), 1, VOCAB, dtype=jnp.int32)
    # zero-pad positions beyond each sequence's length (padding_idx = 0)
    valid = jnp.arange(T)[None, :] < lengths[:, None]
    tokens = jnp.where(valid, tokens, 0)

    out = net_forward(params, tokens, lengths)
    jax.block_until_ready(out)
    assert out.shape == (B, 1)
    assert bool(jnp.all(jnp.isfinite(out)))
    print("KERNEL_OK")
</pallas_src>

<mosaic_0001>
module attributes {stable_mosaic.version = 11 : i64} {
  func.func @lstm_regressor_kernel(%arg0: memref<2x12xi32, #tpu.memory_space<vmem>>, %arg1: memref<2x1xi32, #tpu.memory_space<vmem>>, %arg2: memref<28x8xf32, #tpu.memory_space<vmem>>, %arg3: memref<8x128xf32, #tpu.memory_space<vmem>>, %arg4: memref<1x128xf32, #tpu.memory_space<vmem>>, %arg5: memref<32x256xf32, #tpu.memory_space<vmem>>, %arg6: memref<32x128xf32, #tpu.memory_space<vmem>>, %arg7: memref<1x128xf32, #tpu.memory_space<vmem>>, %arg8: memref<64x16xf32, #tpu.memory_space<vmem>>, %arg9: memref<1x16xf32, #tpu.memory_space<vmem>>, %arg10: memref<1x16xf32, #tpu.memory_space<vmem>>, %arg11: memref<1x1xf32, #tpu.memory_space<vmem>>, %arg12: memref<2x1xf32, #tpu.memory_space<vmem>>) attributes {dimension_semantics = [], scalar_prefetch = 0 : i64, scratch_operands = 0 : i64, tpu.core_type = #tpu.core_type<tc>} {
    %c0 = arith.constant 0 : index
    %c0_0 = arith.constant 0 : index
    %0 = vector.load %arg2[%c0, %c0_0] : memref<28x8xf32, #tpu.memory_space<vmem>>, vector<28x8xf32>
    %c0_1 = arith.constant 0 : index
    %c0_2 = arith.constant 0 : index
    %1 = vector.load %arg3[%c0_1, %c0_2] : memref<8x128xf32, #tpu.memory_space<vmem>>, vector<8x128xf32>
    %cst = arith.constant dense<0.000000e+00> : vector<28x128xf32>
    %2 = tpu.matmul %0, %1, %cst {dimension_numbers = #tpu.dot_dimension_numbers<[1], [0], [0], [1], [0, 0, 1, 1], [], []>} : vector<28x8xf32>, vector<8x128xf32>, vector<28x128xf32> -> vector<28x128xf32>
    %c0_3 = arith.constant 0 : index
    %c0_4 = arith.constant 0 : index
    %3 = vector.load %arg4[%c0_3, %c0_4] : memref<1x128xf32, #tpu.memory_space<vmem>>, vector<1x128xf32>
    %4 = vector.broadcast %3 : vector<1x128xf32> to vector<28x128xf32>
    %5 = arith.addf %2, %4 : vector<28x128xf32>
    %6 = tpu.iota {dimensions = array<i32: 1>} : vector<2x28xi32>
    %c0_5 = arith.constant 0 : index
    %c0_6 = arith.constant 0 : index
    %7 = vector.load %arg1[%c0_5, %c0_6] : memref<2x1xi32, #tpu.memory_space<vmem>>, vector<2x1xi32>
    %8 = vector.shape_cast %7 : vector<2x1xi32> to vector<2x1xi32>
    %9 = vector.broadcast %8 : vector<2x1xi32> to vector<2x32xi32>
    %c0_7 = arith.constant 0 : index
    %c0_8 = arith.constant 0 : index
    %10 = vector.load %arg0[%c0_7, %c0_8] : memref<2x12xi32, #tpu.memory_space<vmem>>, vector<2x12xi32>
    %c0_9 = arith.constant 0 : index
    %c0_10 = arith.constant 0 : index
    %11 = vector.load %arg5[%c0_9, %c0_10] : memref<32x256xf32, #tpu.memory_space<vmem>>, vector<32x256xf32>
    %c0_11 = arith.constant 0 : index
    %c0_12 = arith.constant 0 : index
    %12 = vector.load %arg6[%c0_11, %c0_12] : memref<32x128xf32, #tpu.memory_space<vmem>>, vector<32x128xf32>
    %c0_13 = arith.constant 0 : index
    %c0_14 = arith.constant 0 : index
    %13 = vector.load %arg7[%c0_13, %c0_14] : memref<1x128xf32, #tpu.memory_space<vmem>>, vector<1x128xf32>
    %cst_15 = arith.constant 0.000000e+00 : f32
    %14 = vector.broadcast %cst_15 : f32 to vector<2x32xf32>
    %15 = vector.extract_strided_slice %10 {offsets = [0, 0], sizes = [2, 1], strides = [1, 1]} : vector<2x12xi32> to vector<2x1xi32>
    %16 = vector.broadcast %15 : vector<2x1xi32> to vector<2x28xi32>
    %17 = arith.cmpi eq, %16, %6 : vector<2x28xi32>
    %18 = arith.extui %17 : vector<2x28xi1> to vector<2x28xi32>
    %19 = arith.sitofp %18 : vector<2x28xi32> to vector<2x28xf32>
    %cst_16 = arith.constant dense<0.000000e+00> : vector<2x128xf32>
    %20 = tpu.matmul %19, %5, %cst_16 {dimension_numbers = #tpu.dot_dimension_numbers<[1], [0], [0], [1], [0, 0, 1, 1], [], []>} : vector<2x28xf32>, vector<28x128xf32>, vector<2x128xf32> -> vector<2x128xf32>
    %21 = arith.negf %20 : vector<2x128xf32>
    %22 = math.exp %21 : vector<2x128xf32>
    %cst_17 = arith.constant 1.000000e+00 : f32
    %23 = vector.broadcast %cst_17 : f32 to vector<2x128xf32>
    %24 = arith.addf %23, %22 : vector<2x128xf32>
    %25 = arith.divf %23, %24 : vector<2x128xf32>
    %26 = math.tanh %20 : vector<2x128xf32>
    %27 = vector.extract_strided_slice %25 {offsets = [0, 0], sizes = [2, 32], strides = [1, 1]} : vector<2x128xf32> to vector<2x32xf32>
    %28 = vector.extract_strided_slice %25 {offsets = [0, 32], sizes = [2, 32], strides = [1, 1]} : vector<2x128xf32> to vector<2x32xf32>
    %29 = vector.extract_strided_slice %26 {offsets = [0, 64], sizes = [2, 32], strides = [1, 1]} : vector<2x128xf32> to vector<2x32xf32>
    %30 = vector.extract_strided_slice %25 {offsets = [0, 96], sizes = [2, 32], strides = [1, 1]} : vector<2x128xf32> to vector<2x32xf32>
    %31 = arith.mulf %28, %14 : vector<2x32xf32>
    %32 = arith.mulf %27, %29 : vector<2x32xf32>
    %33 = arith.addf %31, %32 : vector<2x32xf32>
    %34 = math.tanh %33 : vector<2x32xf32>
    %35 = arith.mulf %30, %34 : vector<2x32xf32>
    %c0_i32 = arith.constant 0 : i32
    %36 = vector.broadcast %c0_i32 : i32 to vector<2x32xi32>
    %37 = arith.cmpi sgt, %9, %36 : vector<2x32xi32>
    %38 = arith.select %37, %35, %14 : vector<2x32xi1>, vector<2x32xf32>
    %39 = arith.select %37, %33, %14 : vector<2x32xi1>, vector<2x32xf32>
    %40 = vector.extract_strided_slice %10 {offsets = [0, 1], sizes = [2, 1], strides = [1, 1]} : vector<2x12xi32> to vector<2x1xi32>
    %41 = vector.broadcast %40 : vector<2x1xi32> to vector<2x28xi32>
    %42 = arith.cmpi eq, %41, %6 : vector<2x28xi32>
    %43 = arith.extui %42 : vector<2x28xi1> to vector<2x28xi32>
    %44 = arith.sitofp %43 : vector<2x28xi32> to vector<2x28xf32>
    %cst_18 = arith.constant dense<0.000000e+00> : vector<2x128xf32>
    %45 = tpu.matmul %44, %5, %cst_18 {dimension_numbers = #tpu.dot_dimension_numbers<[1], [0], [0], [1], [0, 0, 1, 1], [], []>} : vector<2x28xf32>, vector<28x128xf32>, vector<2x128xf32> -> vector<2x128xf32>
    %cst_19 = arith.constant dense<0.000000e+00> : vector<2x256xf32>
    %46 = tpu.matmul %38, %11, %cst_19 {dimension_numbers = #tpu.dot_dimension_numbers<[1], [0], [0], [1], [0, 0, 1, 1], [], []>} : vector<2x32xf32>, vector<32x256xf32>, vector<2x256xf32> -> vector<2x256xf32>
    %47 = vector.extract_strided_slice %46 {offsets = [0, 0], sizes = [2, 128], strides = [1, 1]} : vector<2x256xf32> to vector<2x128xf32>
    %48 = arith.addf %45, %47 : vector<2x128xf32>
    %49 = vector.extract_strided_slice %46 {offsets = [0, 128], sizes = [2, 128], strides = [1, 1]} : vector<2x256xf32> to vector<2x128xf32>
    %50 = vector.broadcast %13 : vector<1x128xf32> to vector<2x128xf32>
    %51 = arith.addf %49, %50 : vector<2x128xf32>
    %52 = arith.negf %51 : vector<2x128xf32>
    %53 = math.exp %52 : vector<2x128xf32>
    %cst_20 = arith.constant 1.000000e+00 : f32
    %54 = vector.broadcast %cst_20 : f32 to vector<2x128xf32>
    %55 = arith.addf %54, %53 : vector<2x128xf32>
    %56 = arith.divf %54, %55 : vector<2x128xf32>
    %57 = math.tanh %51 : vector<2x128xf32>
    %58 = vector.extract_strided_slice %56 {offsets = [0, 0], sizes = [2, 32], strides = [1, 1]} : vector<2x128xf32> to vector<2x32xf32>
    %59 = vector.extract_strided_slice %56 {offsets = [0, 32], sizes = [2, 32], strides = [1, 1]} : vector<2x128xf32> to vector<2x32xf32>
    %60 = vector.extract_strided_slice %57 {offsets = [0, 64], sizes = [2, 32], strides = [1, 1]} : vector<2x128xf32> to vector<2x32xf32>
    %61 = vector.extract_strided_slice %56 {offsets = [0, 96], sizes = [2, 32], strides = [1, 1]} : vector<2x128xf32> to vector<2x32xf32>
    %62 = arith.mulf %59, %14 : vector<2x32xf32>
    %63 = arith.mulf %58, %60 : vector<2x32xf32>
    %64 = arith.addf %62, %63 : vector<2x32xf32>
    %65 = math.tanh %64 : vector<2x32xf32>
    %66 = arith.mulf %61, %65 : vector<2x32xf32>
    %c0_i32_21 = arith.constant 0 : i32
    %67 = vector.broadcast %c0_i32_21 : i32 to vector<2x32xi32>
    %68 = arith.cmpi sgt, %9, %67 : vector<2x32xi32>
    %69 = arith.select %68, %66, %14 : vector<2x32xi1>, vector<2x32xf32>
    %70 = arith.select %68, %64, %14 : vector<2x32xi1>, vector<2x32xf32>
    %71 = arith.negf %48 : vector<2x128xf32>
    %72 = math.exp %71 : vector<2x128xf32>
    %cst_22 = arith.constant 1.000000e+00 : f32
    %73 = vector.broadcast %cst_22 : f32 to vector<2x128xf32>
    %74 = arith.addf %73, %72 : vector<2x128xf32>
    %75 = arith.divf %73, %74 : vector<2x128xf32>
    %76 = math.tanh %48 : vector<2x128xf32>
    %77 = vector.extract_strided_slice %75 {offsets = [0, 0], sizes = [2, 32], strides = [1, 1]} : vector<2x128xf32> to vector<2x32xf32>
    %78 = vector.extract_strided_slice %75 {offsets = [0, 32], sizes = [2, 32], strides = [1, 1]} : vector<2x128xf32> to vector<2x32xf32>
    %79 = vector.extract_strided_slice %76 {offsets = [0, 64], sizes = [2, 32], strides = [1, 1]} : vector<2x128xf32> to vector<2x32xf32>
    %80 = vector.extract_strided_slice %75 {offsets = [0, 96], sizes = [2, 32], strides = [1, 1]} : vector<2x128xf32> to vector<2x32xf32>
    %81 = arith.mulf %78, %39 : vector<2x32xf32>
    %82 = arith.mulf %77, %79 : vector<2x32xf32>
    %83 = arith.addf %81, %82 : vector<2x32xf32>
    %84 = math.tanh %83 : vector<2x32xf32>
    %85 = arith.mulf %80, %84 : vector<2x32xf32>
    %c1_i32 = arith.constant 1 : i32
    %86 = vector.broadcast %c1_i32 : i32 to vector<2x32xi32>
    %87 = arith.cmpi sgt, %9, %86 : vector<2x32xi32>
    %88 = arith.select %87, %85, %38 : vector<2x32xi1>, vector<2x32xf32>
    %89 = arith.select %87, %83, %39 : vector<2x32xi1>, vector<2x32xf32>
    %90 = vector.extract_strided_slice %10 {offsets = [0, 2], sizes = [2, 1], strides = [1, 1]} : vector<2x12xi32> to vector<2x1xi32>
    %91 = vector.broadcast %90 : vector<2x1xi32> to vector<2x28xi32>
    %92 = arith.cmpi eq, %91, %6 : vector<2x28xi32>
    %93 = arith.extui %92 : vector<2x28xi1> to vector<2x28xi32>
    %94 = arith.sitofp %93 : vector<2x28xi32> to vector<2x28xf32>
    %cst_23 = arith.constant dense<0.000000e+00> : vector<2x128xf32>
    %95 = tpu.matmul %94, %5, %cst_23 {dimension_numbers = #tpu.dot_dimension_numbers<[1], [0], [0], [1], [0, 0, 1, 1], [], []>} : vector<2x28xf32>, vector<28x128xf32>, vector<2x128xf32> -> vector<2x128xf32>
    %cst_24 = arith.constant dense<0.000000e+00> : vector<2x256xf32>
    %96 = tpu.matmul %88, %11, %cst_24 {dimension_numbers = #tpu.dot_dimension_numbers<[1], [0], [0], [1], [0, 0, 1, 1], [], []>} : vector<2x32xf32>, vector<32x256xf32>, vector<2x256xf32> -> vector<2x256xf32>
    %97 = vector.extract_strided_slice %96 {offsets = [0, 0], sizes = [2, 128], strides = [1, 1]} : vector<2x256xf32> to vector<2x128xf32>
    %98 = arith.addf %95, %97 : vector<2x128xf32>
    %99 = vector.extract_strided_slice %96 {offsets = [0, 128], sizes = [2, 128], strides = [1, 1]} : vector<2x256xf32> to vector<2x128xf32>
    %100 = vector.broadcast %13 : vector<1x128xf32> to vector<2x128xf32>
    %101 = arith.addf %99, %100 : vector<2x128xf32>
    %cst_25 = arith.constant dense<0.000000e+00> : vector<2x128xf32>
    %102 = tpu.matmul %69, %12, %cst_25 {dimension_numbers = #tpu.dot_dimension_numbers<[1], [0], [0], [1], [0, 0, 1, 1], [], []>} : vector<2x32xf32>, vector<32x128xf32>, vector<2x128xf32> -> vector<2x128xf32>
    %103 = arith.addf %101, %102 : vector<2x128xf32>
    %104 = arith.negf %103 : vector<2x128xf32>
    %105 = math.exp %104 : vector<2x128xf32>
    %cst_26 = arith.constant 1.000000e+00 : f32
    %106 = vector.broadcast %cst_26 : f32 to vector<2x128xf32>
    %107 = arith.addf %106, %105 : vector<2x128xf32>
    %108 = arith.divf %106, %107 : vector<2x128xf32>
    %109 = math.tanh %103 : vector<2x128xf32>
    %110 = vector.extract_strided_slice %108 {offsets = [0, 0], sizes = [2, 32], strides = [1, 1]} : vector<2x128xf32> to vector<2x32xf32>
    %111 = vector.extract_strided_slice %108 {offsets = [0, 32], sizes = [2, 32], strides = [1, 1]} : vector<2x128xf32> to vector<2x32xf32>
    %112 = vector.extract_strided_slice %109 {offsets = [0, 64], sizes = [2, 32], strides = [1, 1]} : vector<2x128xf32> to vector<2x32xf32>
    %113 = vector.extract_strided_slice %108 {offsets = [0, 96], sizes = [2, 32], strides = [1, 1]} : vector<2x128xf32> to vector<2x32xf32>
    %114 = arith.mulf %111, %70 : vector<2x32xf32>
    %115 = arith.mulf %110, %112 : vector<2x32xf32>
    %116 = arith.addf %114, %115 : vector<2x32xf32>
    %117 = math.tanh %116 : vector<2x32xf32>
    %118 = arith.mulf %113, %117 : vector<2x32xf32>
    %c1_i32_27 = arith.constant 1 : i32
    %119 = vector.broadcast %c1_i32_27 : i32 to vector<2x32xi32>
    %120 = arith.cmpi sgt, %9, %119 : vector<2x32xi32>
    %121 = arith.select %120, %118, %69 : vector<2x32xi1>, vector<2x32xf32>
    %122 = arith.select %120, %116, %70 : vector<2x32xi1>, vector<2x32xf32>
    %123 = arith.negf %98 : vector<2x128xf32>
    %124 = math.exp %123 : vector<2x128xf32>
    %cst_28 = arith.constant 1.000000e+00 : f32
    %125 = vector.broadcast %cst_28 : f32 to vector<2x128xf32>
    %126 = arith.addf %125, %124 : vector<2x128xf32>
    %127 = arith.divf %125, %126 : vector<2x128xf32>
    %128 = math.tanh %98 : vector<2x128xf32>
    %129 = vector.extract_strided_slice %127 {offsets = [0, 0], sizes = [2, 32], strides = [1, 1]} : vector<2x128xf32> to vector<2x32xf32>
    %130 = vector.extract_strided_slice %127 {offsets = [0, 32], sizes = [2, 32], strides = [1, 1]} : vector<2x128xf32> to vector<2x32xf32>
    %131 = vector.extract_strided_slice %128 {offsets = [0, 64], sizes = [2, 32], strides = [1, 1]} : vector<2x128xf32> to vector<2x32xf32>
    %132 = vector.extract_strided_slice %127 {offsets = [0, 96], sizes = [2, 32], strides = [1, 1]} : vector<2x128xf32> to vector<2x32xf32>
    %133 = arith.mulf %130, %89 : vector<2x32xf32>
    %134 = arith.mulf %129, %131 : vector<2x32xf32>
    %135 = arith.addf %133, %134 : vector<2x32xf32>
    %136 = math.tanh %135 : vector<2x32xf32>
    %137 = arith.mulf %132, %136 : vector<2x32xf32>
    %c2_i32 = arith.constant 2 : i32
    %138 = vector.broadcast %c2_i32 : i32 to vector<2x32xi32>
    %139 = arith.cmpi sgt, %9, %138 : vector<2x32xi32>
    %140 = arith.select %139, %137, %88 : vector<2x32xi1>, vector<2x32xf32>
    %141 = arith.select %139, %135, %89 : vector<2x32xi1>, vector<2x32xf32>
    %142 = vector.extract_strided_slice %10 {offsets = [0, 3], sizes = [2, 1], strides = [1, 1]} : vector<2x12xi32> to vector<2x1xi32>
    %143 = vector.broadcast %142 : vector<2x1xi32> to vector<2x28xi32>
    %144 = arith.cmpi eq, %143, %6 : vector<2x28xi32>
    %145 = arith.extui %144 : vector<2x28xi1> to vector<2x28xi32>
    %146 = arith.sitofp %145 : vector<2x28xi32> to vector<2x28xf32>
    %cst_29 = arith.constant dense<0.000000e+00> : vector<2x128xf32>
    %147 = tpu.matmul %146, %5, %cst_29 {dimension_numbers = #tpu.dot_dimension_numbers<[1], [0], [0], [1], [0, 0, 1, 1], [], []>} : vector<2x28xf32>, vector<28x128xf32>, vector<2x128xf32> -> vector<2x128xf32>
    %cst_30 = arith.constant dense<0.000000e+00> : vector<2x256xf32>
    %148 = tpu.matmul %140, %11, %cst_30 {dimension_numbers = #tpu.dot_dimension_numbers<[1], [0], [0], [1], [0, 0, 1, 1], [], []>} : vector<2x32xf32>, vector<32x256xf32>, vector<2x256xf32> -> vector<2x256xf32>
    %149 = vector.extract_strided_slice %148 {offsets = [0, 0], sizes = [2, 128], strides = [1, 1]} : vector<2x256xf32> to vector<2x128xf32>
    %150 = arith.addf %147, %149 : vector<2x128xf32>
    %151 = vector.extract_strided_slice %148 {offsets = [0, 128], sizes = [2, 128], strides = [1, 1]} : vector<2x256xf32> to vector<2x128xf32>
    %152 = vector.broadcast %13 : vector<1x128xf32> to vector<2x128xf32>
    %153 = arith.addf %151, %152 : vector<2x128xf32>
    %cst_31 = arith.constant dense<0.000000e+00> : vector<2x128xf32>
    %154 = tpu.matmul %121, %12, %cst_31 {dimension_numbers = #tpu.dot_dimension_numbers<[1], [0], [0], [1], [0, 0, 1, 1], [], []>} : vector<2x32xf32>, vector<32x128xf32>, vector<2x128xf32> -> vector<2x128xf32>
    %155 = arith.addf %153, %154 : vector<2x128xf32>
    %156 = arith.negf %155 : vector<2x128xf32>
    %157 = math.exp %156 : vector<2x128xf32>
    %cst_32 = arith.constant 1.000000e+00 : f32
    %158 = vector.broadcast %cst_32 : f32 to vector<2x128xf32>
    %159 = arith.addf %158, %157 : vector<2x128xf32>
    %160 = arith.divf %158, %159 : vector<2x128xf32>
    %161 = math.tanh %155 : vector<2x128xf32>
    %162 = vector.extract_strided_slice %160 {offsets = [0, 0], sizes = [2, 32], strides = [1, 1]} : vector<2x128xf32> to vector<2x32xf32>
    %163 = vector.extract_strided_slice %160 {offsets = [0, 32], sizes = [2, 32], strides = [1, 1]} : vector<2x128xf32> to vector<2x32xf32>
    %164 = vector.extract_strided_slice %161 {offsets = [0, 64], sizes = [2, 32], strides = [1, 1]} : vector<2x128xf32> to vector<2x32xf32>
    %165 = vector.extract_strided_slice %160 {offsets = [0, 96], sizes = [2, 32], strides = [1, 1]} : vector<2x128xf32> to vector<2x32xf32>
    %166 = arith.mulf %163, %122 : vector<2x32xf32>
    %167 = arith.mulf %162, %164 : vector<2x32xf32>
    %168 = arith.addf %166, %167 : vector<2x32xf32>
    %169 = math.tanh %168 : vector<2x32xf32>
    %170 = arith.mulf %165, %169 : vector<2x32xf32>
    %c2_i32_33 = arith.constant 2 : i32
    %171 = vector.broadcast %c2_i32_33 : i32 to vector<2x32xi32>
    %172 = arith.cmpi sgt, %9, %171 : vector<2x32xi32>
    %173 = arith.select %172, %170, %121 : vector<2x32xi1>, vector<2x32xf32>
    %174 = arith.select %172, %168, %122 : vector<2x32xi1>, vector<2x32xf32>
    %175 = arith.negf %150 : vector<2x128xf32>
    %176 = math.exp %175 : vector<2x128xf32>
    %cst_34 = arith.constant 1.000000e+00 : f32
    %177 = vector.broadcast %cst_34 : f32 to vector<2x128xf32>
    %178 = arith.addf %177, %176 : vector<2x128xf32>
    %179 = arith.divf %177, %178 : vector<2x128xf32>
    %180 = math.tanh %150 : vector<2x128xf32>
    %181 = vector.extract_strided_slice %179 {offsets = [0, 0], sizes = [2, 32], strides = [1, 1]} : vector<2x128xf32> to vector<2x32xf32>
    %182 = vector.extract_strided_slice %179 {offsets = [0, 32], sizes = [2, 32], strides = [1, 1]} : vector<2x128xf32> to vector<2x32xf32>
    %183 = vector.extract_strided_slice %180 {offsets = [0, 64], sizes = [2, 32], strides = [1, 1]} : vector<2x128xf32> to vector<2x32xf32>
    %184 = vector.extract_strided_slice %179 {offsets = [0, 96], sizes = [2, 32], strides = [1, 1]} : vector<2x128xf32> to vector<2x32xf32>
    %185 = arith.mulf %182, %141 : vector<2x32xf32>
    %186 = arith.mulf %181, %183 : vector<2x32xf32>
    %187 = arith.addf %185, %186 : vector<2x32xf32>
    %188 = math.tanh %187 : vector<2x32xf32>
    %189 = arith.mulf %184, %188 : vector<2x32xf32>
    %c3_i32 = arith.constant 3 : i32
    %190 = vector.broadcast %c3_i32 : i32 to vector<2x32xi32>
    %191 = arith.cmpi sgt, %9, %190 : vector<2x32xi32>
    %192 = arith.select %191, %189, %140 : vector<2x32xi1>, vector<2x32xf32>
    %193 = arith.select %191, %187, %141 : vector<2x32xi1>, vector<2x32xf32>
    %194 = vector.extract_strided_slice %10 {offsets = [0, 4], sizes = [2, 1], strides = [1, 1]} : vector<2x12xi32> to vector<2x1xi32>
    %195 = vector.broadcast %194 : vector<2x1xi32> to vector<2x28xi32>
    %196 = arith.cmpi eq, %195, %6 : vector<2x28xi32>
    %197 = arith.extui %196 : vector<2x28xi1> to vector<2x28xi32>
    %198 = arith.sitofp %197 : vector<2x28xi32> to vector<2x28xf32>
    %cst_35 = arith.constant dense<0.000000e+00> : vector<2x128xf32>
    %199 = tpu.matmul %198, %5, %cst_35 {dimension_numbers = #tpu.dot_dimension_numbers<[1], [0], [0], [1], [0, 0, 1, 1], [], []>} : vector<2x28xf32>, vector<28x128xf32>, vector<2x128xf32> -> vector<2x128xf32>
    %cst_36 = arith.constant dense<0.000000e+00> : vector<2x256xf32>
    %200 = tpu.matmul %192, %11, %cst_36 {dimension_numbers = #tpu.dot_dimension_numbers<[1], [0], [0], [1], [0, 0, 1, 1], [], []>} : vector<2x32xf32>, vector<32x256xf32>, vector<2x256xf32> -> vector<2x256xf32>
    %201 = vector.extract_strided_slice %200 {offsets = [0, 0], sizes = [2, 128], strides = [1, 1]} : vector<2x256xf32> to vector<2x128xf32>
    %202 = arith.addf %199, %201 : vector<2x128xf32>
    %203 = vector.extract_strided_slice %200 {offsets = [0, 128], sizes = [2, 128], strides = [1, 1]} : vector<2x256xf32> to vector<2x128xf32>
    %204 = vector.broadcast %13 : vector<1x128xf32> to vector<2x128xf32>
    %205 = arith.addf %203, %204 : vector<2x128xf32>
    %cst_37 = arith.constant dense<0.000000e+00> : vector<2x128xf32>
    %206 = tpu.matmul %173, %12, %cst_37 {dimension_numbers = #tpu.dot_dimension_numbers<[1], [0], [0], [1], [0, 0, 1, 1], [], []>} : vector<2x32xf32>, vector<32x128xf32>, vector<2x128xf32> -> vector<2x128xf32>
    %207 = arith.addf %205, %206 : vector<2x128xf32>
    %208 = arith.negf %207 : vector<2x128xf32>
    %209 = math.exp %208 : vector<2x128xf32>
    %cst_38 = arith.constant 1.000000e+00 : f32
    %210 = vector.broadcast %cst_38 : f32 to vector<2x128xf32>
    %211 = arith.addf %210, %209 : vector<2x128xf32>
    %212 = arith.divf %210, %211 : vector<2x128xf32>
    %213 = math.tanh %207 : vector<2x128xf32>
    %214 = vector.extract_strided_slice %212 {offsets = [0, 0], sizes = [2, 32], strides = [1, 1]} : vector<2x128xf32> to vector<2x32xf32>
    %215 = vector.extract_strided_slice %212 {offsets = [0, 32], sizes = [2, 32], strides = [1, 1]} : vector<2x128xf32> to vector<2x32xf32>
    %216 = vector.extract_strided_slice %213 {offsets = [0, 64], sizes = [2, 32], strides = [1, 1]} : vector<2x128xf32> to vector<2x32xf32>
    %217 = vector.extract_strided_slice %212 {offsets = [0, 96], sizes = [2, 32], strides = [1, 1]} : vector<2x128xf32> to vector<2x32xf32>
    %218 = arith.mulf %215, %174 : vector<2x32xf32>
    %219 = arith.mulf %214, %216 : vector<2x32xf32>
    %220 = arith.addf %218, %219 : vector<2x32xf32>
    %221 = math.tanh %220 : vector<2x32xf32>
    %222 = arith.mulf %217, %221 : vector<2x32xf32>
    %c3_i32_39 = arith.constant 3 : i32
    %223 = vector.broadcast %c3_i32_39 : i32 to vector<2x32xi32>
    %224 = arith.cmpi sgt, %9, %223 : vector<2x32xi32>
    %225 = arith.select %224, %222, %173 : vector<2x32xi1>, vector<2x32xf32>
    %226 = arith.select %224, %220, %174 : vector<2x32xi1>, vector<2x32xf32>
    %227 = arith.negf %202 : vector<2x128xf32>
    %228 = math.exp %227 : vector<2x128xf32>
    %cst_40 = arith.constant 1.000000e+00 : f32
    %229 = vector.broadcast %cst_40 : f32 to vector<2x128xf32>
    %230 = arith.addf %229, %228 : vector<2x128xf32>
    %231 = arith.divf %229, %230 : vector<2x128xf32>
    %232 = math.tanh %202 : vector<2x128xf32>
    %233 = vector.extract_strided_slice %231 {offsets = [0, 0], sizes = [2, 32], strides = [1, 1]} : vector<2x128xf32> to vector<2x32xf32>
    %234 = vector.extract_strided_slice %231 {offsets = [0, 32], sizes = [2, 32], strides = [1, 1]} : vector<2x128xf32> to vector<2x32xf32>
    %235 = vector.extract_strided_slice %232 {offsets = [0, 64], sizes = [2, 32], strides = [1, 1]} : vector<2x128xf32> to vector<2x32xf32>
    %236 = vector.extract_strided_slice %231 {offsets = [0, 96], sizes = [2, 32], strides = [1, 1]} : vector<2x128xf32> to vector<2x32xf32>
    %237 = arith.mulf %234, %193 : vector<2x32xf32>
    %238 = arith.mulf %233, %235 : vector<2x32xf32>
    %239 = arith.addf %237, %238 : vector<2x32xf32>
    %240 = math.tanh %239 : vector<2x32xf32>
    %241 = arith.mulf %236, %240 : vector<2x32xf32>
    %c4_i32 = arith.constant 4 : i32
    %242 = vector.broadcast %c4_i32 : i32 to vector<2x32xi32>
    %243 = arith.cmpi sgt, %9, %242 : vector<2x32xi32>
    %244 = arith.select %243, %241, %192 : vector<2x32xi1>, vector<2x32xf32>
    %245 = arith.select %243, %239, %193 : vector<2x32xi1>, vector<2x32xf32>
    %246 = vector.extract_strided_slice %10 {offsets = [0, 5], sizes = [2, 1], strides = [1, 1]} : vector<2x12xi32> to vector<2x1xi32>
    %247 = vector.broadcast %246 : vector<2x1xi32> to vector<2x28xi32>
    %248 = arith.cmpi eq, %247, %6 : vector<2x28xi32>
    %249 = arith.extui %248 : vector<2x28xi1> to vector<2x28xi32>
    %250 = arith.sitofp %249 : vector<2x28xi32> to vector<2x28xf32>
    %cst_41 = arith.constant dense<0.000000e+00> : vector<2x128xf32>
    %251 = tpu.matmul %250, %5, %cst_41 {dimension_numbers = #tpu.dot_dimension_numbers<[1], [0], [0], [1], [0, 0, 1, 1], [], []>} : vector<2x28xf32>, vector<28x128xf32>, vector<2x128xf32> -> vector<2x128xf32>
    %cst_42 = arith.constant dense<0.000000e+00> : vector<2x256xf32>
    %252 = tpu.matmul %244, %11, %cst_42 {dimension_numbers = #tpu.dot_dimension_numbers<[1], [0], [0], [1], [0, 0, 1, 1], [], []>} : vector<2x32xf32>, vector<32x256xf32>, vector<2x256xf32> -> vector<2x256xf32>
    %253 = vector.extract_strided_slice %252 {offsets = [0, 0], sizes = [2, 128], strides = [1, 1]} : vector<2x256xf32> to vector<2x128xf32>
    %254 = arith.addf %251, %253 : vector<2x128xf32>
    %255 = vector.extract_strided_slice %252 {offsets = [0, 128], sizes = [2, 128], strides = [1, 1]} : vector<2x256xf32> to vector<2x128xf32>
    %256 = vector.broadcast %13 : vector<1x128xf32> to vector<2x128xf32>
    %257 = arith.addf %255, %256 : vector<2x128xf32>
    %cst_43 = arith.constant dense<0.000000e+00> : vector<2x128xf32>
    %258 = tpu.matmul %225, %12, %cst_43 {dimension_numbers = #tpu.dot_dimension_numbers<[1], [0], [0], [1], [0, 0, 1, 1], [], []>} : vector<2x32xf32>, vector<32x128xf32>, vector<2x128xf32> -> vector<2x128xf32>
    %259 = arith.addf %257, %258 : vector<2x128xf32>
    %260 = arith.negf %259 : vector<2x128xf32>
    %261 = math.exp %260 : vector<2x128xf32>
    %cst_44 = arith.constant 1.000000e+00 : f32
    %262 = vector.broadcast %cst_44 : f32 to vector<2x128xf32>
    %263 = arith.addf %262, %261 : vector<2x128xf32>
    %264 = arith.divf %262, %263 : vector<2x128xf32>
    %265 = math.tanh %259 : vector<2x128xf32>
    %266 = vector.extract_strided_slice %264 {offsets = [0, 0], sizes = [2, 32], strides = [1, 1]} : vector<2x128xf32> to vector<2x32xf32>
    %267 = vector.extract_strided_slice %264 {offsets = [0, 32], sizes = [2, 32], strides = [1, 1]} : vector<2x128xf32> to vector<2x32xf32>
    %268 = vector.extract_strided_slice %265 {offsets = [0, 64], sizes = [2, 32], strides = [1, 1]} : vector<2x128xf32> to vector<2x32xf32>
    %269 = vector.extract_strided_slice %264 {offsets = [0, 96], sizes = [2, 32], strides = [1, 1]} : vector<2x128xf32> to vector<2x32xf32>
    %270 = arith.mulf %267, %226 : vector<2x32xf32>
    %271 = arith.mulf %266, %268 : vector<2x32xf32>
    %272 = arith.addf %270, %271 : vector<2x32xf32>
    %273 = math.tanh %272 : vector<2x32xf32>
    %274 = arith.mulf %269, %273 : vector<2x32xf32>
    %c4_i32_45 = arith.constant 4 : i32
    %275 = vector.broadcast %c4_i32_45 : i32 to vector<2x32xi32>
    %276 = arith.cmpi sgt, %9, %275 : vector<2x32xi32>
    %277 = arith.select %276, %274, %225 : vector<2x32xi1>, vector<2x32xf32>
    %278 = arith.select %276, %272, %226 : vector<2x32xi1>, vector<2x32xf32>
    %279 = arith.negf %254 : vector<2x128xf32>
    %280 = math.exp %279 : vector<2x128xf32>
    %cst_46 = arith.constant 1.000000e+00 : f32
    %281 = vector.broadcast %cst_46 : f32 to vector<2x128xf32>
    %282 = arith.addf %281, %280 : vector<2x128xf32>
    %283 = arith.divf %281, %282 : vector<2x128xf32>
    %284 = math.tanh %254 : vector<2x128xf32>
    %285 = vector.extract_strided_slice %283 {offsets = [0, 0], sizes = [2, 32], strides = [1, 1]} : vector<2x128xf32> to vector<2x32xf32>
    %286 = vector.extract_strided_slice %283 {offsets = [0, 32], sizes = [2, 32], strides = [1, 1]} : vector<2x128xf32> to vector<2x32xf32>
    %287 = vector.extract_strided_slice %284 {offsets = [0, 64], sizes = [2, 32], strides = [1, 1]} : vector<2x128xf32> to vector<2x32xf32>
    %288 = vector.extract_strided_slice %283 {offsets = [0, 96], sizes = [2, 32], strides = [1, 1]} : vector<2x128xf32> to vector<2x32xf32>
    %289 = arith.mulf %286, %245 : vector<2x32xf32>
    %290 = arith.mulf %285, %287 : vector<2x32xf32>
    %291 = arith.addf %289, %290 : vector<2x32xf32>
    %292 = math.tanh %291 : vector<2x32xf32>
    %293 = arith.mulf %288, %292 : vector<2x32xf32>
    %c5_i32 = arith.constant 5 : i32
    %294 = vector.broadcast %c5_i32 : i32 to vector<2x32xi32>
    %295 = arith.cmpi sgt, %9, %294 : vector<2x32xi32>
    %296 = arith.select %295, %293, %244 : vector<2x32xi1>, vector<2x32xf32>
    %297 = arith.select %295, %291, %245 : vector<2x32xi1>, vector<2x32xf32>
    %298 = vector.extract_strided_slice %10 {offsets = [0, 6], sizes = [2, 1], strides = [1, 1]} : vector<2x12xi32> to vector<2x1xi32>
    %299 = vector.broadcast %298 : vector<2x1xi32> to vector<2x28xi32>
    %300 = arith.cmpi eq, %299, %6 : vector<2x28xi32>
    %301 = arith.extui %300 : vector<2x28xi1> to vector<2x28xi32>
    %302 = arith.sitofp %301 : vector<2x28xi32> to vector<2x28xf32>
    %cst_47 = arith.constant dense<0.000000e+00> : vector<2x128xf32>
    %303 = tpu.matmul %302, %5, %cst_47 {dimension_numbers = #tpu.dot_dimension_numbers<[1], [0], [0], [1], [0, 0, 1, 1], [], []>} : vector<2x28xf32>, vector<28x128xf32>, vector<2x128xf32> -> vector<2x128xf32>
    %cst_48 = arith.constant dense<0.000000e+00> : vector<2x256xf32>
    %304 = tpu.matmul %296, %11, %cst_48 {dimension_numbers = #tpu.dot_dimension_numbers<[1], [0], [0], [1], [0, 0, 1, 1], [], []>} : vector<2x32xf32>, vector<32x256xf32>, vector<2x256xf32> -> vector<2x256xf32>
    %305 = vector.extract_strided_slice %304 {offsets = [0, 0], sizes = [2, 128], strides = [1, 1]} : vector<2x256xf32> to vector<2x128xf32>
    %306 = arith.addf %303, %305 : vector<2x128xf32>
    %307 = vector.extract_strided_slice %304 {offsets = [0, 128], sizes = [2, 128], strides = [1, 1]} : vector<2x256xf32> to vector<2x128xf32>
    %308 = vector.broadcast %13 : vector<1x128xf32> to vector<2x128xf32>
    %309 = arith.addf %307, %308 : vector<2x128xf32>
    %cst_49 = arith.constant dense<0.000000e+00> : vector<2x128xf32>
    %310 = tpu.matmul %277, %12, %cst_49 {dimension_numbers = #tpu.dot_dimension_numbers<[1], [0], [0], [1], [0, 0, 1, 1], [], []>} : vector<2x32xf32>, vector<32x128xf32>, vector<2x128xf32> -> vector<2x128xf32>
    %311 = arith.addf %309, %310 : vector<2x128xf32>
    %312 = arith.negf %311 : vector<2x128xf32>
    %313 = math.exp %312 : vector<2x128xf32>
    %cst_50 = arith.constant 1.000000e+00 : f32
    %314 = vector.broadcast %cst_50 : f32 to vector<2x128xf32>
    %315 = arith.addf %314, %313 : vector<2x128xf32>
    %316 = arith.divf %314, %315 : vector<2x128xf32>
    %317 = math.tanh %311 : vector<2x128xf32>
    %318 = vector.extract_strided_slice %316 {offsets = [0, 0], sizes = [2, 32], strides = [1, 1]} : vector<2x128xf32> to vector<2x32xf32>
    %319 = vector.extract_strided_slice %316 {offsets = [0, 32], sizes = [2, 32], strides = [1, 1]} : vector<2x128xf32> to vector<2x32xf32>
    %320 = vector.extract_strided_slice %317 {offsets = [0, 64], sizes = [2, 32], strides = [1, 1]} : vector<2x128xf32> to vector<2x32xf32>
    %321 = vector.extract_strided_slice %316 {offsets = [0, 96], sizes = [2, 32], strides = [1, 1]} : vector<2x128xf32> to vector<2x32xf32>
    %322 = arith.mulf %319, %278 : vector<2x32xf32>
    %323 = arith.mulf %318, %320 : vector<2x32xf32>
    %324 = arith.addf %322, %323 : vector<2x32xf32>
    %325 = math.tanh %324 : vector<2x32xf32>
    %326 = arith.mulf %321, %325 : vector<2x32xf32>
    %c5_i32_51 = arith.constant 5 : i32
    %327 = vector.broadcast %c5_i32_51 : i32 to vector<2x32xi32>
    %328 = arith.cmpi sgt, %9, %327 : vector<2x32xi32>
    %329 = arith.select %328, %326, %277 : vector<2x32xi1>, vector<2x32xf32>
    %330 = arith.select %328, %324, %278 : vector<2x32xi1>, vector<2x32xf32>
    %331 = arith.negf %306 : vector<2x128xf32>
    %332 = math.exp %331 : vector<2x128xf32>
    %cst_52 = arith.constant 1.000000e+00 : f32
    %333 = vector.broadcast %cst_52 : f32 to vector<2x128xf32>
    %334 = arith.addf %333, %332 : vector<2x128xf32>
    %335 = arith.divf %333, %334 : vector<2x128xf32>
    %336 = math.tanh %306 : vector<2x128xf32>
    %337 = vector.extract_strided_slice %335 {offsets = [0, 0], sizes = [2, 32], strides = [1, 1]} : vector<2x128xf32> to vector<2x32xf32>
    %338 = vector.extract_strided_slice %335 {offsets = [0, 32], sizes = [2, 32], strides = [1, 1]} : vector<2x128xf32> to vector<2x32xf32>
    %339 = vector.extract_strided_slice %336 {offsets = [0, 64], sizes = [2, 32], strides = [1, 1]} : vector<2x128xf32> to vector<2x32xf32>
    %340 = vector.extract_strided_slice %335 {offsets = [0, 96], sizes = [2, 32], strides = [1, 1]} : vector<2x128xf32> to vector<2x32xf32>
    %341 = arith.mulf %338, %297 : vector<2x32xf32>
    %342 = arith.mulf %337, %339 : vector<2x32xf32>
    %343 = arith.addf %341, %342 : vector<2x32xf32>
    %344 = math.tanh %343 : vector<2x32xf32>
    %345 = arith.mulf %340, %344 : vector<2x32xf32>
    %c6_i32 = arith.constant 6 : i32
    %346 = vector.broadcast %c6_i32 : i32 to vector<2x32xi32>
    %347 = arith.cmpi sgt, %9, %346 : vector<2x32xi32>
    %348 = arith.select %347, %345, %296 : vector<2x32xi1>, vector<2x32xf32>
    %349 = arith.select %347, %343, %297 : vector<2x32xi1>, vector<2x32xf32>
    %350 = vector.extract_strided_slice %10 {offsets = [0, 7], sizes = [2, 1], strides = [1, 1]} : vector<2x12xi32> to vector<2x1xi32>
    %351 = vector.broadcast %350 : vector<2x1xi32> to vector<2x28xi32>
    %352 = arith.cmpi eq, %351, %6 : vector<2x28xi32>
    %353 = arith.extui %352 : vector<2x28xi1> to vector<2x28xi32>
    %354 = arith.sitofp %353 : vector<2x28xi32> to vector<2x28xf32>
    %cst_53 = arith.constant dense<0.000000e+00> : vector<2x128xf32>
    %355 = tpu.matmul %354, %5, %cst_53 {dimension_numbers = #tpu.dot_dimension_numbers<[1], [0], [0], [1], [0, 0, 1, 1], [], []>} : vector<2x28xf32>, vector<28x128xf32>, vector<2x128xf32> -> vector<2x128xf32>
    %cst_54 = arith.constant dense<0.000000e+00> : vector<2x256xf32>
    %356 = tpu.matmul %348, %11, %cst_54 {dimension_numbers = #tpu.dot_dimension_numbers<[1], [0], [0], [1], [0, 0, 1, 1], [], []>} : vector<2x32xf32>, vector<32x256xf32>, vector<2x256xf32> -> vector<2x256xf32>
    %357 = vector.extract_strided_slice %356 {offsets = [0, 0], sizes = [2, 128], strides = [1, 1]} : vector<2x256xf32> to vector<2x128xf32>
    %358 = arith.addf %355, %357 : vector<2x128xf32>
    %359 = vector.extract_strided_slice %356 {offsets = [0, 128], sizes = [2, 128], strides = [1, 1]} : vector<2x256xf32> to vector<2x128xf32>
    %360 = vector.broadcast %13 : vector<1x128xf32> to vector<2x128xf32>
    %361 = arith.addf %359, %360 : vector<2x128xf32>
    %cst_55 = arith.constant dense<0.000000e+00> : vector<2x128xf32>
    %362 = tpu.matmul %329, %12, %cst_55 {dimension_numbers = #tpu.dot_dimension_numbers<[1], [0], [0], [1], [0, 0, 1, 1], [], []>} : vector<2x32xf32>, vector<32x128xf32>, vector<2x128xf32> -> vector<2x128xf32>
    %363 = arith.addf %361, %362 : vector<2x128xf32>
    %364 = arith.negf %363 : vector<2x128xf32>
    %365 = math.exp %364 : vector<2x128xf32>
    %cst_56 = arith.constant 1.000000e+00 : f32
    %366 = vector.broadcast %cst_56 : f32 to vector<2x128xf32>
    %367 = arith.addf %366, %365 : vector<2x128xf32>
    %368 = arith.divf %366, %367 : vector<2x128xf32>
    %369 = math.tanh %363 : vector<2x128xf32>
    %370 = vector.extract_strided_slice %368 {offsets = [0, 0], sizes = [2, 32], strides = [1, 1]} : vector<2x128xf32> to vector<2x32xf32>
    %371 = vector.extract_strided_slice %368 {offsets = [0, 32], sizes = [2, 32], strides = [1, 1]} : vector<2x128xf32> to vector<2x32xf32>
    %372 = vector.extract_strided_slice %369 {offsets = [0, 64], sizes = [2, 32], strides = [1, 1]} : vector<2x128xf32> to vector<2x32xf32>
    %373 = vector.extract_strided_slice %368 {offsets = [0, 96], sizes = [2, 32], strides = [1, 1]} : vector<2x128xf32> to vector<2x32xf32>
    %374 = arith.mulf %371, %330 : vector<2x32xf32>
    %375 = arith.mulf %370, %372 : vector<2x32xf32>
    %376 = arith.addf %374, %375 : vector<2x32xf32>
    %377 = math.tanh %376 : vector<2x32xf32>
    %378 = arith.mulf %373, %377 : vector<2x32xf32>
    %c6_i32_57 = arith.constant 6 : i32
    %379 = vector.broadcast %c6_i32_57 : i32 to vector<2x32xi32>
    %380 = arith.cmpi sgt, %9, %379 : vector<2x32xi32>
    %381 = arith.select %380, %378, %329 : vector<2x32xi1>, vector<2x32xf32>
    %382 = arith.select %380, %376, %330 : vector<2x32xi1>, vector<2x32xf32>
    %383 = arith.negf %358 : vector<2x128xf32>
    %384 = math.exp %383 : vector<2x128xf32>
    %cst_58 = arith.constant 1.000000e+00 : f32
    %385 = vector.broadcast %cst_58 : f32 to vector<2x128xf32>
    %386 = arith.addf %385, %384 : vector<2x128xf32>
    %387 = arith.divf %385, %386 : vector<2x128xf32>
    %388 = math.tanh %358 : vector<2x128xf32>
    %389 = vector.extract_strided_slice %387 {offsets = [0, 0], sizes = [2, 32], strides = [1, 1]} : vector<2x128xf32> to vector<2x32xf32>
    %390 = vector.extract_strided_slice %387 {offsets = [0, 32], sizes = [2, 32], strides = [1, 1]} : vector<2x128xf32> to vector<2x32xf32>
    %391 = vector.extract_strided_slice %388 {offsets = [0, 64], sizes = [2, 32], strides = [1, 1]} : vector<2x128xf32> to vector<2x32xf32>
    %392 = vector.extract_strided_slice %387 {offsets = [0, 96], sizes = [2, 32], strides = [1, 1]} : vector<2x128xf32> to vector<2x32xf32>
    %393 = arith.mulf %390, %349 : vector<2x32xf32>
    %394 = arith.mulf %389, %391 : vector<2x32xf32>
    %395 = arith.addf %393, %394 : vector<2x32xf32>
    %396 = math.tanh %395 : vector<2x32xf32>
    %397 = arith.mulf %392, %396 : vector<2x32xf32>
    %c7_i32 = arith.constant 7 : i32
    %398 = vector.broadcast %c7_i32 : i32 to vector<2x32xi32>
    %399 = arith.cmpi sgt, %9, %398 : vector<2x32xi32>
    %400 = arith.select %399, %397, %348 : vector<2x32xi1>, vector<2x32xf32>
    %401 = arith.select %399, %395, %349 : vector<2x32xi1>, vector<2x32xf32>
    %402 = vector.extract_strided_slice %10 {offsets = [0, 8], sizes = [2, 1], strides = [1, 1]} : vector<2x12xi32> to vector<2x1xi32>
    %403 = vector.broadcast %402 : vector<2x1xi32> to vector<2x28xi32>
    %404 = arith.cmpi eq, %403, %6 : vector<2x28xi32>
    %405 = arith.extui %404 : vector<2x28xi1> to vector<2x28xi32>
    %406 = arith.sitofp %405 : vector<2x28xi32> to vector<2x28xf32>
    %cst_59 = arith.constant dense<0.000000e+00> : vector<2x128xf32>
    %407 = tpu.matmul %406, %5, %cst_59 {dimension_numbers = #tpu.dot_dimension_numbers<[1], [0], [0], [1], [0, 0, 1, 1], [], []>} : vector<2x28xf32>, vector<28x128xf32>, vector<2x128xf32> -> vector<2x128xf32>
    %cst_60 = arith.constant dense<0.000000e+00> : vector<2x256xf32>
    %408 = tpu.matmul %400, %11, %cst_60 {dimension_numbers = #tpu.dot_dimension_numbers<[1], [0], [0], [1], [0, 0, 1, 1], [], []>} : vector<2x32xf32>, vector<32x256xf32>, vector<2x256xf32> -> vector<2x256xf32>
    %409 = vector.extract_strided_slice %408 {offsets = [0, 0], sizes = [2, 128], strides = [1, 1]} : vector<2x256xf32> to vector<2x128xf32>
    %410 = arith.addf %407, %409 : vector<2x128xf32>
    %411 = vector.extract_strided_slice %408 {offsets = [0, 128], sizes = [2, 128], strides = [1, 1]} : vector<2x256xf32> to vector<2x128xf32>
    %412 = vector.broadcast %13 : vector<1x128xf32> to vector<2x128xf32>
    %413 = arith.addf %411, %412 : vector<2x128xf32>
    %cst_61 = arith.constant dense<0.000000e+00> : vector<2x128xf32>
    %414 = tpu.matmul %381, %12, %cst_61 {dimension_numbers = #tpu.dot_dimension_numbers<[1], [0], [0], [1], [0, 0, 1, 1], [], []>} : vector<2x32xf32>, vector<32x128xf32>, vector<2x128xf32> -> vector<2x128xf32>
    %415 = arith.addf %413, %414 : vector<2x128xf32>
    %416 = arith.negf %415 : vector<2x128xf32>
    %417 = math.exp %416 : vector<2x128xf32>
    %cst_62 = arith.constant 1.000000e+00 : f32
    %418 = vector.broadcast %cst_62 : f32 to vector<2x128xf32>
    %419 = arith.addf %418, %417 : vector<2x128xf32>
    %420 = arith.divf %418, %419 : vector<2x128xf32>
    %421 = math.tanh %415 : vector<2x128xf32>
    %422 = vector.extract_strided_slice %420 {offsets = [0, 0], sizes = [2, 32], strides = [1, 1]} : vector<2x128xf32> to vector<2x32xf32>
    %423 = vector.extract_strided_slice %420 {offsets = [0, 32], sizes = [2, 32], strides = [1, 1]} : vector<2x128xf32> to vector<2x32xf32>
    %424 = vector.extract_strided_slice %421 {offsets = [0, 64], sizes = [2, 32], strides = [1, 1]} : vector<2x128xf32> to vector<2x32xf32>
    %425 = vector.extract_strided_slice %420 {offsets = [0, 96], sizes = [2, 32], strides = [1, 1]} : vector<2x128xf32> to vector<2x32xf32>
    %426 = arith.mulf %423, %382 : vector<2x32xf32>
    %427 = arith.mulf %422, %424 : vector<2x32xf32>
    %428 = arith.addf %426, %427 : vector<2x32xf32>
    %429 = math.tanh %428 : vector<2x32xf32>
    %430 = arith.mulf %425, %429 : vector<2x32xf32>
    %c7_i32_63 = arith.constant 7 : i32
    %431 = vector.broadcast %c7_i32_63 : i32 to vector<2x32xi32>
    %432 = arith.cmpi sgt, %9, %431 : vector<2x32xi32>
    %433 = arith.select %432, %430, %381 : vector<2x32xi1>, vector<2x32xf32>
    %434 = arith.select %432, %428, %382 : vector<2x32xi1>, vector<2x32xf32>
    %435 = arith.negf %410 : vector<2x128xf32>
    %436 = math.exp %435 : vector<2x128xf32>
    %cst_64 = arith.constant 1.000000e+00 : f32
    %437 = vector.broadcast %cst_64 : f32 to vector<2x128xf32>
    %438 = arith.addf %437, %436 : vector<2x128xf32>
    %439 = arith.divf %437, %438 : vector<2x128xf32>
    %440 = math.tanh %410 : vector<2x128xf32>
    %441 = vector.extract_strided_slice %439 {offsets = [0, 0], sizes = [2, 32], strides = [1, 1]} : vector<2x128xf32> to vector<2x32xf32>
    %442 = vector.extract_strided_slice %439 {offsets = [0, 32], sizes = [2, 32], strides = [1, 1]} : vector<2x128xf32> to vector<2x32xf32>
    %443 = vector.extract_strided_slice %440 {offsets = [0, 64], sizes = [2, 32], strides = [1, 1]} : vector<2x128xf32> to vector<2x32xf32>
    %444 = vector.extract_strided_slice %439 {offsets = [0, 96], sizes = [2, 32], strides = [1, 1]} : vector<2x128xf32> to vector<2x32xf32>
    %445 = arith.mulf %442, %401 : vector<2x32xf32>
    %446 = arith.mulf %441, %443 : vector<2x32xf32>
    %447 = arith.addf %445, %446 : vector<2x32xf32>
    %448 = math.tanh %447 : vector<2x32xf32>
    %449 = arith.mulf %444, %448 : vector<2x32xf32>
    %c8_i32 = arith.constant 8 : i32
    %450 = vector.broadcast %c8_i32 : i32 to vector<2x32xi32>
    %451 = arith.cmpi sgt, %9, %450 : vector<2x32xi32>
    %452 = arith.select %451, %449, %400 : vector<2x32xi1>, vector<2x32xf32>
    %453 = arith.select %451, %447, %401 : vector<2x32xi1>, vector<2x32xf32>
    %454 = vector.extract_strided_slice %10 {offsets = [0, 9], sizes = [2, 1], strides = [1, 1]} : vector<2x12xi32> to vector<2x1xi32>
    %455 = vector.broadcast %454 : vector<2x1xi32> to vector<2x28xi32>
    %456 = arith.cmpi eq, %455, %6 : vector<2x28xi32>
    %457 = arith.extui %456 : vector<2x28xi1> to vector<2x28xi32>
    %458 = arith.sitofp %457 : vector<2x28xi32> to vector<2x28xf32>
    %cst_65 = arith.constant dense<0.000000e+00> : vector<2x128xf32>
    %459 = tpu.matmul %458, %5, %cst_65 {dimension_numbers = #tpu.dot_dimension_numbers<[1], [0], [0], [1], [0, 0, 1, 1], [], []>} : vector<2x28xf32>, vector<28x128xf32>, vector<2x128xf32> -> vector<2x128xf32>
    %cst_66 = arith.constant dense<0.000000e+00> : vector<2x256xf32>
    %460 = tpu.matmul %452, %11, %cst_66 {dimension_numbers = #tpu.dot_dimension_numbers<[1], [0], [0], [1], [0, 0, 1, 1], [], []>} : vector<2x32xf32>, vector<32x256xf32>, vector<2x256xf32> -> vector<2x256xf32>
    %461 = vector.extract_strided_slice %460 {offsets = [0, 0], sizes = [2, 128], strides = [1, 1]} : vector<2x256xf32> to vector<2x128xf32>
    %462 = arith.addf %459, %461 : vector<2x128xf32>
    %463 = vector.extract_strided_slice %460 {offsets = [0, 128], sizes = [2, 128], strides = [1, 1]} : vector<2x256xf32> to vector<2x128xf32>
    %464 = vector.broadcast %13 : vector<1x128xf32> to vector<2x128xf32>
    %465 = arith.addf %463, %464 : vector<2x128xf32>
    %cst_67 = arith.constant dense<0.000000e+00> : vector<2x128xf32>
    %466 = tpu.matmul %433, %12, %cst_67 {dimension_numbers = #tpu.dot_dimension_numbers<[1], [0], [0], [1], [0, 0, 1, 1], [], []>} : vector<2x32xf32>, vector<32x128xf32>, vector<2x128xf32> -> vector<2x128xf32>
    %467 = arith.addf %465, %466 : vector<2x128xf32>
    %468 = arith.negf %467 : vector<2x128xf32>
    %469 = math.exp %468 : vector<2x128xf32>
    %cst_68 = arith.constant 1.000000e+00 : f32
    %470 = vector.broadcast %cst_68 : f32 to vector<2x128xf32>
    %471 = arith.addf %470, %469 : vector<2x128xf32>
    %472 = arith.divf %470, %471 : vector<2x128xf32>
    %473 = math.tanh %467 : vector<2x128xf32>
    %474 = vector.extract_strided_slice %472 {offsets = [0, 0], sizes = [2, 32], strides = [1, 1]} : vector<2x128xf32> to vector<2x32xf32>
    %475 = vector.extract_strided_slice %472 {offsets = [0, 32], sizes = [2, 32], strides = [1, 1]} : vector<2x128xf32> to vector<2x32xf32>
    %476 = vector.extract_strided_slice %473 {offsets = [0, 64], sizes = [2, 32], strides = [1, 1]} : vector<2x128xf32> to vector<2x32xf32>
    %477 = vector.extract_strided_slice %472 {offsets = [0, 96], sizes = [2, 32], strides = [1, 1]} : vector<2x128xf32> to vector<2x32xf32>
    %478 = arith.mulf %475, %434 : vector<2x32xf32>
    %479 = arith.mulf %474, %476 : vector<2x32xf32>
    %480 = arith.addf %478, %479 : vector<2x32xf32>
    %481 = math.tanh %480 : vector<2x32xf32>
    %482 = arith.mulf %477, %481 : vector<2x32xf32>
    %c8_i32_69 = arith.constant 8 : i32
    %483 = vector.broadcast %c8_i32_69 : i32 to vector<2x32xi32>
    %484 = arith.cmpi sgt, %9, %483 : vector<2x32xi32>
    %485 = arith.select %484, %482, %433 : vector<2x32xi1>, vector<2x32xf32>
    %486 = arith.select %484, %480, %434 : vector<2x32xi1>, vector<2x32xf32>
    %487 = arith.negf %462 : vector<2x128xf32>
    %488 = math.exp %487 : vector<2x128xf32>
    %cst_70 = arith.constant 1.000000e+00 : f32
    %489 = vector.broadcast %cst_70 : f32 to vector<2x128xf32>
    %490 = arith.addf %489, %488 : vector<2x128xf32>
    %491 = arith.divf %489, %490 : vector<2x128xf32>
    %492 = math.tanh %462 : vector<2x128xf32>
    %493 = vector.extract_strided_slice %491 {offsets = [0, 0], sizes = [2, 32], strides = [1, 1]} : vector<2x128xf32> to vector<2x32xf32>
    %494 = vector.extract_strided_slice %491 {offsets = [0, 32], sizes = [2, 32], strides = [1, 1]} : vector<2x128xf32> to vector<2x32xf32>
    %495 = vector.extract_strided_slice %492 {offsets = [0, 64], sizes = [2, 32], strides = [1, 1]} : vector<2x128xf32> to vector<2x32xf32>
    %496 = vector.extract_strided_slice %491 {offsets = [0, 96], sizes = [2, 32], strides = [1, 1]} : vector<2x128xf32> to vector<2x32xf32>
    %497 = arith.mulf %494, %453 : vector<2x32xf32>
    %498 = arith.mulf %493, %495 : vector<2x32xf32>
    %499 = arith.addf %497, %498 : vector<2x32xf32>
    %500 = math.tanh %499 : vector<2x32xf32>
    %501 = arith.mulf %496, %500 : vector<2x32xf32>
    %c9_i32 = arith.constant 9 : i32
    %502 = vector.broadcast %c9_i32 : i32 to vector<2x32xi32>
    %503 = arith.cmpi sgt, %9, %502 : vector<2x32xi32>
    %504 = arith.select %503, %501, %452 : vector<2x32xi1>, vector<2x32xf32>
    %505 = arith.select %503, %499, %453 : vector<2x32xi1>, vector<2x32xf32>
    %506 = vector.extract_strided_slice %10 {offsets = [0, 10], sizes = [2, 1], strides = [1, 1]} : vector<2x12xi32> to vector<2x1xi32>
    %507 = vector.broadcast %506 : vector<2x1xi32> to vector<2x28xi32>
    %508 = arith.cmpi eq, %507, %6 : vector<2x28xi32>
    %509 = arith.extui %508 : vector<2x28xi1> to vector<2x28xi32>
    %510 = arith.sitofp %509 : vector<2x28xi32> to vector<2x28xf32>
    %cst_71 = arith.constant dense<0.000000e+00> : vector<2x128xf32>
    %511 = tpu.matmul %510, %5, %cst_71 {dimension_numbers = #tpu.dot_dimension_numbers<[1], [0], [0], [1], [0, 0, 1, 1], [], []>} : vector<2x28xf32>, vector<28x128xf32>, vector<2x128xf32> -> vector<2x128xf32>
    %cst_72 = arith.constant dense<0.000000e+00> : vector<2x256xf32>
    %512 = tpu.matmul %504, %11, %cst_72 {dimension_numbers = #tpu.dot_dimension_numbers<[1], [0], [0], [1], [0, 0, 1, 1], [], []>} : vector<2x32xf32>, vector<32x256xf32>, vector<2x256xf32> -> vector<2x256xf32>
    %513 = vector.extract_strided_slice %512 {offsets = [0, 0], sizes = [2, 128], strides = [1, 1]} : vector<2x256xf32> to vector<2x128xf32>
    %514 = arith.addf %511, %513 : vector<2x128xf32>
    %515 = vector.extract_strided_slice %512 {offsets = [0, 128], sizes = [2, 128], strides = [1, 1]} : vector<2x256xf32> to vector<2x128xf32>
    %516 = vector.broadcast %13 : vector<1x128xf32> to vector<2x128xf32>
    %517 = arith.addf %515, %516 : vector<2x128xf32>
    %cst_73 = arith.constant dense<0.000000e+00> : vector<2x128xf32>
    %518 = tpu.matmul %485, %12, %cst_73 {dimension_numbers = #tpu.dot_dimension_numbers<[1], [0], [0], [1], [0, 0, 1, 1], [], []>} : vector<2x32xf32>, vector<32x128xf32>, vector<2x128xf32> -> vector<2x128xf32>
    %519 = arith.addf %517, %518 : vector<2x128xf32>
    %520 = arith.negf %519 : vector<2x128xf32>
    %521 = math.exp %520 : vector<2x128xf32>
    %cst_74 = arith.constant 1.000000e+00 : f32
    %522 = vector.broadcast %cst_74 : f32 to vector<2x128xf32>
    %523 = arith.addf %522, %521 : vector<2x128xf32>
    %524 = arith.divf %522, %523 : vector<2x128xf32>
    %525 = math.tanh %519 : vector<2x128xf32>
    %526 = vector.extract_strided_slice %524 {offsets = [0, 0], sizes = [2, 32], strides = [1, 1]} : vector<2x128xf32> to vector<2x32xf32>
    %527 = vector.extract_strided_slice %524 {offsets = [0, 32], sizes = [2, 32], strides = [1, 1]} : vector<2x128xf32> to vector<2x32xf32>
    %528 = vector.extract_strided_slice %525 {offsets = [0, 64], sizes = [2, 32], strides = [1, 1]} : vector<2x128xf32> to vector<2x32xf32>
    %529 = vector.extract_strided_slice %524 {offsets = [0, 96], sizes = [2, 32], strides = [1, 1]} : vector<2x128xf32> to vector<2x32xf32>
    %530 = arith.mulf %527, %486 : vector<2x32xf32>
    %531 = arith.mulf %526, %528 : vector<2x32xf32>
    %532 = arith.addf %530, %531 : vector<2x32xf32>
    %533 = math.tanh %532 : vector<2x32xf32>
    %534 = arith.mulf %529, %533 : vector<2x32xf32>
    %c9_i32_75 = arith.constant 9 : i32
    %535 = vector.broadcast %c9_i32_75 : i32 to vector<2x32xi32>
    %536 = arith.cmpi sgt, %9, %535 : vector<2x32xi32>
    %537 = arith.select %536, %534, %485 : vector<2x32xi1>, vector<2x32xf32>
    %538 = arith.select %536, %532, %486 : vector<2x32xi1>, vector<2x32xf32>
    %539 = arith.negf %514 : vector<2x128xf32>
    %540 = math.exp %539 : vector<2x128xf32>
    %cst_76 = arith.constant 1.000000e+00 : f32
    %541 = vector.broadcast %cst_76 : f32 to vector<2x128xf32>
    %542 = arith.addf %541, %540 : vector<2x128xf32>
    %543 = arith.divf %541, %542 : vector<2x128xf32>
    %544 = math.tanh %514 : vector<2x128xf32>
    %545 = vector.extract_strided_slice %543 {offsets = [0, 0], sizes = [2, 32], strides = [1, 1]} : vector<2x128xf32> to vector<2x32xf32>
    %546 = vector.extract_strided_slice %543 {offsets = [0, 32], sizes = [2, 32], strides = [1, 1]} : vector<2x128xf32> to vector<2x32xf32>
    %547 = vector.extract_strided_slice %544 {offsets = [0, 64], sizes = [2, 32], strides = [1, 1]} : vector<2x128xf32> to vector<2x32xf32>
    %548 = vector.extract_strided_slice %543 {offsets = [0, 96], sizes = [2, 32], strides = [1, 1]} : vector<2x128xf32> to vector<2x32xf32>
    %549 = arith.mulf %546, %505 : vector<2x32xf32>
    %550 = arith.mulf %545, %547 : vector<2x32xf32>
    %551 = arith.addf %549, %550 : vector<2x32xf32>
    %552 = math.tanh %551 : vector<2x32xf32>
    %553 = arith.mulf %548, %552 : vector<2x32xf32>
    %c10_i32 = arith.constant 10 : i32
    %554 = vector.broadcast %c10_i32 : i32 to vector<2x32xi32>
    %555 = arith.cmpi sgt, %9, %554 : vector<2x32xi32>
    %556 = arith.select %555, %553, %504 : vector<2x32xi1>, vector<2x32xf32>
    %557 = arith.select %555, %551, %505 : vector<2x32xi1>, vector<2x32xf32>
    %558 = vector.extract_strided_slice %10 {offsets = [0, 11], sizes = [2, 1], strides = [1, 1]} : vector<2x12xi32> to vector<2x1xi32>
    %559 = vector.broadcast %558 : vector<2x1xi32> to vector<2x28xi32>
    %560 = arith.cmpi eq, %559, %6 : vector<2x28xi32>
    %561 = arith.extui %560 : vector<2x28xi1> to vector<2x28xi32>
    %562 = arith.sitofp %561 : vector<2x28xi32> to vector<2x28xf32>
    %cst_77 = arith.constant dense<0.000000e+00> : vector<2x128xf32>
    %563 = tpu.matmul %562, %5, %cst_77 {dimension_numbers = #tpu.dot_dimension_numbers<[1], [0], [0], [1], [0, 0, 1, 1], [], []>} : vector<2x28xf32>, vector<28x128xf32>, vector<2x128xf32> -> vector<2x128xf32>
    %cst_78 = arith.constant dense<0.000000e+00> : vector<2x256xf32>
    %564 = tpu.matmul %556, %11, %cst_78 {dimension_numbers = #tpu.dot_dimension_numbers<[1], [0], [0], [1], [0, 0, 1, 1], [], []>} : vector<2x32xf32>, vector<32x256xf32>, vector<2x256xf32> -> vector<2x256xf32>
    %565 = vector.extract_strided_slice %564 {offsets = [0, 0], sizes = [2, 128], strides = [1, 1]} : vector<2x256xf32> to vector<2x128xf32>
    %566 = arith.addf %563, %565 : vector<2x128xf32>
    %567 = vector.extract_strided_slice %564 {offsets = [0, 128], sizes = [2, 128], strides = [1, 1]} : vector<2x256xf32> to vector<2x128xf32>
    %568 = vector.broadcast %13 : vector<1x128xf32> to vector<2x128xf32>
    %569 = arith.addf %567, %568 : vector<2x128xf32>
    %cst_79 = arith.constant dense<0.000000e+00> : vector<2x128xf32>
    %570 = tpu.matmul %537, %12, %cst_79 {dimension_numbers = #tpu.dot_dimension_numbers<[1], [0], [0], [1], [0, 0, 1, 1], [], []>} : vector<2x32xf32>, vector<32x128xf32>, vector<2x128xf32> -> vector<2x128xf32>
    %571 = arith.addf %569, %570 : vector<2x128xf32>
    %572 = arith.negf %571 : vector<2x128xf32>
    %573 = math.exp %572 : vector<2x128xf32>
    %cst_80 = arith.constant 1.000000e+00 : f32
    %574 = vector.broadcast %cst_80 : f32 to vector<2x128xf32>
    %575 = arith.addf %574, %573 : vector<2x128xf32>
    %576 = arith.divf %574, %575 : vector<2x128xf32>
    %577 = math.tanh %571 : vector<2x128xf32>
    %578 = vector.extract_strided_slice %576 {offsets = [0, 0], sizes = [2, 32], strides = [1, 1]} : vector<2x128xf32> to vector<2x32xf32>
    %579 = vector.extract_strided_slice %576 {offsets = [0, 32], sizes = [2, 32], strides = [1, 1]} : vector<2x128xf32> to vector<2x32xf32>
    %580 = vector.extract_strided_slice %577 {offsets = [0, 64], sizes = [2, 32], strides = [1, 1]} : vector<2x128xf32> to vector<2x32xf32>
    %581 = vector.extract_strided_slice %576 {offsets = [0, 96], sizes = [2, 32], strides = [1, 1]} : vector<2x128xf32> to vector<2x32xf32>
    %582 = arith.mulf %579, %538 : vector<2x32xf32>
    %583 = arith.mulf %578, %580 : vector<2x32xf32>
    %584 = arith.addf %582, %583 : vector<2x32xf32>
    %585 = math.tanh %584 : vector<2x32xf32>
    %586 = arith.mulf %581, %585 : vector<2x32xf32>
    %c10_i32_81 = arith.constant 10 : i32
    %587 = vector.broadcast %c10_i32_81 : i32 to vector<2x32xi32>
    %588 = arith.cmpi sgt, %9, %587 : vector<2x32xi32>
    %589 = arith.select %588, %586, %537 : vector<2x32xi1>, vector<2x32xf32>
    %590 = arith.select %588, %584, %538 : vector<2x32xi1>, vector<2x32xf32>
    %591 = arith.negf %566 : vector<2x128xf32>
    %592 = math.exp %591 : vector<2x128xf32>
    %cst_82 = arith.constant 1.000000e+00 : f32
    %593 = vector.broadcast %cst_82 : f32 to vector<2x128xf32>
    %594 = arith.addf %593, %592 : vector<2x128xf32>
    %595 = arith.divf %593, %594 : vector<2x128xf32>
    %596 = math.tanh %566 : vector<2x128xf32>
    %597 = vector.extract_strided_slice %595 {offsets = [0, 0], sizes = [2, 32], strides = [1, 1]} : vector<2x128xf32> to vector<2x32xf32>
    %598 = vector.extract_strided_slice %595 {offsets = [0, 32], sizes = [2, 32], strides = [1, 1]} : vector<2x128xf32> to vector<2x32xf32>
    %599 = vector.extract_strided_slice %596 {offsets = [0, 64], sizes = [2, 32], strides = [1, 1]} : vector<2x128xf32> to vector<2x32xf32>
    %600 = vector.extract_strided_slice %595 {offsets = [0, 96], sizes = [2, 32], strides = [1, 1]} : vector<2x128xf32> to vector<2x32xf32>
    %601 = arith.mulf %598, %557 : vector<2x32xf32>
    %602 = arith.mulf %597, %599 : vector<2x32xf32>
    %603 = arith.addf %601, %602 : vector<2x32xf32>
    %604 = math.tanh %603 : vector<2x32xf32>
    %605 = arith.mulf %600, %604 : vector<2x32xf32>
    %c11_i32 = arith.constant 11 : i32
    %606 = vector.broadcast %c11_i32 : i32 to vector<2x32xi32>
    %607 = arith.cmpi sgt, %9, %606 : vector<2x32xi32>
    %608 = arith.select %607, %605, %556 : vector<2x32xi1>, vector<2x32xf32>
    %cst_83 = arith.constant dense<0.000000e+00> : vector<2x256xf32>
    %609 = tpu.matmul %608, %11, %cst_83 {dimension_numbers = #tpu.dot_dimension_numbers<[1], [0], [0], [1], [0, 0, 1, 1], [], []>} : vector<2x32xf32>, vector<32x256xf32>, vector<2x256xf32> -> vector<2x256xf32>
    %610 = vector.extract_strided_slice %609 {offsets = [0, 128], sizes = [2, 128], strides = [1, 1]} : vector<2x256xf32> to vector<2x128xf32>
    %611 = vector.broadcast %13 : vector<1x128xf32> to vector<2x128xf32>
    %612 = arith.addf %610, %611 : vector<2x128xf32>
    %cst_84 = arith.constant dense<0.000000e+00> : vector<2x128xf32>
    %613 = tpu.matmul %589, %12, %cst_84 {dimension_numbers = #tpu.dot_dimension_numbers<[1], [0], [0], [1], [0, 0, 1, 1], [], []>} : vector<2x32xf32>, vector<32x128xf32>, vector<2x128xf32> -> vector<2x128xf32>
    %614 = arith.addf %612, %613 : vector<2x128xf32>
    %615 = arith.negf %614 : vector<2x128xf32>
    %616 = math.exp %615 : vector<2x128xf32>
    %cst_85 = arith.constant 1.000000e+00 : f32
    %617 = vector.broadcast %cst_85 : f32 to vector<2x128xf32>
    %618 = arith.addf %617, %616 : vector<2x128xf32>
    %619 = arith.divf %617, %618 : vector<2x128xf32>
    %620 = math.tanh %614 : vector<2x128xf32>
    %621 = vector.extract_strided_slice %619 {offsets = [0, 0], sizes = [2, 32], strides = [1, 1]} : vector<2x128xf32> to vector<2x32xf32>
    %622 = vector.extract_strided_slice %619 {offsets = [0, 32], sizes = [2, 32], strides = [1, 1]} : vector<2x128xf32> to vector<2x32xf32>
    %623 = vector.extract_strided_slice %620 {offsets = [0, 64], sizes = [2, 32], strides = [1, 1]} : vector<2x128xf32> to vector<2x32xf32>
    %624 = vector.extract_strided_slice %619 {offsets = [0, 96], sizes = [2, 32], strides = [1, 1]} : vector<2x128xf32> to vector<2x32xf32>
    %625 = arith.mulf %622, %590 : vector<2x32xf32>
    %626 = arith.mulf %621, %623 : vector<2x32xf32>
    %627 = arith.addf %625, %626 : vector<2x32xf32>
    %628 = math.tanh %627 : vector<2x32xf32>
    %629 = arith.mulf %624, %628 : vector<2x32xf32>
    %c11_i32_86 = arith.constant 11 : i32
    %630 = vector.broadcast %c11_i32_86 : i32 to vector<2x32xi32>
    %631 = arith.cmpi sgt, %9, %630 : vector<2x32xi32>
    %632 = arith.select %631, %629, %589 : vector<2x32xi1>, vector<2x32xf32>
    %633 = tpu.concatenate %608, %632 in 1 : vector<2x32xf32>, vector<2x32xf32> -> vector<2x64xf32>
    %c0_87 = arith.constant 0 : index
    %c0_88 = arith.constant 0 : index
    %634 = vector.load %arg8[%c0_87, %c0_88] : memref<64x16xf32, #tpu.memory_space<vmem>>, vector<64x16xf32>
    %cst_89 = arith.constant dense<0.000000e+00> : vector<2x16xf32>
    %635 = tpu.matmul %633, %634, %cst_89 {dimension_numbers = #tpu.dot_dimension_numbers<[1], [0], [0], [1], [0, 0, 1, 1], [], []>} : vector<2x64xf32>, vector<64x16xf32>, vector<2x16xf32> -> vector<2x16xf32>
    %c0_90 = arith.constant 0 : index
    %c0_91 = arith.constant 0 : index
    %636 = vector.load %arg9[%c0_90, %c0_91] : memref<1x16xf32, #tpu.memory_space<vmem>>, vector<1x16xf32>
    %637 = vector.broadcast %636 : vector<1x16xf32> to vector<2x16xf32>
    %638 = arith.addf %635, %637 : vector<2x16xf32>
    %cst_92 = arith.constant 0.000000e+00 : f32
    %639 = vector.broadcast %cst_92 : f32 to vector<2x16xf32>
    %640 = arith.maximumf %638, %639 : vector<2x16xf32>
    %c0_93 = arith.constant 0 : index
    %c0_94 = arith.constant 0 : index
    %641 = vector.load %arg10[%c0_93, %c0_94] : memref<1x16xf32, #tpu.memory_space<vmem>>, vector<1x16xf32>
    %642 = vector.broadcast %641 : vector<1x16xf32> to vector<2x16xf32>
    %643 = arith.mulf %640, %642 : vector<2x16xf32>
    %cst_95 = arith.constant dense<0.000000e+00> : vector<2xf32>
    %644 = vector.multi_reduction <add>, %643, %cst_95 [1] : vector<2x16xf32> to vector<2xf32>
    %645 = vector.shape_cast %644 : vector<2xf32> to vector<2x1xf32>
    %c0_96 = arith.constant 0 : index
    %c0_97 = arith.constant 0 : index
    %646 = vector.load %arg11[%c0_96, %c0_97] : memref<1x1xf32, #tpu.memory_space<vmem>>, vector<1x1xf32>
    %647 = vector.broadcast %646 : vector<1x1xf32> to vector<2x1xf32>
    %648 = arith.addf %645, %647 : vector<2x1xf32>
    %c0_98 = arith.constant 0 : index
    %c0_99 = arith.constant 0 : index
    %649 = vector.load %arg12[%c0_98, %c0_99] : memref<2x1xf32, #tpu.memory_space<vmem>>, vector<2x1xf32>
    tpu.vector_store %arg12[%c0_98, %c0_99], %648 {strides = array<i32>} : memref<2x1xf32, #tpu.memory_space<vmem>>, vector<2x1xf32>,
    return
  }
}

</mosaic_0001>

<llo_original>
// kernel: net_forward.1
$region0: #{net_forward.1}
  #allocation0 [shape = 'u32[]', space=smem, size = 0x4, offset = 0x4, fixed_abs, tag = 'smem constant byte address 0x4 - core index']
  #allocation1 [shape = 'u32[144,128]{1,0:T(1,128)}', space=vmem, size = 0x12000, scoped, tag = 'internal scratch']
  #allocation2 [shape = 'f32[1,1]{1,0:T(1,128)S(1)}', space=vmem, size = 0x200, scoped, tag = 'scoped memory for net_forward.1']
  %s0 = inlined_call_operand.vmem [shape: s32[2,12], index: 0, kind: input, shape index: {}]
  %s1 = inlined_call_operand.vmem [shape: s32[2,1], index: 1, kind: input, shape index: {}]
  %s2 = inlined_call_operand.vmem [shape: f32[28,8], index: 2, kind: input, shape index: {}]
  %s3 = inlined_call_operand.vmem [shape: f32[8,128], index: 3, kind: input, shape index: {}]
  %s4 = inlined_call_operand.vmem [shape: f32[1,128], index: 4, kind: input, shape index: {}]
  %s5 = inlined_call_operand.vmem [shape: f32[32,256], index: 5, kind: input, shape index: {}]
  %s6 = inlined_call_operand.vmem [shape: f32[32,128], index: 6, kind: input, shape index: {}]
  %s7 = inlined_call_operand.vmem [shape: f32[1,128], index: 7, kind: input, shape index: {}]
  %s8 = inlined_call_operand.vmem [shape: f32[64,16], index: 8, kind: input, shape index: {}]
  %s9 = inlined_call_operand.vmem [shape: f32[1,16], index: 9, kind: input, shape index: {}]
  %s10 = inlined_call_operand.vmem [shape: f32[1,16], index: 10, kind: input, shape index: {}]
  %s11 = inlined_call_operand.<no memory space> [shape: f32[1,1], index: 11, kind: input, shape index: {}]
  %s12 = inlined_call_operand.vmem [shape: f32[2,1], index: 12, kind: output, shape index: {}]
  %s13 = sld [smem:[#allocation0]]
  $region58: #{net_forward.1} parent=0
    _
  %s15 = ssub.s32 1, %s13
  %s16 = scalar_select 0, %s15, %s13
  %v17 = vstv %s11
  %18 = vst [vmem:[#allocation2] sm:$0x1] %v17
  // Predicated region
  $region2: #{net_forward.1} parent=0 // pred_check
    _
  $region3: #{net_forward.1} parent=0 // pred_check_branch
    %20 = sbr.rel (0) target = $region5
  $region4: #{net_forward.1} parent=0 // pred_region
    _
  $region5: #{net_forward.1} parent=0 // pred_fallthru
    _
  // Predicated region
  $region6: #{net_forward.1} parent=0 // pred_check
    _
  $region7: #{net_forward.1} parent=0 // pred_check_branch
    %22 = sbr.rel (0) target = $region9
  $region8: #{net_forward.1} parent=0 // pred_region
    _
  $region9: #{net_forward.1} parent=0 // pred_fallthru
    _
  // Predicated region
  $region10: #{net_forward.1} parent=0 // pred_check
    _
  $region11: #{net_forward.1} parent=0 // pred_check_branch
    %24 = sbr.rel (0) target = $region13
  $region12: #{net_forward.1} parent=0 // pred_region
    _
  $region13: #{net_forward.1} parent=0 // pred_fallthru
    _
  // Predicated region
  $region14: #{net_forward.1} parent=0 // pred_check
    _
  $region15: #{net_forward.1} parent=0 // pred_check_branch
    %26 = sbr.rel (0) target = $region17
  $region16: #{net_forward.1} parent=0 // pred_region
    _
  $region17: #{net_forward.1} parent=0 // pred_fallthru
    _
  // Predicated region
  $region18: #{net_forward.1} parent=0 // pred_check
    _
  $region19: #{net_forward.1} parent=0 // pred_check_branch
    %28 = sbr.rel (0) target = $region21
  $region20: #{net_forward.1} parent=0 // pred_region
    _
  $region21: #{net_forward.1} parent=0 // pred_fallthru
    _
  // Predicated region
  $region22: #{net_forward.1} parent=0 // pred_check
    _
  $region23: #{net_forward.1} parent=0 // pred_check_branch
    %30 = sbr.rel (0) target = $region25
  $region24: #{net_forward.1} parent=0 // pred_region
    _
  $region25: #{net_forward.1} parent=0 // pred_fallthru
    _
  // Predicated region
  $region26: #{net_forward.1} parent=0 // pred_check
    _
  $region27: #{net_forward.1} parent=0 // pred_check_branch
    %32 = sbr.rel (0) target = $region29
  $region28: #{net_forward.1} parent=0 // pred_region
    _
  $region29: #{net_forward.1} parent=0 // pred_fallthru
    _
  // Predicated region
  $region30: #{net_forward.1} parent=0 // pred_check
    _
  $region31: #{net_forward.1} parent=0 // pred_check_branch
    %34 = sbr.rel (0) target = $region33
  $region32: #{net_forward.1} parent=0 // pred_region
    _
  $region33: #{net_forward.1} parent=0 // pred_fallthru
    _
  // Predicated region
  $region34: #{net_forward.1} parent=0 // pred_check
    _
  $region35: #{net_forward.1} parent=0 // pred_check_branch
    %36 = sbr.rel (0) target = $region37
  $region36: #{net_forward.1} parent=0 // pred_region
    _
  $region37: #{net_forward.1} parent=0 // pred_fallthru
    _
  // Predicated region
  $region38: #{net_forward.1} parent=0 // pred_check
    _
  $region39: #{net_forward.1} parent=0 // pred_check_branch
    %38 = sbr.rel (0) target = $region41
  $region40: #{net_forward.1} parent=0 // pred_region
    _
  $region41: #{net_forward.1} parent=0 // pred_fallthru
    _
  // Predicated region
  $region42: #{net_forward.1} parent=0 // pred_check
    _
  $region43: #{net_forward.1} parent=0 // pred_check_branch
    %40 = sbr.rel (0) target = $region45
  $region44: #{net_forward.1} parent=0 // pred_region
    _
  $region45: #{net_forward.1} parent=0 // pred_fallthru
    _
  // Predicated region
  $region46: #{net_forward.1} parent=0 // pred_check
    _
  $region47: #{net_forward.1} parent=0 // pred_check_branch
    %42 = sbr.rel (0) target = $region49
  $region48: #{net_forward.1} parent=0 // pred_region
    _
  $region49: #{net_forward.1} parent=0 // pred_fallthru
    _
  %v43 = vld [vmem:[%s2] sm:$0xff]
  %v44 = vld [vmem:[%s2 + $0x8] sm:$0xff]
  %v45 = vld [vmem:[%s2 + $0x10] sm:$0xff]
  %v46 = vld [vmem:[%s2 + $0x18] sm:$0xf]
  %v47 = vld [vmem:[%s3] sm:$0xff]
  %v48 = vld [vmem:[%s4] sm:$0x1]
  %v50 = vlaneseq
  %v51 = vshrl.u32 %v50, 7
  %v52 = vsub.s32 0, %v51
  %v53 = vrot.slane %v48, %v52
  %vm55 = vcmask 64512
  %v57 = vsel %vm55, %v43, 0
  %v60 = vsel %vm55, %v44, 0
  %v63 = vsel %vm55, %v45, 0
  %v66 = vsel %vm55, %v46, 0
  %68 = vmatprep.subr.mxu0 0.0
  %69 = vmatpush1.msra.mxu0 %v47
  %70 = vmatprep.subr.mxu0 0.0
  %71 = vmatpush1.msra.mxu0 0.0
  %72 = vmatprep.subr.mxu0 0.0
  %73 = vmatpush1.msra.mxu0 0.0
  %74 = vmatprep.subr.mxu0 0.0
  %75 = vmatpush1.msra.mxu0 0.0
  %76 = vmatprep.subr.mxu0 0.0
  %77 = vmatpush1.msra.mxu0 0.0
  %78 = vmatprep.subr.mxu0 0.0
  %79 = vmatpush1.msra.mxu0 0.0
  %80 = vmatprep.subr.mxu0 0.0
  %81 = vmatpush1.msra.mxu0 0.0
  %82 = vmatprep.subr.mxu0 0.0
  %83 = vmatpush1.msra.mxu0 0.0
  %84 = vmatprep.subr.mxu0 0.0
  %85 = vmatpush1.msra.mxu0 0.0
  %86 = vmatprep.subr.mxu0 0.0
  %87 = vmatpush1.msra.mxu0 0.0
  %88 = vmatprep.subr.mxu0 0.0
  %89 = vmatpush1.msra.mxu0 0.0
  %90 = vmatprep.subr.mxu0 0.0
  %91 = vmatpush1.msra.mxu0 0.0
  %92 = vmatprep.subr.mxu0 0.0
  %93 = vmatpush1.msra.mxu0 0.0
  %94 = vmatprep.subr.mxu0 0.0
  %95 = vmatpush1.msra.mxu0 0.0
  %96 = vmatprep.subr.mxu0 0.0
  %97 = vmatpush1.msra.mxu0 0.0
  %98 = vmatprep.subr.mxu0 0.0
  %99 = vmatpush1.msra.mxu0 0.0
  %100 = vmatprep.subr.mxu0 0.0
  %101 = vmatpush1.msra.mxu0 0.0
  %102 = vmatprep.subr.mxu0 0.0
  %103 = vmatpush1.msra.mxu0 0.0
  %104 = vmatprep.subr.mxu0 0.0
  %105 = vmatpush1.msra.mxu0 0.0
  %106 = vmatprep.subr.mxu0 0.0
  %107 = vmatpush1.msra.mxu0 0.0
  %108 = vmatprep.subr.mxu0 0.0
  %109 = vmatpush1.msra.mxu0 0.0
  %110 = vmatprep.subr.mxu0 0.0
  %111 = vmatpush1.msra.mxu0 0.0
  %112 = vmatprep.subr.mxu0 0.0
  %113 = vmatpush1.msra.mxu0 0.0
  %114 = vmatprep.subr.mxu0 0.0
  %115 = vmatpush1.msra.mxu0 0.0
  %116 = vmatprep.subr.mxu0 0.0
  %117 = vmatpush1.msra.mxu0 0.0
  %118 = vmatprep.subr.mxu0 0.0
  %119 = vmatpush1.msra.mxu0 0.0
  %120 = vmatprep.subr.mxu0 0.0
  %121 = vmatpush1.msra.mxu0 0.0
  %122 = vmatprep.subr.mxu0 0.0
  %123 = vmatpush1.msra.mxu0 0.0
  %124 = vmatprep.subr.mxu0 0.0
  %125 = vmatpush1.msra.mxu0 0.0
  %126 = vmatprep.subr.mxu0 0.0
  %127 = vmatpush1.msra.mxu0 0.0
  %128 = vmatprep.subr.mxu0 0.0
  %129 = vmatpush1.msra.mxu0 0.0
  %130 = vmatprep.subr.mxu0 0.0
  %131 = vmatpush1.msra.mxu0 0.0
  %132 = vmatprep.mubr.f32.mxu0 0.0
  %133 = vmatmul.mubr.f32.gmra.mrb[0].mxu0 %v57
  %v134 = vpop.f32.mrb[0].mxu0
  %v135 = vadd.f32 %v53, %v134
  %v136 = vpop.f32.mrb[0].mxu0
  %137 = vmatprep.mubr.f32.mxu0 0.0
  %138 = vmatmul.mubr.f32.gmra.mrb[0].mxu0 %v60
  %v139 = vpop.f32.mrb[0].mxu0
  %v140 = vadd.f32 %v53, %v139
  %v141 = vpop.f32.mrb[0].mxu0
  %142 = vmatprep.mubr.f32.mxu0 0.0
  %143 = vmatmul.mubr.f32.gmra.mrb[0].mxu0 %v63
  %v144 = vpop.f32.mrb[0].mxu0
  %v145 = vadd.f32 %v53, %v144
  %v146 = vpop.f32.mrb[0].mxu0
  %147 = vmatprep.mubr.f32.mxu0 0.0
  %148 = vmatmul.mubr.f32.gmra.mrb[0].mxu0 %v66
  %v149 = vpop.f32.mrb[0].mxu0
  %v150 = vadd.f32 %v53, %v149
  %v151 = vpop.f32.mrb[0].mxu0
  %152 = vdwg.mxu0
  %v153 = vlaneseq
  %v154 = vand.u32 %v153, 127
  %v155 = vld [vmem:[%s1] sm:$0x3]
  %156 = vset.pattern.permute.xlu0 0
  %157 = vperm.xlu0 %156, %v155
  %v158 = vpop.permute.xlu0 %157
  %v159 = vld [vmem:[%s0] sm:$0x3]
  %v160 = vld [vmem:[%s5] sm:$0xff]
  %v161 = vld [vmem:[%s5 + $0x8] sm:$0xff]
  %v162 = vld [vmem:[%s5 + $0x10] sm:$0xff]
  %v163 = vld [vmem:[%s5 + $0x18] sm:$0xff]
  %v164 = vld [vmem:[%s5 + $0x20] sm:$0xff]
  %v165 = vld [vmem:[%s5 + $0x28] sm:$0xff]
  %v166 = vld [vmem:[%s5 + $0x30] sm:$0xff]
  %v167 = vld [vmem:[%s5 + $0x38] sm:$0xff]
  %v168 = vld [vmem:[%s6] sm:$0xff]
  %v169 = vld [vmem:[%s6 + $0x8] sm:$0xff]
  %v170 = vld [vmem:[%s6 + $0x10] sm:$0xff]
  %v171 = vld [vmem:[%s6 + $0x18] sm:$0xff]
  %v172 = vld [vmem:[%s7] sm:$0x1]
  %173 = vset.pattern.permute.xlu0 0
  %174 = vperm.xlu0 %173, %v159
  %v175 = vpop.permute.xlu0 %174
  %vm176 = vcmp.eq.s32.totalorder %v175, %v154
  %v177 = vsel %vm176, 1, 0
  %v178 = vcvt.s32.f32 %v177
  %vm179 = vcmask 228352
  %v181 = vsel %vm179, %v178, 0
  %vm183 = vcmask 1043456
  %v185 = vsel %vm183, %v150, 0
  %187 = vmatprep.subr.mxu0 0.0
  %188 = vmatpush1.msra.mxu0 %v135
  %189 = vmatprep.subr.mxu0 0.0
  %190 = vmatpush1.msra.mxu0 %v140
  %191 = vmatprep.subr.mxu0 0.0
  %192 = vmatpush1.msra.mxu0 %v145
  %193 = vmatprep.subr.mxu0 0.0
  %194 = vmatpush1.msra.mxu0 %v185
  %195 = vmatprep.subr.mxu0 0.0
  %196 = vmatpush1.msra.mxu0 0.0
  %197 = vmatprep.subr.mxu0 0.0
  %198 = vmatpush1.msra.mxu0 0.0
  %199 = vmatprep.subr.mxu0 0.0
  %200 = vmatpush1.msra.mxu0 0.0
  %201 = vmatprep.subr.mxu0 0.0
  %202 = vmatpush1.msra.mxu0 0.0
  %203 = vmatprep.subr.mxu0 0.0
  %204 = vmatpush1.msra.mxu0 0.0
  %205 = vmatprep.subr.mxu0 0.0
  %206 = vmatpush1.msra.mxu0 0.0
  %207 = vmatprep.subr.mxu0 0.0
  %208 = vmatpush1.msra.mxu0 0.0
  %209 = vmatprep.subr.mxu0 0.0
  %210 = vmatpush1.msra.mxu0 0.0
  %211 = vmatprep.subr.mxu0 0.0
  %212 = vmatpush1.msra.mxu0 0.0
  %213 = vmatprep.subr.mxu0 0.0
  %214 = vmatpush1.msra.mxu0 0.0
  %215 = vmatprep.subr.mxu0 0.0
  %216 = vmatpush1.msra.mxu0 0.0
  %217 = vmatprep.subr.mxu0 0.0
  %218 = vmatpush1.msra.mxu0 0.0
  %219 = vmatprep.subr.mxu0 0.0
  %220 = vmatpush1.msra.mxu0 0.0
  %221 = vmatprep.subr.mxu0 0.0
  %222 = vmatpush1.msra.mxu0 0.0
  %223 = vmatprep.subr.mxu0 0.0
  %224 = vmatpush1.msra.mxu0 0.0
  %225 = vmatprep.subr.mxu0 0.0
  %226 = vmatpush1.msra.mxu0 0.0
  %227 = vmatprep.subr.mxu0 0.0
  %228 = vmatpush1.msra.mxu0 0.0
  %229 = vmatprep.subr.mxu0 0.0
  %230 = vmatpush1.msra.mxu0 0.0
  %231 = vmatprep.subr.mxu0 0.0
  %232 = vmatpush1.msra.mxu0 0.0
  %233 = vmatprep.subr.mxu0 0.0
  %234 = vmatpush1.msra.mxu0 0.0
  %235 = vmatprep.subr.mxu0 0.0
  %236 = vmatpush1.msra.mxu0 0.0
  %237 = vmatprep.subr.mxu0 0.0
  %238 = vmatpush1.msra.mxu0 0.0
  %239 = vmatprep.subr.mxu0 0.0
  %240 = vmatpush1.msra.mxu0 0.0
  %241 = vmatprep.subr.mxu0 0.0
  %242 = vmatpush1.msra.mxu0 0.0
  %243 = vmatprep.subr.mxu0 0.0
  %244 = vmatpush1.msra.mxu0 0.0
  %245 = vmatprep.subr.mxu0 0.0
  %246 = vmatpush1.msra.mxu0 0.0
  %247 = vmatprep.subr.mxu0 0.0
  %248 = vmatpush1.msra.mxu0 0.0
  %249 = vmatprep.subr.mxu0 0.0
  %250 = vmatpush1.msra.mxu0 0.0
  %251 = vmatprep.mubr.f32.mxu0 0.0
  %252 = vmatmul.mubr.f32.gmra.mrb[0].mxu0 %v181
  %v253 = vpop.f32.mrb[0].mxu0
  %v254 = vadd.f32 0.0, %v253
  %v255 = vpop.f32.mrb[0].mxu0
  %256 = vdwg.mxu0
  %v257 = vxor.u32 %v254, 2147483648
  %v258 = vmul.f32 %v257, 1.442695
  %v259 = vpow.pop %v258
  %v260 = vadd.f32 %v259, 1.0
  %v261 = vrcp.pop %v260
  %v262 = vmul.f32 1.0, %v261
  %v263 = vtanh.pop %v254
  %v264 = vmul.f32 %v262, 0.0
  %266 = vrot.lane.b32.xlu0 %v263, 64
  %v267 = vpop.permute.xlu0 %266
  %v269 = vmul.f32 %v262, %v267
  %271 = vrot.lane.b32.xlu0 %v269, 32
  %v272 = vpop.permute.xlu0 %271
  %v274 = vadd.f32 %v264, %v272
  %v275 = vtanh.pop %v274
  %277 = vrot.lane.b32.xlu0 %v275, 64
  %v278 = vpop.permute.xlu0 %277
  %v280 = vmul.f32 %v262, %v278
  %vm281 = vcmp.gt.s32.totalorder %v158, 0
  %v282 = vsel %vm281, %v280, 0.0
  %v283 = vsel %vm281, %v274, 0.0
  %284 = vset.pattern.permute.xlu0 1
  %285 = vperm.xlu0 %284, %v159
  %v286 = vpop.permute.xlu0 %285
  %vm287 = vcmp.eq.s32.totalorder %v286, %v154
  %v288 = vsel %vm287, 1, 0
  %v289 = vcvt.s32.f32 %v288
  %291 = vrot.lane.b32.xlu0 %v282, 32
  %v292 = vpop.permute.xlu0 %291
  %vm293 = vcmask 261120
  %v294 = vsel %vm293, %v292, 0
  %296 = vmatprep.subr.mxu0 %v161
  %297 = vmatpush1.msra.mxu0 %v160
  %298 = vmatprep.subr.mxu0 %v163
  %299 = vmatpush1.msra.mxu0 %v162
  %300 = vmatprep.subr.mxu0 %v165
  %301 = vmatpush1.msra.mxu0 %v164
  %302 = vmatprep.subr.mxu0 %v167
  %303 = vmatpush1.msra.mxu0 %v166
  %304 = vmatprep.subr.mxu0 0.0
  %305 = vmatpush1.msra.mxu0 0.0
  %306 = vmatprep.subr.mxu0 0.0
  %307 = vmatpush1.msra.mxu0 0.0
  %308 = vmatprep.subr.mxu0 0.0
  %309 = vmatpush1.msra.mxu0 0.0
  %310 = vmatprep.subr.mxu0 0.0
  %311 = vmatpush1.msra.mxu0 0.0
  %312 = vmatprep.subr.mxu0 0.0
  %313 = vmatpush1.msra.mxu0 0.0
  %314 = vmatprep.subr.mxu0 0.0
  %315 = vmatpush1.msra.mxu0 0.0
  %316 = vmatprep.subr.mxu0 0.0
  %317 = vmatpush1.msra.mxu0 0.0
  %318 = vmatprep.subr.mxu0 0.0
  %319 = vmatpush1.msra.mxu0 0.0
  %320 = vmatprep.subr.mxu0 0.0
  %321 = vmatpush1.msra.mxu0 0.0
  %322 = vmatprep.subr.mxu0 0.0
  %323 = vmatpush1.msra.mxu0 0.0
  %324 = vmatprep.subr.mxu0 0.0
  %325 = vmatpush1.msra.mxu0 0.0
  %326 = vmatprep.subr.mxu0 0.0
  %327 = vmatpush1.msra.mxu0 0.0
  %328 = vmatprep.subr.mxu0 0.0
  %329 = vmatpush1.msra.mxu0 0.0
  %330 = vmatprep.subr.mxu0 0.0
  %331 = vmatpush1.msra.mxu0 0.0
  %332 = vmatprep.subr.mxu0 0.0
  %333 = vmatpush1.msra.mxu0 0.0
  %334 = vmatprep.subr.mxu0 0.0
  %335 = vmatpush1.msra.mxu0 0.0
  %336 = vmatprep.subr.mxu0 0.0
  %337 = vmatpush1.msra.mxu0 0.0
  %338 = vmatprep.subr.mxu0 0.0
  %339 = vmatpush1.msra.mxu0 0.0
  %340 = vmatprep.subr.mxu0 0.0
  %341 = vmatpush1.msra.mxu0 0.0
  %342 = vmatprep.subr.mxu0 0.0
  %343 = vmatpush1.msra.mxu0 0.0
  %344 = vmatprep.subr.mxu0 0.0
  %345 = vmatpush1.msra.mxu0 0.0
  %346 = vmatprep.subr.mxu0 0.0
  %347 = vmatpush1.msra.mxu0 0.0
  %348 = vmatprep.subr.mxu0 0.0
  %349 = vmatpush1.msra.mxu0 0.0
  %350 = vmatprep.subr.mxu0 0.0
  %351 = vmatpush1.msra.mxu0 0.0
  %352 = vmatprep.subr.mxu0 0.0
  %353 = vmatpush1.msra.mxu0 0.0
  %354 = vmatprep.subr.mxu0 0.0
  %355 = vmatpush1.msra.mxu0 0.0
  %356 = vmatprep.subr.mxu0 0.0
  %357 = vmatpush1.msra.mxu0 0.0
  %358 = vmatprep.subr.mxu0 0.0
  %359 = vmatpush1.msra.mxu0 0.0
  %360 = vmatprep.mubr.f32.mxu0 0.0
  %361 = vmatmul.mubr.f32.gmra.mrb[0].mxu0 %v294
  %v362 = vpop.f32.mrb[0].mxu0
  %v363 = vadd.f32 0.0, %v362
  %v364 = vpop.f32.mrb[0].mxu0
  %v365 = vadd.f32 0.0, %v364
  %366 = vdwg.mxu0
  %v368 = vsel %vm179, %v289, 0
  %370 = vmatprep.subr.mxu0 0.0
  %371 = vmatpush1.msra.mxu0 %v135
  %372 = vmatprep.subr.mxu0 0.0
  %373 = vmatpush1.msra.mxu0 %v140
  %374 = vmatprep.subr.mxu0 0.0
  %375 = vmatpush1.msra.mxu0 %v145
  %376 = vmatprep.subr.mxu0 0.0
  %377 = vmatpush1.msra.mxu0 %v185
  %378 = vmatprep.subr.mxu0 0.0
  %379 = vmatpush1.msra.mxu0 0.0
  %380 = vmatprep.subr.mxu0 0.0
  %381 = vmatpush1.msra.mxu0 0.0
  %382 = vmatprep.subr.mxu0 0.0
  %383 = vmatpush1.msra.mxu0 0.0
  %384 = vmatprep.subr.mxu0 0.0
  %385 = vmatpush1.msra.mxu0 0.0
  %386 = vmatprep.subr.mxu0 0.0
  %387 = vmatpush1.msra.mxu0 0.0
  %388 = vmatprep.subr.mxu0 0.0
  %389 = vmatpush1.msra.mxu0 0.0
  %390 = vmatprep.subr.mxu0 0.0
  %391 = vmatpush1.msra.mxu0 0.0
  %392 = vmatprep.subr.mxu0 0.0
  %393 = vmatpush1.msra.mxu0 0.0
  %394 = vmatprep.subr.mxu0 0.0
  %395 = vmatpush1.msra.mxu0 0.0
  %396 = vmatprep.subr.mxu0 0.0
  %397 = vmatpush1.msra.mxu0 0.0
  %398 = vmatprep.subr.mxu0 0.0
  %399 = vmatpush1.msra.mxu0 0.0
  %400 = vmatprep.subr.mxu0 0.0
  %401 = vmatpush1.msra.mxu0 0.0
  %402 = vmatprep.subr.mxu0 0.0
  %403 = vmatpush1.msra.mxu0 0.0
  %404 = vmatprep.subr.mxu0 0.0
  %405 = vmatpush1.msra.mxu0 0.0
  %406 = vmatprep.subr.mxu0 0.0
  %407 = vmatpush1.msra.mxu0 0.0
  %408 = vmatprep.subr.mxu0 0.0
  %409 = vmatpush1.msra.mxu0 0.0
  %410 = vmatprep.subr.mxu0 0.0
  %411 = vmatpush1.msra.mxu0 0.0
  %412 = vmatprep.subr.mxu0 0.0
  %413 = vmatpush1.msra.mxu0 0.0
  %414 = vmatprep.subr.mxu0 0.0
  %415 = vmatpush1.msra.mxu0 0.0
  %416 = vmatprep.subr.mxu0 0.0
  %417 = vmatpush1.msra.mxu0 0.0
  %418 = vmatprep.subr.mxu0 0.0
  %419 = vmatpush1.msra.mxu0 0.0
  %420 = vmatprep.subr.mxu0 0.0
  %421 = vmatpush1.msra.mxu0 0.0
  %422 = vmatprep.subr.mxu0 0.0
  %423 = vmatpush1.msra.mxu0 0.0
  %424 = vmatprep.subr.mxu0 0.0
  %425 = vmatpush1.msra.mxu0 0.0
  %426 = vmatprep.subr.mxu0 0.0
  %427 = vmatpush1.msra.mxu0 0.0
  %428 = vmatprep.subr.mxu0 0.0
  %429 = vmatpush1.msra.mxu0 0.0
  %430 = vmatprep.subr.mxu0 0.0
  %431 = vmatpush1.msra.mxu0 0.0
  %432 = vmatprep.subr.mxu0 0.0
  %433 = vmatpush1.msra.mxu0 0.0
  %434 = vmatprep.mubr.f32.mxu0 0.0
  %435 = vmatmul.mubr.f32.gmra.mrb[0].mxu0 %v368
  %v436 = vpop.f32.mrb[0].mxu0
  %v437 = vadd.f32 %v363, %v436
  %v438 = vpop.f32.mrb[0].mxu0
  %439 = vdwg.mxu0
  %v441 = vlaneseq
  %v442 = vshrl.u32 %v441, 7
  %v443 = vsub.s32 0, %v442
  %v444 = vrot.slane %v172, %v443
  %v446 = vadd.f32 %v365, %v444
  %v447 = vxor.u32 %v446, 2147483648
  %v448 = vmul.f32 %v447, 1.442695
  %v449 = vpow.pop %v448
  %v450 = vadd.f32 %v449, 1.0
  %v451 = vrcp.pop %v450
  %v452 = vmul.f32 1.0, %v451
  %v453 = vtanh.pop %v446
  %v454 = vmul.f32 %v452, 0.0
  %456 = vrot.lane.b32.xlu0 %v453, 64
  %v457 = vpop.permute.xlu0 %456
  %v459 = vmul.f32 %v452, %v457
  %461 = vrot.lane.b32.xlu0 %v459, 32
  %v462 = vpop.permute.xlu0 %461
  %v464 = vadd.f32 %v454, %v462
  %v465 = vtanh.pop %v464
  %467 = vrot.lane.b32.xlu0 %v465, 64
  %v468 = vpop.permute.xlu0 %467
  %v470 = vmul.f32 %v452, %v468
  %v471 = vsel %vm281, %v470, 0.0
  %v472 = vsel %vm281, %v464, 0.0
  %v473 = vxor.u32 %v437, 2147483648
  %v474 = vmul.f32 %v473, 1.442695
  %v475 = vpow.pop %v474
  %v476 = vadd.f32 %v475, 1.0
  %v477 = vrcp.pop %v476
  %v478 = vmul.f32 1.0, %v477
  %v479 = vtanh.pop %v437
  %v480 = vmul.f32 %v478, %v283
  %482 = vrot.lane.b32.xlu0 %v479, 64
  %v483 = vpop.permute.xlu0 %482
  %v485 = vmul.f32 %v478, %v483
  %487 = vrot.lane.b32.xlu0 %v485, 32
  %v488 = vpop.permute.xlu0 %487
  %v490 = vadd.f32 %v480, %v488
  %v491 = vtanh.pop %v490
  %493 = vrot.lane.b32.xlu0 %v491, 64
  %v494 = vpop.permute.xlu0 %493
  %v496 = vmul.f32 %v478, %v494
  %vm497 = vcmp.gt.s32.totalorder %v158, 1
  %v498 = vsel %vm497, %v496, %v282
  %v499 = vsel %vm497, %v490, %v283
  %500 = vset.pattern.permute.xlu0 2
  %501 = vperm.xlu0 %500, %v159
  %v502 = vpop.permute.xlu0 %501
  %vm503 = vcmp.eq.s32.totalorder %v502, %v154
  %v504 = vsel %vm503, 1, 0
  %v505 = vcvt.s32.f32 %v504
  %507 = vrot.lane.b32.xlu0 %v498, 32
  %v508 = vpop.permute.xlu0 %507
  %v509 = vsel %vm293, %v508, 0
  %511 = vmatprep.subr.mxu0 %v161
  %512 = vmatpush1.msra.mxu0 %v160
  %513 = vmatprep.subr.mxu0 %v163
  %514 = vmatpush1.msra.mxu0 %v162
  %515 = vmatprep.subr.mxu0 %v165
  %516 = vmatpush1.msra.mxu0 %v164
  %517 = vmatprep.subr.mxu0 %v167
  %518 = vmatpush1.msra.mxu0 %v166
  %519 = vmatprep.subr.mxu0 0.0
  %520 = vmatpush1.msra.mxu0 0.0
  %521 = vmatprep.subr.mxu0 0.0
  %522 = vmatpush1.msra.mxu0 0.0
  %523 = vmatprep.subr.mxu0 0.0
  %524 = vmatpush1.msra.mxu0 0.0
  %525 = vmatprep.subr.mxu0 0.0
  %526 = vmatpush1.msra.mxu0 0.0
  %527 = vmatprep.subr.mxu0 0.0
  %528 = vmatpush1.msra.mxu0 0.0
  %529 = vmatprep.subr.mxu0 0.0
  %530 = vmatpush1.msra.mxu0 0.0
  %531 = vmatprep.subr.mxu0 0.0
  %532 = vmatpush1.msra.mxu0 0.0
  %533 = vmatprep.subr.mxu0 0.0
  %534 = vmatpush1.msra.mxu0 0.0
  %535 = vmatprep.subr.mxu0 0.0
  %536 = vmatpush1.msra.mxu0 0.0
  %537 = vmatprep.subr.mxu0 0.0
  %538 = vmatpush1.msra.mxu0 0.0
  %539 = vmatprep.subr.mxu0 0.0
  %540 = vmatpush1.msra.mxu0 0.0
  %541 = vmatprep.subr.mxu0 0.0
  %542 = vmatpush1.msra.mxu0 0.0
  %543 = vmatprep.subr.mxu0 0.0
  %544 = vmatpush1.msra.mxu0 0.0
  %545 = vmatprep.subr.mxu0 0.0
  %546 = vmatpush1.msra.mxu0 0.0
  %547 = vmatprep.subr.mxu0 0.0
  %548 = vmatpush1.msra.mxu0 0.0
  %549 = vmatprep.subr.mxu0 0.0
  %550 = vmatpush1.msra.mxu0 0.0
  %551 = vmatprep.subr.mxu0 0.0
  %552 = vmatpush1.msra.mxu0 0.0
  %553 = vmatprep.subr.mxu0 0.0
  %554 = vmatpush1.msra.mxu0 0.0
  %555 = vmatprep.subr.mxu0 0.0
  %556 = vmatpush1.msra.mxu0 0.0
  %557 = vmatprep.subr.mxu0 0.0
  %558 = vmatpush1.msra.mxu0 0.0
  %559 = vmatprep.subr.mxu0 0.0
  %560 = vmatpush1.msra.mxu0 0.0
  %561 = vmatprep.subr.mxu0 0.0
  %562 = vmatpush1.msra.mxu0 0.0
  %563 = vmatprep.subr.mxu0 0.0
  %564 = vmatpush1.msra.mxu0 0.0
  %565 = vmatprep.subr.mxu0 0.0
  %566 = vmatpush1.msra.mxu0 0.0
  %567 = vmatprep.subr.mxu0 0.0
  %568 = vmatpush1.msra.mxu0 0.0
  %569 = vmatprep.subr.mxu0 0.0
  %570 = vmatpush1.msra.mxu0 0.0
  %571 = vmatprep.subr.mxu0 0.0
  %572 = vmatpush1.msra.mxu0 0.0
  %573 = vmatprep.subr.mxu0 0.0
  %574 = vmatpush1.msra.mxu0 0.0
  %575 = vmatprep.mubr.f32.mxu0 0.0
  %576 = vmatmul.mubr.f32.gmra.mrb[0].mxu0 %v509
  %v577 = vpop.f32.mrb[0].mxu0
  %v578 = vadd.f32 0.0, %v577
  %v579 = vpop.f32.mrb[0].mxu0
  %v580 = vadd.f32 0.0, %v579
  %581 = vdwg.mxu0
  %v583 = vsel %vm179, %v505, 0
  %585 = vmatprep.subr.mxu0 0.0
  %586 = vmatpush1.msra.mxu0 %v135
  %587 = vmatprep.subr.mxu0 0.0
  %588 = vmatpush1.msra.mxu0 %v140
  %589 = vmatprep.subr.mxu0 0.0
  %590 = vmatpush1.msra.mxu0 %v145
  %591 = vmatprep.subr.mxu0 0.0
  %592 = vmatpush1.msra.mxu0 %v185
  %593 = vmatprep.subr.mxu0 0.0
  %594 = vmatpush1.msra.mxu0 0.0
  %595 = vmatprep.subr.mxu0 0.0
  %596 = vmatpush1.msra.mxu0 0.0
  %597 = vmatprep.subr.mxu0 0.0
  %598 = vmatpush1.msra.mxu0 0.0
  %599 = vmatprep.subr.mxu0 0.0
  %600 = vmatpush1.msra.mxu0 0.0
  %601 = vmatprep.subr.mxu0 0.0
  %602 = vmatpush1.msra.mxu0 0.0
  %603 = vmatprep.subr.mxu0 0.0
  %604 = vmatpush1.msra.mxu0 0.0
  %605 = vmatprep.subr.mxu0 0.0
  %606 = vmatpush1.msra.mxu0 0.0
  %607 = vmatprep.subr.mxu0 0.0
  %608 = vmatpush1.msra.mxu0 0.0
  %609 = vmatprep.subr.mxu0 0.0
  %610 = vmatpush1.msra.mxu0 0.0
  %611 = vmatprep.subr.mxu0 0.0
  %612 = vmatpush1.msra.mxu0 0.0
  %613 = vmatprep.subr.mxu0 0.0
  %614 = vmatpush1.msra.mxu0 0.0
  %615 = vmatprep.subr.mxu0 0.0
  %616 = vmatpush1.msra.mxu0 0.0
  %617 = vmatprep.subr.mxu0 0.0
  %618 = vmatpush1.msra.mxu0 0.0
  %619 = vmatprep.subr.mxu0 0.0
  %620 = vmatpush1.msra.mxu0 0.0
  %621 = vmatprep.subr.mxu0 0.0
  %622 = vmatpush1.msra.mxu0 0.0
  %623 = vmatprep.subr.mxu0 0.0
  %624 = vmatpush1.msra.mxu0 0.0
  %625 = vmatprep.subr.mxu0 0.0
  %626 = vmatpush1.msra.mxu0 0.0
  %627 = vmatprep.subr.mxu0 0.0
  %628 = vmatpush1.msra.mxu0 0.0
  %629 = vmatprep.subr.mxu0 0.0
  %630 = vmatpush1.msra.mxu0 0.0
  %631 = vmatprep.subr.mxu0 0.0
  %632 = vmatpush1.msra.mxu0 0.0
  %633 = vmatprep.subr.mxu0 0.0
  %634 = vmatpush1.msra.mxu0 0.0
  %635 = vmatprep.subr.mxu0 0.0
  %636 = vmatpush1.msra.mxu0 0.0
  %637 = vmatprep.subr.mxu0 0.0
  %638 = vmatpush1.msra.mxu0 0.0
  %639 = vmatprep.subr.mxu0 0.0
  %640 = vmatpush1.msra.mxu0 0.0
  %641 = vmatprep.subr.mxu0 0.0
  %642 = vmatpush1.msra.mxu0 0.0
  %643 = vmatprep.subr.mxu0 0.0
  %644 = vmatpush1.msra.mxu0 0.0
  %645 = vmatprep.subr.mxu0 0.0
  %646 = vmatpush1.msra.mxu0 0.0
  %647 = vmatprep.subr.mxu0 0.0
  %648 = vmatpush1.msra.mxu0 0.0
  %649 = vmatprep.mubr.f32.mxu0 0.0
  %650 = vmatmul.mubr.f32.gmra.mrb[0].mxu0 %v583
  %v651 = vpop.f32.mrb[0].mxu0
  %v652 = vadd.f32 %v578, %v651
  %v653 = vpop.f32.mrb[0].mxu0
  %654 = vdwg.mxu0
  %v655 = vadd.f32 %v580, %v444
  %657 = vrot.lane.b32.xlu0 %v471, 32
  %v658 = vpop.permute.xlu0 %657
  %v659 = vsel %vm293, %v658, 0
  %661 = vmatprep.subr.mxu0 0.0
  %662 = vmatpush1.msra.mxu0 %v168
  %663 = vmatprep.subr.mxu0 0.0
  %664 = vmatpush1.msra.mxu0 %v169
  %665 = vmatprep.subr.mxu0 0.0
  %666 = vmatpush1.msra.mxu0 %v170
  %667 = vmatprep.subr.mxu0 0.0
  %668 = vmatpush1.msra.mxu0 %v171
  %669 = vmatprep.subr.mxu0 0.0
  %670 = vmatpush1.msra.mxu0 0.0
  %671 = vmatprep.subr.mxu0 0.0
  %672 = vmatpush1.msra.mxu0 0.0
  %673 = vmatprep.subr.mxu0 0.0
  %674 = vmatpush1.msra.mxu0 0.0
  %675 = vmatprep.subr.mxu0 0.0
  %676 = vmatpush1.msra.mxu0 0.0
  %677 = vmatprep.subr.mxu0 0.0
  %678 = vmatpush1.msra.mxu0 0.0
  %679 = vmatprep.subr.mxu0 0.0
  %680 = vmatpush1.msra.mxu0 0.0
  %681 = vmatprep.subr.mxu0 0.0
  %682 = vmatpush1.msra.mxu0 0.0
  %683 = vmatprep.subr.mxu0 0.0
  %684 = vmatpush1.msra.mxu0 0.0
  %685 = vmatprep.subr.mxu0 0.0
  %686 = vmatpush1.msra.mxu0 0.0
  %687 = vmatprep.subr.mxu0 0.0
  %688 = vmatpush1.msra.mxu0 0.0
  %689 = vmatprep.subr.mxu0 0.0
  %690 = vmatpush1.msra.mxu0 0.0
  %691 = vmatprep.subr.mxu0 0.0
  %692 = vmatpush1.msra.mxu0 0.0
  %693 = vmatprep.subr.mxu0 0.0
  %694 = vmatpush1.msra.mxu0 0.0
  %695 = vmatprep.subr.mxu0 0.0
  %696 = vmatpush1.msra.mxu0 0.0
  %697 = vmatprep.subr.mxu0 0.0
  %698 = vmatpush1.msra.mxu0 0.0
  %699 = vmatprep.subr.mxu0 0.0
  %700 = vmatpush1.msra.mxu0 0.0
  %701 = vmatprep.subr.mxu0 0.0
  %702 = vmatpush1.msra.mxu0 0.0
  %703 = vmatprep.subr.mxu0 0.0
  %704 = vmatpush1.msra.mxu0 0.0
  %705 = vmatprep.subr.mxu0 0.0
  %706 = vmatpush1.msra.mxu0 0.0
  %707 = vmatprep.subr.mxu0 0.0
  %708 = vmatpush1.msra.mxu0 0.0
  %709 = vmatprep.subr.mxu0 0.0
  %710 = vmatpush1.msra.mxu0 0.0
  %711 = vmatprep.subr.mxu0 0.0
  %712 = vmatpush1.msra.mxu0 0.0
  %713 = vmatprep.subr.mxu0 0.0
  %714 = vmatpush1.msra.mxu0 0.0
  %715 = vmatprep.subr.mxu0 0.0
  %716 = vmatpush1.msra.mxu0 0.0
  %717 = vmatprep.subr.mxu0 0.0
  %718 = vmatpush1.msra.mxu0 0.0
  %719 = vmatprep.subr.mxu0 0.0
  %720 = vmatpush1.msra.mxu0 0.0
  %721 = vmatprep.subr.mxu0 0.0
  %722 = vmatpush1.msra.mxu0 0.0
  %723 = vmatprep.subr.mxu0 0.0
  %724 = vmatpush1.msra.mxu0 0.0
  %725 = vmatprep.mubr.f32.mxu0 0.0
  %726 = vmatmul.mubr.f32.gmra.mrb[0].mxu0 %v659
  %v727 = vpop.f32.mrb[0].mxu0
  %v728 = vadd.f32 0.0, %v727
  %v729 = vpop.f32.mrb[0].mxu0
  %730 = vdwg.mxu0
  %v731 = vadd.f32 %v655, %v728
  %v732 = vxor.u32 %v731, 2147483648
  %v733 = vmul.f32 %v732, 1.442695
  %v734 = vpow.pop %v733
  %v735 = vadd.f32 %v734, 1.0
  %v736 = vrcp.pop %v735
  %v737 = vmul.f32 1.0, %v736
  %v738 = vtanh.pop %v731
  %v739 = vmul.f32 %v737, %v472
  %741 = vrot.lane.b32.xlu0 %v738, 64
  %v742 = vpop.permute.xlu0 %741
  %v744 = vmul.f32 %v737, %v742
  %746 = vrot.lane.b32.xlu0 %v744, 32
  %v747 = vpop.permute.xlu0 %746
  %v749 = vadd.f32 %v739, %v747
  %v750 = vtanh.pop %v749
  %752 = vrot.lane.b32.xlu0 %v750, 64
  %v753 = vpop.permute.xlu0 %752
  %v755 = vmul.f32 %v737, %v753
  %v756 = vsel %vm497, %v755, %v471
  %v757 = vsel %vm497, %v749, %v472
  %v758 = vxor.u32 %v652, 2147483648
  %v759 = vmul.f32 %v758, 1.442695
  %v760 = vpow.pop %v759
  %v761 = vadd.f32 %v760, 1.0
  %v762 = vrcp.pop %v761
  %v763 = vmul.f32 1.0, %v762
  %v764 = vtanh.pop %v652
  %v765 = vmul.f32 %v763, %v499
  %767 = vrot.lane.b32.xlu0 %v764, 64
  %v768 = vpop.permute.xlu0 %767
  %v770 = vmul.f32 %v763, %v768
  %772 = vrot.lane.b32.xlu0 %v770, 32
  %v773 = vpop.permute.xlu0 %772
  %v775 = vadd.f32 %v765, %v773
  %v776 = vtanh.pop %v775
  %778 = vrot.lane.b32.xlu0 %v776, 64
  %v779 = vpop.permute.xlu0 %778
  %v781 = vmul.f32 %v763, %v779
  %vm782 = vcmp.gt.s32.totalorder %v158, 2
  %v783 = vsel %vm782, %v781, %v498
  %v784 = vsel %vm782, %v775, %v499
  %785 = vset.pattern.permute.xlu0 3
  %786 = vperm.xlu0 %785, %v159
  %v787 = vpop.permute.xlu0 %786
  %vm788 = vcmp.eq.s32.totalorder %v787, %v154
  %v789 = vsel %vm788, 1, 0
  %v790 = vcvt.s32.f32 %v789
  %792 = vrot.lane.b32.xlu0 %v783, 32
  %v793 = vpop.permute.xlu0 %792
  %v794 = vsel %vm293, %v793, 0
  %796 = vmatprep.subr.mxu0 %v161
  %797 = vmatpush1.msra.mxu0 %v160
  %798 = vmatprep.subr.mxu0 %v163
  %799 = vmatpush1.msra.mxu0 %v162
  %800 = vmatprep.subr.mxu0 %v165
  %801 = vmatpush1.msra.mxu0 %v164
  %802 = vmatprep.subr.mxu0 %v167
  %803 = vmatpush1.msra.mxu0 %v166
  %804 = vmatprep.subr.mxu0 0.0
  %805 = vmatpush1.msra.mxu0 0.0
  %806 = vmatprep.subr.mxu0 0.0
  %807 = vmatpush1.msra.mxu0 0.0
  %808 = vmatprep.subr.mxu0 0.0
  %809 = vmatpush1.msra.mxu0 0.0
  %810 = vmatprep.subr.mxu0 0.0
  %811 = vmatpush1.msra.mxu0 0.0
  %812 = vmatprep.subr.mxu0 0.0
  %813 = vmatpush1.msra.mxu0 0.0
  %814 = vmatprep.subr.mxu0 0.0
  %815 = vmatpush1.msra.mxu0 0.0
  %816 = vmatprep.subr.mxu0 0.0
  %817 = vmatpush1.msra.mxu0 0.0
  %818 = vmatprep.subr.mxu0 0.0
  %819 = vmatpush1.msra.mxu0 0.0
  %820 = vmatprep.subr.mxu0 0.0
  %821 = vmatpush1.msra.mxu0 0.0
  %822 = vmatprep.subr.mxu0 0.0
  %823 = vmatpush1.msra.mxu0 0.0
  %824 = vmatprep.subr.mxu0 0.0
  %825 = vmatpush1.msra.mxu0 0.0
  %826 = vmatprep.subr.mxu0 0.0
  %827 = vmatpush1.msra.mxu0 0.0
  %828 = vmatprep.subr.mxu0 0.0
  %829 = vmatpush1.msra.mxu0 0.0
  %830 = vmatprep.subr.mxu0 0.0
  %831 = vmatpush1.msra.mxu0 0.0
  %832 = vmatprep.subr.mxu0 0.0
  %833 = vmatpush1.msra.mxu0 0.0
  %834 = vmatprep.subr.mxu0 0.0
  %835 = vmatpush1.msra.mxu0 0.0
  %836 = vmatprep.subr.mxu0 0.0
  %837 = vmatpush1.msra.mxu0 0.0
  %838 = vmatprep.subr.mxu0 0.0
  %839 = vmatpush1.msra.mxu0 0.0
  %840 = vmatprep.subr.mxu0 0.0
  %841 = vmatpush1.msra.mxu0 0.0
  %842 = vmatprep.subr.mxu0 0.0
  %843 = vmatpush1.msra.mxu0 0.0
  %844 = vmatprep.subr.mxu0 0.0
  %845 = vmatpush1.msra.mxu0 0.0
  %846 = vmatprep.subr.mxu0 0.0
  %847 = vmatpush1.msra.mxu0 0.0
  %848 = vmatprep.subr.mxu0 0.0
  %849 = vmatpush1.msra.mxu0 0.0
  %850 = vmatprep.subr.mxu0 0.0
  %851 = vmatpush1.msra.mxu0 0.0
  %852 = vmatprep.subr.mxu0 0.0
  %853 = vmatpush1.msra.mxu0 0.0
  %854 = vmatprep.subr.mxu0 0.0
  %855 = vmatpush1.msra.mxu0 0.0
  %856 = vmatprep.subr.mxu0 0.0
  %857 = vmatpush1.msra.mxu0 0.0
  %858 = vmatprep.subr.mxu0 0.0
  %859 = vmatpush1.msra.mxu0 0.0
  %860 = vmatprep.mubr.f32.mxu0 0.0
  %861 = vmatmul.mubr.f32.gmra.mrb[0].mxu0 %v794
  %v862 = vpop.f32.mrb[0].mxu0
  %v863 = vadd.f32 0.0, %v862
  %v864 = vpop.f32.mrb[0].mxu0
  %v865 = vadd.f32 0.0, %v864
  %866 = vdwg.mxu0
  %v868 = vsel %vm179, %v790, 0
  %870 = vmatprep.subr.mxu0 0.0
  %871 = vmatpush1.msra.mxu0 %v135
  %872 = vmatprep.subr.mxu0 0.0
  %873 = vmatpush1.msra.mxu0 %v140
  %874 = vmatprep.subr.mxu0 0.0
  %875 = vmatpush1.msra.mxu0 %v145
  %876 = vmatprep.subr.mxu0 0.0
  %877 = vmatpush1.msra.mxu0 %v185
  %878 = vmatprep.subr.mxu0 0.0
  %879 = vmatpush1.msra.mxu0 0.0
  %880 = vmatprep.subr.mxu0 0.0
  %881 = vmatpush1.msra.mxu0 0.0
  %882 = vmatprep.subr.mxu0 0.0
  %883 = vmatpush1.msra.mxu0 0.0
  %884 = vmatprep.subr.mxu0 0.0
  %885 = vmatpush1.msra.mxu0 0.0
  %886 = vmatprep.subr.mxu0 0.0
  %887 = vmatpush1.msra.mxu0 0.0
  %888 = vmatprep.subr.mxu0 0.0
  %889 = vmatpush1.msra.mxu0 0.0
  %890 = vmatprep.subr.mxu0 0.0
  %891 = vmatpush1.msra.mxu0 0.0
  %892 = vmatprep.subr.mxu0 0.0
  %893 = vmatpush1.msra.mxu0 0.0
  %894 = vmatprep.subr.mxu0 0.0
  %895 = vmatpush1.msra.mxu0 0.0
  %896 = vmatprep.subr.mxu0 0.0
  %897 = vmatpush1.msra.mxu0 0.0
  %898 = vmatprep.subr.mxu0 0.0
  %899 = vmatpush1.msra.mxu0 0.0
  %900 = vmatprep.subr.mxu0 0.0
  %901 = vmatpush1.msra.mxu0 0.0
  %902 = vmatprep.subr.mxu0 0.0
  %903 = vmatpush1.msra.mxu0 0.0
  %904 = vmatprep.subr.mxu0 0.0
  %905 = vmatpush1.msra.mxu0 0.0
  %906 = vmatprep.subr.mxu0 0.0
  %907 = vmatpush1.msra.mxu0 0.0
  %908 = vmatprep.subr.mxu0 0.0
  %909 = vmatpush1.msra.mxu0 0.0
  %910 = vmatprep.subr.mxu0 0.0
  %911 = vmatpush1.msra.mxu0 0.0
  %912 = vmatprep.subr.mxu0 0.0
  %913 = vmatpush1.msra.mxu0 0.0
  %914 = vmatprep.subr.mxu0 0.0
  %915 = vmatpush1.msra.mxu0 0.0
  %916 = vmatprep.subr.mxu0 0.0
  %917 = vmatpush1.msra.mxu0 0.0
  %918 = vmatprep.subr.mxu0 0.0
  %919 = vmatpush1.msra.mxu0 0.0
  %920 = vmatprep.subr.mxu0 0.0
  %921 = vmatpush1.msra.mxu0 0.0
  %922 = vmatprep.subr.mxu0 0.0
  %923 = vmatpush1.msra.mxu0 0.0
  %924 = vmatprep.subr.mxu0 0.0
  %925 = vmatpush1.msra.mxu0 0.0
  %926 = vmatprep.subr.mxu0 0.0
  %927 = vmatpush1.msra.mxu0 0.0
  %928 = vmatprep.subr.mxu0 0.0
  %929 = vmatpush1.msra.mxu0 0.0
  %930 = vmatprep.subr.mxu0 0.0
  %931 = vmatpush1.msra.mxu0 0.0
  %932 = vmatprep.subr.mxu0 0.0
  %933 = vmatpush1.msra.mxu0 0.0
  %934 = vmatprep.mubr.f32.mxu0 0.0
  %935 = vmatmul.mubr.f32.gmra.mrb[0].mxu0 %v868
  %v936 = vpop.f32.mrb[0].mxu0
  %v937 = vadd.f32 %v863, %v936
  %v938 = vpop.f32.mrb[0].mxu0
  %939 = vdwg.mxu0
  %v940 = vadd.f32 %v865, %v444
  %942 = vrot.lane.b32.xlu0 %v756, 32
  %v943 = vpop.permute.xlu0 %942
  %v944 = vsel %vm293, %v943, 0
  %946 = vmatprep.subr.mxu0 0.0
  %947 = vmatpush1.msra.mxu0 %v168
  %948 = vmatprep.subr.mxu0 0.0
  %949 = vmatpush1.msra.mxu0 %v169
  %950 = vmatprep.subr.mxu0 0.0
  %951 = vmatpush1.msra.mxu0 %v170
  %952 = vmatprep.subr.mxu0 0.0
  %953 = vmatpush1.msra.mxu0 %v171
  %954 = vmatprep.subr.mxu0 0.0
  %955 = vmatpush1.msra.mxu0 0.0
  %956 = vmatprep.subr.mxu0 0.0
  %957 = vmatpush1.msra.mxu0 0.0
  %958 = vmatprep.subr.mxu0 0.0
  %959 = vmatpush1.msra.mxu0 0.0
  %960 = vmatprep.subr.mxu0 0.0
  %961 = vmatpush1.msra.mxu0 0.0
  %962 = vmatprep.subr.mxu0 0.0
  %963 = vmatpush1.msra.mxu0 0.0
  %964 = vmatprep.subr.mxu0 0.0
  %965 = vmatpush1.msra.mxu0 0.0
  %966 = vmatprep.subr.mxu0 0.0
  %967 = vmatpush1.msra.mxu0 0.0
  %968 = vmatprep.subr.mxu0 0.0
  %969 = vmatpush1.msra.mxu0 0.0
  %970 = vmatprep.subr.mxu0 0.0
  %971 = vmatpush1.msra.mxu0 0.0
  %972 = vmatprep.subr.mxu0 0.0
  %973 = vmatpush1.msra.mxu0 0.0
  %974 = vmatprep.subr.mxu0 0.0
  %975 = vmatpush1.msra.mxu0 0.0
  %976 = vmatprep.subr.mxu0 0.0
  %977 = vmatpush1.msra.mxu0 0.0
  %978 = vmatprep.subr.mxu0 0.0
  %979 = vmatpush1.msra.mxu0 0.0
  %980 = vmatprep.subr.mxu0 0.0
  %981 = vmatpush1.msra.mxu0 0.0
  %982 = vmatprep.subr.mxu0 0.0
  %983 = vmatpush1.msra.mxu0 0.0
  %984 = vmatprep.subr.mxu0 0.0
  %985 = vmatpush1.msra.mxu0 0.0
  %986 = vmatprep.subr.mxu0 0.0
  %987 = vmatpush1.msra.mxu0 0.0
  %988 = vmatprep.subr.mxu0 0.0
  %989 = vmatpush1.msra.mxu0 0.0
  %990 = vmatprep.subr.mxu0 0.0
  %991 = vmatpush1.msra.mxu0 0.0
  %992 = vmatprep.subr.mxu0 0.0
  %993 = vmatpush1.msra.mxu0 0.0
  %994 = vmatprep.subr.mxu0 0.0
  %995 = vmatpush1.msra.mxu0 0.0
  %996 = vmatprep.subr.mxu0 0.0
  %997 = vmatpush1.msra.mxu0 0.0
  %998 = vmatprep.subr.mxu0 0.0
  %999 = vmatpush1.msra.mxu0 0.0
  %1000 = vmatprep.subr.mxu0 0.0
  %1001 = vmatpush1.msra.mxu0 0.0
  %1002 = vmatprep.subr.mxu0 0.0
  %1003 = vmatpush1.msra.mxu0 0.0
  %1004 = vmatprep.subr.mxu0 0.0
  %1005 = vmatpush1.msra.mxu0 0.0
  %1006 = vmatprep.subr.mxu0 0.0
  %1007 = vmatpush1.msra.mxu0 0.0
  %1008 = vmatprep.subr.mxu0 0.0
  %1009 = vmatpush1.msra.mxu0 0.0
  %1010 = vmatprep.mubr.f32.mxu0 0.0
  %1011 = vmatmul.mubr.f32.gmra.mrb[0].mxu0 %v944
  %v1012 = vpop.f32.mrb[0].mxu0
  %v1013 = vadd.f32 0.0, %v1012
  %v1014 = vpop.f32.mrb[0].mxu0
  %1015 = vdwg.mxu0
  %v1016 = vadd.f32 %v940, %v1013
  %v1017 = vxor.u32 %v1016, 2147483648
  %v1018 = vmul.f32 %v1017, 1.442695
  %v1019 = vpow.pop %v1018
  %v1020 = vadd.f32 %v1019, 1.0
  %v1021 = vrcp.pop %v1020
  %v1022 = vmul.f32 1.0, %v1021
  %v1023 = vtanh.pop %v1016
  %v1024 = vmul.f32 %v1022, %v757
  %1026 = vrot.lane.b32.xlu0 %v1023, 64
  %v1027 = vpop.permute.xlu0 %1026
  %v1029 = vmul.f32 %v1022, %v1027
  %1031 = vrot.lane.b32.xlu0 %v1029, 32
  %v1032 = vpop.permute.xlu0 %1031
  %v1034 = vadd.f32 %v1024, %v1032
  %v1035 = vtanh.pop %v1034
  %1037 = vrot.lane.b32.xlu0 %v1035, 64
  %v1038 = vpop.permute.xlu0 %1037
  %v1040 = vmul.f32 %v1022, %v1038
  %v1041 = vsel %vm782, %v1040, %v756
  %v1042 = vsel %vm782, %v1034, %v757
  %v1043 = vxor.u32 %v937, 2147483648
  %v1044 = vmul.f32 %v1043, 1.442695
  %v1045 = vpow.pop %v1044
  %v1046 = vadd.f32 %v1045, 1.0
  %v1047 = vrcp.pop %v1046
  %v1048 = vmul.f32 1.0, %v1047
  %v1049 = vtanh.pop %v937
  %v1050 = vmul.f32 %v1048, %v784
  %1052 = vrot.lane.b32.xlu0 %v1049, 64
  %v1053 = vpop.permute.xlu0 %1052
  %v1055 = vmul.f32 %v1048, %v1053
  %1057 = vrot.lane.b32.xlu0 %v1055, 32
  %v1058 = vpop.permute.xlu0 %1057
  %v1060 = vadd.f32 %v1050, %v1058
  %v1061 = vtanh.pop %v1060
  %1063 = vrot.lane.b32.xlu0 %v1061, 64
  %v1064 = vpop.permute.xlu0 %1063
  %v1066 = vmul.f32 %v1048, %v1064
  %vm1067 = vcmp.gt.s32.totalorder %v158, 3
  %v1068 = vsel %vm1067, %v1066, %v783
  %v1069 = vsel %vm1067, %v1060, %v784
  %1070 = vset.pattern.permute.xlu0 4
  %1071 = vperm.xlu0 %1070, %v159
  %v1072 = vpop.permute.xlu0 %1071
  %vm1073 = vcmp.eq.s32.totalorder %v1072, %v154
  %v1074 = vsel %vm1073, 1, 0
  %v1075 = vcvt.s32.f32 %v1074
  %1077 = vrot.lane.b32.xlu0 %v1068, 32
  %v1078 = vpop.permute.xlu0 %1077
  %v1079 = vsel %vm293, %v1078, 0
  %1081 = vmatprep.subr.mxu0 %v161
  %1082 = vmatpush1.msra.mxu0 %v160
  %1083 = vmatprep.subr.mxu0 %v163
  %1084 = vmatpush1.msra.mxu0 %v162
  %1085 = vmatprep.subr.mxu0 %v165
  %1086 = vmatpush1.msra.mxu0 %v164
  %1087 = vmatprep.subr.mxu0 %v167
  %1088 = vmatpush1.msra.mxu0 %v166
  %1089 = vmatprep.subr.mxu0 0.0
  %1090 = vmatpush1.msra.mxu0 0.0
  %1091 = vmatprep.subr.mxu0 0.0
  %1092 = vmatpush1.msra.mxu0 0.0
  %1093 = vmatprep.subr.mxu0 0.0
  %1094 = vmatpush1.msra.mxu0 0.0
  %1095 = vmatprep.subr.mxu0 0.0
  %1096 = vmatpush1.msra.mxu0 0.0
  %1097 = vmatprep.subr.mxu0 0.0
  %1098 = vmatpush1.msra.mxu0 0.0
  %1099 = vmatprep.subr.mxu0 0.0
  %1100 = vmatpush1.msra.mxu0 0.0
  %1101 = vmatprep.subr.mxu0 0.0
  %1102 = vmatpush1.msra.mxu0 0.0
  %1103 = vmatprep.subr.mxu0 0.0
  %1104 = vmatpush1.msra.mxu0 0.0
  %1105 = vmatprep.subr.mxu0 0.0
  %1106 = vmatpush1.msra.mxu0 0.0
  %1107 = vmatprep.subr.mxu0 0.0
  %1108 = vmatpush1.msra.mxu0 0.0
  %1109 = vmatprep.subr.mxu0 0.0
  %1110 = vmatpush1.msra.mxu0 0.0
  %1111 = vmatprep.subr.mxu0 0.0
  %1112 = vmatpush1.msra.mxu0 0.0
  %1113 = vmatprep.subr.mxu0 0.0
  %1114 = vmatpush1.msra.mxu0 0.0
  %1115 = vmatprep.subr.mxu0 0.0
  %1116 = vmatpush1.msra.mxu0 0.0
  %1117 = vmatprep.subr.mxu0 0.0
  %1118 = vmatpush1.msra.mxu0 0.0
  %1119 = vmatprep.subr.mxu0 0.0
  %1120 = vmatpush1.msra.mxu0 0.0
  %1121 = vmatprep.subr.mxu0 0.0
  %1122 = vmatpush1.msra.mxu0 0.0
  %1123 = vmatprep.subr.mxu0 0.0
  %1124 = vmatpush1.msra.mxu0 0.0
  %1125 = vmatprep.subr.mxu0 0.0
  %1126 = vmatpush1.msra.mxu0 0.0
  %1127 = vmatprep.subr.mxu0 0.0
  %1128 = vmatpush1.msra.mxu0 0.0
  %1129 = vmatprep.subr.mxu0 0.0
  %1130 = vmatpush1.msra.mxu0 0.0
  %1131 = vmatprep.subr.mxu0 0.0
  %1132 = vmatpush1.msra.mxu0 0.0
  %1133 = vmatprep.subr.mxu0 0.0
  %1134 = vmatpush1.msra.mxu0 0.0
  %1135 = vmatprep.subr.mxu0 0.0
  %1136 = vmatpush1.msra.mxu0 0.0
  %1137 = vmatprep.subr.mxu0 0.0
  %1138 = vmatpush1.msra.mxu0 0.0
  %1139 = vmatprep.subr.mxu0 0.0
  %1140 = vmatpush1.msra.mxu0 0.0
  %1141 = vmatprep.subr.mxu0 0.0
  %1142 = vmatpush1.msra.mxu0 0.0
  %1143 = vmatprep.subr.mxu0 0.0
  %1144 = vmatpush1.msra.mxu0 0.0
  %1145 = vmatprep.mubr.f32.mxu0 0.0
  %1146 = vmatmul.mubr.f32.gmra.mrb[0].mxu0 %v1079
  %v1147 = vpop.f32.mrb[0].mxu0
  %v1148 = vadd.f32 0.0, %v1147
  %v1149 = vpop.f32.mrb[0].mxu0
  %v1150 = vadd.f32 0.0, %v1149
  %1151 = vdwg.mxu0
  %v1153 = vsel %vm179, %v1075, 0
  %1155 = vmatprep.subr.mxu0 0.0
  %1156 = vmatpush1.msra.mxu0 %v135
  %1157 = vmatprep.subr.mxu0 0.0
  %1158 = vmatpush1.msra.mxu0 %v140
  %1159 = vmatprep.subr.mxu0 0.0
  %1160 = vmatpush1.msra.mxu0 %v145
  %1161 = vmatprep.subr.mxu0 0.0
  %1162 = vmatpush1.msra.mxu0 %v185
  %1163 = vmatprep.subr.mxu0 0.0
  %1164 = vmatpush1.msra.mxu0 0.0
  %1165 = vmatprep.subr.mxu0 0.0
  %1166 = vmatpush1.msra.mxu0 0.0
  %1167 = vmatprep.subr.mxu0 0.0
  %1168 = vmatpush1.msra.mxu0 0.0
  %1169 = vmatprep.subr.mxu0 0.0
  %1170 = vmatpush1.msra.mxu0 0.0
  %1171 = vmatprep.subr.mxu0 0.0
  %1172 = vmatpush1.msra.mxu0 0.0
  %1173 = vmatprep.subr.mxu0 0.0
  %1174 = vmatpush1.msra.mxu0 0.0
  %1175 = vmatprep.subr.mxu0 0.0
  %1176 = vmatpush1.msra.mxu0 0.0
  %1177 = vmatprep.subr.mxu0 0.0
  %1178 = vmatpush1.msra.mxu0 0.0
  %1179 = vmatprep.subr.mxu0 0.0
  %1180 = vmatpush1.msra.mxu0 0.0
  %1181 = vmatprep.subr.mxu0 0.0
  %1182 = vmatpush1.msra.mxu0 0.0
  %1183 = vmatprep.subr.mxu0 0.0
  %1184 = vmatpush1.msra.mxu0 0.0
  %1185 = vmatprep.subr.mxu0 0.0
  %1186 = vmatpush1.msra.mxu0 0.0
  %1187 = vmatprep.subr.mxu0 0.0
  %1188 = vmatpush1.msra.mxu0 0.0
  %1189 = vmatprep.subr.mxu0 0.0
  %1190 = vmatpush1.msra.mxu0 0.0
  %1191 = vmatprep.subr.mxu0 0.0
  %1192 = vmatpush1.msra.mxu0 0.0
  %1193 = vmatprep.subr.mxu0 0.0
  %1194 = vmatpush1.msra.mxu0 0.0
  %1195 = vmatprep.subr.mxu0 0.0
  %1196 = vmatpush1.msra.mxu0 0.0
  %1197 = vmatprep.subr.mxu0 0.0
  %1198 = vmatpush1.msra.mxu0 0.0
  %1199 = vmatprep.subr.mxu0 0.0
  %1200 = vmatpush1.msra.mxu0 0.0
  %1201 = vmatprep.subr.mxu0 0.0
  %1202 = vmatpush1.msra.mxu0 0.0
  %1203 = vmatprep.subr.mxu0 0.0
  %1204 = vmatpush1.msra.mxu0 0.0
  %1205 = vmatprep.subr.mxu0 0.0
  %1206 = vmatpush1.msra.mxu0 0.0
  %1207 = vmatprep.subr.mxu0 0.0
  %1208 = vmatpush1.msra.mxu0 0.0
  %1209 = vmatprep.subr.mxu0 0.0
  %1210 = vmatpush1.msra.mxu0 0.0
  %1211 = vmatprep.subr.mxu0 0.0
  %1212 = vmatpush1.msra.mxu0 0.0
  %1213 = vmatprep.subr.mxu0 0.0
  %1214 = vmatpush1.msra.mxu0 0.0
  %1215 = vmatprep.subr.mxu0 0.0
  %1216 = vmatpush1.msra.mxu0 0.0
  %1217 = vmatprep.subr.mxu0 0.0
  %1218 = vmatpush1.msra.mxu0 0.0
  %1219 = vmatprep.mubr.f32.mxu0 0.0
  %1220 = vmatmul.mubr.f32.gmra.mrb[0].mxu0 %v1153
  %v1221 = vpop.f32.mrb[0].mxu0
  %v1222 = vadd.f32 %v1148, %v1221
  %v1223 = vpop.f32.mrb[0].mxu0
  %1224 = vdwg.mxu0
  %v1225 = vadd.f32 %v1150, %v444
  %1227 = vrot.lane.b32.xlu0 %v1041, 32
  %v1228 = vpop.permute.xlu0 %1227
  %v1229 = vsel %vm293, %v1228, 0
  %1231 = vmatprep.subr.mxu0 0.0
  %1232 = vmatpush1.msra.mxu0 %v168
  %1233 = vmatprep.subr.mxu0 0.0
  %1234 = vmatpush1.msra.mxu0 %v169
  %1235 = vmatprep.subr.mxu0 0.0
  %1236 = vmatpush1.msra.mxu0 %v170
  %1237 = vmatprep.subr.mxu0 0.0
  %1238 = vmatpush1.msra.mxu0 %v171
  %1239 = vmatprep.subr.mxu0 0.0
  %1240 = vmatpush1.msra.mxu0 0.0
  %1241 = vmatprep.subr.mxu0 0.0
  %1242 = vmatpush1.msra.mxu0 0.0
  %1243 = vmatprep.subr.mxu0 0.0
  %1244 = vmatpush1.msra.mxu0 0.0
  %1245 = vmatprep.subr.mxu0 0.0
  %1246 = vmatpush1.msra.mxu0 0.0
  %1247 = vmatprep.subr.mxu0 0.0
  %1248 = vmatpush1.msra.mxu0 0.0
  %1249 = vmatprep.subr.mxu0 0.0
  %1250 = vmatpush1.msra.mxu0 0.0
  %1251 = vmatprep.subr.mxu0 0.0
  %1252 = vmatpush1.msra.mxu0 0.0
  %1253 = vmatprep.subr.mxu0 0.0
  %1254 = vmatpush1.msra.mxu0 0.0
  %1255 = vmatprep.subr.mxu0 0.0
  %1256 = vmatpush1.msra.mxu0 0.0
  %1257 = vmatprep.subr.mxu0 0.0
  %1258 = vmatpush1.msra.mxu0 0.0
  %1259 = vmatprep.subr.mxu0 0.0
  %1260 = vmatpush1.msra.mxu0 0.0
  %1261 = vmatprep.subr.mxu0 0.0
  %1262 = vmatpush1.msra.mxu0 0.0
  %1263 = vmatprep.subr.mxu0 0.0
  %1264 = vmatpush1.msra.mxu0 0.0
  %1265 = vmatprep.subr.mxu0 0.0
  %1266 = vmatpush1.msra.mxu0 0.0
  %1267 = vmatprep.subr.mxu0 0.0
  %1268 = vmatpush1.msra.mxu0 0.0
  %1269 = vmatprep.subr.mxu0 0.0
  %1270 = vmatpush1.msra.mxu0 0.0
  %1271 = vmatprep.subr.mxu0 0.0
  %1272 = vmatpush1.msra.mxu0 0.0
  %1273 = vmatprep.subr.mxu0 0.0
  %1274 = vmatpush1.msra.mxu0 0.0
  %1275 = vmatprep.subr.mxu0 0.0
  %1276 = vmatpush1.msra.mxu0 0.0
  %1277 = vmatprep.subr.mxu0 0.0
  %1278 = vmatpush1.msra.mxu0 0.0
  %1279 = vmatprep.subr.mxu0 0.0
  %1280 = vmatpush1.msra.mxu0 0.0
  %1281 = vmatprep.subr.mxu0 0.0
  %1282 = vmatpush1.msra.mxu0 0.0
  %1283 = vmatprep.subr.mxu0 0.0
  %1284 = vmatpush1.msra.mxu0 0.0
  %1285 = vmatprep.subr.mxu0 0.0
  %1286 = vmatpush1.msra.mxu0 0.0
  %1287 = vmatprep.subr.mxu0 0.0
  %1288 = vmatpush1.msra.mxu0 0.0
  %1289 = vmatprep.subr.mxu0 0.0
  %1290 = vmatpush1.msra.mxu0 0.0
  %1291 = vmatprep.subr.mxu0 0.0
  %1292 = vmatpush1.msra.mxu0 0.0
  %1293 = vmatprep.subr.mxu0 0.0
  %1294 = vmatpush1.msra.mxu0 0.0
  %1295 = vmatprep.mubr.f32.mxu0 0.0
  %1296 = vmatmul.mubr.f32.gmra.mrb[0].mxu0 %v1229
  %v1297 = vpop.f32.mrb[0].mxu0
  %v1298 = vadd.f32 0.0, %v1297
  %v1299 = vpop.f32.mrb[0].mxu0
  %1300 = vdwg.mxu0
  %v1301 = vadd.f32 %v1225, %v1298
  %v1302 = vxor.u32 %v1301, 2147483648
  %v1303 = vmul.f32 %v1302, 1.442695
  %v1304 = vpow.pop %v1303
  %v1305 = vadd.f32 %v1304, 1.0
  %v1306 = vrcp.pop %v1305
  %v1307 = vmul.f32 1.0, %v1306
  %v1308 = vtanh.pop %v1301
  %v1309 = vmul.f32 %v1307, %v1042
  %1311 = vrot.lane.b32.xlu0 %v1308, 64
  %v1312 = vpop.permute.xlu0 %1311
  %v1314 = vmul.f32 %v1307, %v1312
  %1316 = vrot.lane.b32.xlu0 %v1314, 32
  %v1317 = vpop.permute.xlu0 %1316
  %v1319 = vadd.f32 %v1309, %v1317
  %v1320 = vtanh.pop %v1319
  %1322 = vrot.lane.b32.xlu0 %v1320, 64
  %v1323 = vpop.permute.xlu0 %1322
  %v1325 = vmul.f32 %v1307, %v1323
  %v1326 = vsel %vm1067, %v1325, %v1041
  %v1327 = vsel %vm1067, %v1319, %v1042
  %v1328 = vxor.u32 %v1222, 2147483648
  %v1329 = vmul.f32 %v1328, 1.442695
  %v1330 = vpow.pop %v1329
  %v1331 = vadd.f32 %v1330, 1.0
  %v1332 = vrcp.pop %v1331
  %v1333 = vmul.f32 1.0, %v1332
  %v1334 = vtanh.pop %v1222
  %v1335 = vmul.f32 %v1333, %v1069
  %1337 = vrot.lane.b32.xlu0 %v1334, 64
  %v1338 = vpop.permute.xlu0 %1337
  %v1340 = vmul.f32 %v1333, %v1338
  %1342 = vrot.lane.b32.xlu0 %v1340, 32
  %v1343 = vpop.permute.xlu0 %1342
  %v1345 = vadd.f32 %v1335, %v1343
  %v1346 = vtanh.pop %v1345
  %1348 = vrot.lane.b32.xlu0 %v1346, 64
  %v1349 = vpop.permute.xlu0 %1348
  %v1351 = vmul.f32 %v1333, %v1349
  %vm1352 = vcmp.gt.s32.totalorder %v158, 4
  %v1353 = vsel %vm1352, %v1351, %v1068
  %v1354 = vsel %vm1352, %v1345, %v1069
  %1355 = vset.pattern.permute.xlu0 5
  %1356 = vperm.xlu0 %1355, %v159
  %v1357 = vpop.permute.xlu0 %1356
  %vm1358 = vcmp.eq.s32.totalorder %v1357, %v154
  %v1359 = vsel %vm1358, 1, 0
  %v1360 = vcvt.s32.f32 %v1359
  %1362 = vrot.lane.b32.xlu0 %v1353, 32
  %v1363 = vpop.permute.xlu0 %1362
  %v1364 = vsel %vm293, %v1363, 0
  %1366 = vmatprep.subr.mxu0 %v161
  %1367 = vmatpush1.msra.mxu0 %v160
  %1368 = vmatprep.subr.mxu0 %v163
  %1369 = vmatpush1.msra.mxu0 %v162
  %1370 = vmatprep.subr.mxu0 %v165
  %1371 = vmatpush1.msra.mxu0 %v164
  %1372 = vmatprep.subr.mxu0 %v167
  %1373 = vmatpush1.msra.mxu0 %v166
  %1374 = vmatprep.subr.mxu0 0.0
  %1375 = vmatpush1.msra.mxu0 0.0
  %1376 = vmatprep.subr.mxu0 0.0
  %1377 = vmatpush1.msra.mxu0 0.0
  %1378 = vmatprep.subr.mxu0 0.0
  %1379 = vmatpush1.msra.mxu0 0.0
  %1380 = vmatprep.subr.mxu0 0.0
  %1381 = vmatpush1.msra.mxu0 0.0
  %1382 = vmatprep.subr.mxu0 0.0
  %1383 = vmatpush1.msra.mxu0 0.0
  %1384 = vmatprep.subr.mxu0 0.0
  %1385 = vmatpush1.msra.mxu0 0.0
  %1386 = vmatprep.subr.mxu0 0.0
  %1387 = vmatpush1.msra.mxu0 0.0
  %1388 = vmatprep.subr.mxu0 0.0
  %1389 = vmatpush1.msra.mxu0 0.0
  %1390 = vmatprep.subr.mxu0 0.0
  %1391 = vmatpush1.msra.mxu0 0.0
  %1392 = vmatprep.subr.mxu0 0.0
  %1393 = vmatpush1.msra.mxu0 0.0
  %1394 = vmatprep.subr.mxu0 0.0
  %1395 = vmatpush1.msra.mxu0 0.0
  %1396 = vmatprep.subr.mxu0 0.0
  %1397 = vmatpush1.msra.mxu0 0.0
  %1398 = vmatprep.subr.mxu0 0.0
  %1399 = vmatpush1.msra.mxu0 0.0
  %1400 = vmatprep.subr.mxu0 0.0
  %1401 = vmatpush1.msra.mxu0 0.0
  %1402 = vmatprep.subr.mxu0 0.0
  %1403 = vmatpush1.msra.mxu0 0.0
  %1404 = vmatprep.subr.mxu0 0.0
  %1405 = vmatpush1.msra.mxu0 0.0
  %1406 = vmatprep.subr.mxu0 0.0
  %1407 = vmatpush1.msra.mxu0 0.0
  %1408 = vmatprep.subr.mxu0 0.0
  %1409 = vmatpush1.msra.mxu0 0.0
  %1410 = vmatprep.subr.mxu0 0.0
  %1411 = vmatpush1.msra.mxu0 0.0
  %1412 = vmatprep.subr.mxu0 0.0
  %1413 = vmatpush1.msra.mxu0 0.0
  %1414 = vmatprep.subr.mxu0 0.0
  %1415 = vmatpush1.msra.mxu0 0.0
  %1416 = vmatprep.subr.mxu0 0.0
  %1417 = vmatpush1.msra.mxu0 0.0
  %1418 = vmatprep.subr.mxu0 0.0
  %1419 = vmatpush1.msra.mxu0 0.0
  %1420 = vmatprep.subr.mxu0 0.0
  %1421 = vmatpush1.msra.mxu0 0.0
  %1422 = vmatprep.subr.mxu0 0.0
  %1423 = vmatpush1.msra.mxu0 0.0
  %1424 = vmatprep.subr.mxu0 0.0
  %1425 = vmatpush1.msra.mxu0 0.0
  %1426 = vmatprep.subr.mxu0 0.0
  %1427 = vmatpush1.msra.mxu0 0.0
  %1428 = vmatprep.subr.mxu0 0.0
  %1429 = vmatpush1.msra.mxu0 0.0
  %1430 = vmatprep.mubr.f32.mxu0 0.0
  %1431 = vmatmul.mubr.f32.gmra.mrb[0].mxu0 %v1364
  %v1432 = vpop.f32.mrb[0].mxu0
  %v1433 = vadd.f32 0.0, %v1432
  %v1434 = vpop.f32.mrb[0].mxu0
  %v1435 = vadd.f32 0.0, %v1434
  %1436 = vdwg.mxu0
  %v1438 = vsel %vm179, %v1360, 0
  %1440 = vmatprep.subr.mxu0 0.0
  %1441 = vmatpush1.msra.mxu0 %v135
  %1442 = vmatprep.subr.mxu0 0.0
  %1443 = vmatpush1.msra.mxu0 %v140
  %1444 = vmatprep.subr.mxu0 0.0
  %1445 = vmatpush1.msra.mxu0 %v145
  %1446 = vmatprep.subr.mxu0 0.0
  %1447 = vmatpush1.msra.mxu0 %v185
  %1448 = vmatprep.subr.mxu0 0.0
  %1449 = vmatpush1.msra.mxu0 0.0
  %1450 = vmatprep.subr.mxu0 0.0
  %1451 = vmatpush1.msra.mxu0 0.0
  %1452 = vmatprep.subr.mxu0 0.0
  %1453 = vmatpush1.msra.mxu0 0.0
  %1454 = vmatprep.subr.mxu0 0.0
  %1455 = vmatpush1.msra.mxu0 0.0
  %1456 = vmatprep.subr.mxu0 0.0
  %1457 = vmatpush1.msra.mxu0 0.0
  %1458 = vmatprep.subr.mxu0 0.0
  %1459 = vmatpush1.msra.mxu0 0.0
  %1460 = vmatprep.subr.mxu0 0.0
  %1461 = vmatpush1.msra.mxu0 0.0
  %1462 = vmatprep.subr.mxu0 0.0
  %1463 = vmatpush1.msra.mxu0 0.0
  %1464 = vmatprep.subr.mxu0 0.0
  %1465 = vmatpush1.msra.mxu0 0.0
  %1466 = vmatprep.subr.mxu0 0.0
  %1467 = vmatpush1.msra.mxu0 0.0
  %1468 = vmatprep.subr.mxu0 0.0
  %1469 = vmatpush1.msra.mxu0 0.0
  %1470 = vmatprep.subr.mxu0 0.0
  %1471 = vmatpush1.msra.mxu0 0.0
  %1472 = vmatprep.subr.mxu0 0.0
  %1473 = vmatpush1.msra.mxu0 0.0
  %1474 = vmatprep.subr.mxu0 0.0
  %1475 = vmatpush1.msra.mxu0 0.0
  %1476 = vmatprep.subr.mxu0 0.0
  %1477 = vmatpush1.msra.mxu0 0.0
  %1478 = vmatprep.subr.mxu0 0.0
  %1479 = vmatpush1.msra.mxu0 0.0
  %1480 = vmatprep.subr.mxu0 0.0
  %1481 = vmatpush1.msra.mxu0 0.0
  %1482 = vmatprep.subr.mxu0 0.0
  %1483 = vmatpush1.msra.mxu0 0.0
  %1484 = vmatprep.subr.mxu0 0.0
  %1485 = vmatpush1.msra.mxu0 0.0
  %1486 = vmatprep.subr.mxu0 0.0
  %1487 = vmatpush1.msra.mxu0 0.0
  %1488 = vmatprep.subr.mxu0 0.0
  %1489 = vmatpush1.msra.mxu0 0.0
  %1490 = vmatprep.subr.mxu0 0.0
  %1491 = vmatpush1.msra.mxu0 0.0
  %1492 = vmatprep.subr.mxu0 0.0
  %1493 = vmatpush1.msra.mxu0 0.0
  %1494 = vmatprep.subr.mxu0 0.0
  %1495 = vmatpush1.msra.mxu0 0.0
  %1496 = vmatprep.subr.mxu0 0.0
  %1497 = vmatpush1.msra.mxu0 0.0
  %1498 = vmatprep.subr.mxu0 0.0
  %1499 = vmatpush1.msra.mxu0 0.0
  %1500 = vmatprep.subr.mxu0 0.0
  %1501 = vmatpush1.msra.mxu0 0.0
  %1502 = vmatprep.subr.mxu0 0.0
  %1503 = vmatpush1.msra.mxu0 0.0
  %1504 = vmatprep.mubr.f32.mxu0 0.0
  %1505 = vmatmul.mubr.f32.gmra.mrb[0].mxu0 %v1438
  %v1506 = vpop.f32.mrb[0].mxu0
  %v1507 = vadd.f32 %v1433, %v1506
  %v1508 = vpop.f32.mrb[0].mxu0
  %1509 = vdwg.mxu0
  %v1510 = vadd.f32 %v1435, %v444
  %1512 = vrot.lane.b32.xlu0 %v1326, 32
  %v1513 = vpop.permute.xlu0 %1512
  %v1514 = vsel %vm293, %v1513, 0
  %1516 = vmatprep.subr.mxu0 0.0
  %1517 = vmatpush1.msra.mxu0 %v168
  %1518 = vmatprep.subr.mxu0 0.0
  %1519 = vmatpush1.msra.mxu0 %v169
  %1520 = vmatprep.subr.mxu0 0.0
  %1521 = vmatpush1.msra.mxu0 %v170
  %1522 = vmatprep.subr.mxu0 0.0
  %1523 = vmatpush1.msra.mxu0 %v171
  %1524 = vmatprep.subr.mxu0 0.0
  %1525 = vmatpush1.msra.mxu0 0.0
  %1526 = vmatprep.subr.mxu0 0.0
  %1527 = vmatpush1.msra.mxu0 0.0
  %1528 = vmatprep.subr.mxu0 0.0
  %1529 = vmatpush1.msra.mxu0 0.0
  %1530 = vmatprep.subr.mxu0 0.0
  %1531 = vmatpush1.msra.mxu0 0.0
  %1532 = vmatprep.subr.mxu0 0.0
  %1533 = vmatpush1.msra.mxu0 0.0
  %1534 = vmatprep.subr.mxu0 0.0
  %1535 = vmatpush1.msra.mxu0 0.0
  %1536 = vmatprep.subr.mxu0 0.0
  %1537 = vmatpush1.msra.mxu0 0.0
  %1538 = vmatprep.subr.mxu0 0.0
  %1539 = vmatpush1.msra.mxu0 0.0
  %1540 = vmatprep.subr.mxu0 0.0
  %1541 = vmatpush1.msra.mxu0 0.0
  %1542 = vmatprep.subr.mxu0 0.0
  %1543 = vmatpush1.msra.mxu0 0.0
  %1544 = vmatprep.subr.mxu0 0.0
  %1545 = vmatpush1.msra.mxu0 0.0
  %1546 = vmatprep.subr.mxu0 0.0
  %1547 = vmatpush1.msra.mxu0 0.0
  %1548 = vmatprep.subr.mxu0 0.0
  %1549 = vmatpush1.msra.mxu0 0.0
  %1550 = vmatprep.subr.mxu0 0.0
  %1551 = vmatpush1.msra.mxu0 0.0
  %1552 = vmatprep.subr.mxu0 0.0
  %1553 = vmatpush1.msra.mxu0 0.0
  %1554 = vmatprep.subr.mxu0 0.0
  %1555 = vmatpush1.msra.mxu0 0.0
  %1556 = vmatprep.subr.mxu0 0.0
  %1557 = vmatpush1.msra.mxu0 0.0
  %1558 = vmatprep.subr.mxu0 0.0
  %1559 = vmatpush1.msra.mxu0 0.0
  %1560 = vmatprep.subr.mxu0 0.0
  %1561 = vmatpush1.msra.mxu0 0.0
  %1562 = vmatprep.subr.mxu0 0.0
  %1563 = vmatpush1.msra.mxu0 0.0
  %1564 = vmatprep.subr.mxu0 0.0
  %1565 = vmatpush1.msra.mxu0 0.0
  %1566 = vmatprep.subr.mxu0 0.0
  %1567 = vmatpush1.msra.mxu0 0.0
  %1568 = vmatprep.subr.mxu0 0.0
  %1569 = vmatpush1.msra.mxu0 0.0
  %1570 = vmatprep.subr.mxu0 0.0
  %1571 = vmatpush1.msra.mxu0 0.0
  %1572 = vmatprep.subr.mxu0 0.0
  %1573 = vmatpush1.msra.mxu0 0.0
  %1574 = vmatprep.subr.mxu0 0.0
  %1575 = vmatpush1.msra.mxu0 0.0
  %1576 = vmatprep.subr.mxu0 0.0
  %1577 = vmatpush1.msra.mxu0 0.0
  %1578 = vmatprep.subr.mxu0 0.0
  %1579 = vmatpush1.msra.mxu0 0.0
  %1580 = vmatprep.mubr.f32.mxu0 0.0
  %1581 = vmatmul.mubr.f32.gmra.mrb[0].mxu0 %v1514
  %v1582 = vpop.f32.mrb[0].mxu0
  %v1583 = vadd.f32 0.0, %v1582
  %v1584 = vpop.f32.mrb[0].mxu0
  %1585 = vdwg.mxu0
  %v1586 = vadd.f32 %v1510, %v1583
  %v1587 = vxor.u32 %v1586, 2147483648
  %v1588 = vmul.f32 %v1587, 1.442695
  %v1589 = vpow.pop %v1588
  %v1590 = vadd.f32 %v1589, 1.0
  %v1591 = vrcp.pop %v1590
  %v1592 = vmul.f32 1.0, %v1591
  %v1593 = vtanh.pop %v1586
  %v1594 = vmul.f32 %v1592, %v1327
  %1596 = vrot.lane.b32.xlu0 %v1593, 64
  %v1597 = vpop.permute.xlu0 %1596
  %v1599 = vmul.f32 %v1592, %v1597
  %1601 = vrot.lane.b32.xlu0 %v1599, 32
  %v1602 = vpop.permute.xlu0 %1601
  %v1604 = vadd.f32 %v1594, %v1602
  %v1605 = vtanh.pop %v1604
  %1607 = vrot.lane.b32.xlu0 %v1605, 64
  %v1608 = vpop.permute.xlu0 %1607
  %v1610 = vmul.f32 %v1592, %v1608
  %v1611 = vsel %vm1352, %v1610, %v1326
  %v1612 = vsel %vm1352, %v1604, %v1327
  %v1613 = vxor.u32 %v1507, 2147483648
  %v1614 = vmul.f32 %v1613, 1.442695
  %v1615 = vpow.pop %v1614
  %v1616 = vadd.f32 %v1615, 1.0
  %v1617 = vrcp.pop %v1616
  %v1618 = vmul.f32 1.0, %v1617
  %v1619 = vtanh.pop %v1507
  %v1620 = vmul.f32 %v1618, %v1354
  %1622 = vrot.lane.b32.xlu0 %v1619, 64
  %v1623 = vpop.permute.xlu0 %1622
  %v1625 = vmul.f32 %v1618, %v1623
  %1627 = vrot.lane.b32.xlu0 %v1625, 32
  %v1628 = vpop.permute.xlu0 %1627
  %v1630 = vadd.f32 %v1620, %v1628
  %v1631 = vtanh.pop %v1630
  %1633 = vrot.lane.b32.xlu0 %v1631, 64
  %v1634 = vpop.permute.xlu0 %1633
  %v1636 = vmul.f32 %v1618, %v1634
  %vm1637 = vcmp.gt.s32.totalorder %v158, 5
  %v1638 = vsel %vm1637, %v1636, %v1353
  %v1639 = vsel %vm1637, %v1630, %v1354
  %1640 = vset.pattern.permute.xlu0 6
  %1641 = vperm.xlu0 %1640, %v159
  %v1642 = vpop.permute.xlu0 %1641
  %vm1643 = vcmp.eq.s32.totalorder %v1642, %v154
  %v1644 = vsel %vm1643, 1, 0
  %v1645 = vcvt.s32.f32 %v1644
  %1647 = vrot.lane.b32.xlu0 %v1638, 32
  %v1648 = vpop.permute.xlu0 %1647
  %v1649 = vsel %vm293, %v1648, 0
  %1651 = vmatprep.subr.mxu0 %v161
  %1652 = vmatpush1.msra.mxu0 %v160
  %1653 = vmatprep.subr.mxu0 %v163
  %1654 = vmatpush1.msra.mxu0 %v162
  %1655 = vmatprep.subr.mxu0 %v165
  %1656 = vmatpush1.msra.mxu0 %v164
  %1657 = vmatprep.subr.mxu0 %v167
  %1658 = vmatpush1.msra.mxu0 %v166
  %1659 = vmatprep.subr.mxu0 0.0
  %1660 = vmatpush1.msra.mxu0 0.0
  %1661 = vmatprep.subr.mxu0 0.0
  %1662 = vmatpush1.msra.mxu0 0.0
  %1663 = vmatprep.subr.mxu0 0.0
  %1664 = vmatpush1.msra.mxu0 0.0
  %1665 = vmatprep.subr.mxu0 0.0
  %1666 = vmatpush1.msra.mxu0 0.0
  %1667 = vmatprep.subr.mxu0 0.0
  %1668 = vmatpush1.msra.mxu0 0.0
  %1669 = vmatprep.subr.mxu0 0.0
  %1670 = vmatpush1.msra.mxu0 0.0
  %1671 = vmatprep.subr.mxu0 0.0
  %1672 = vmatpush1.msra.mxu0 0.0
  %1673 = vmatprep.subr.mxu0 0.0
  %1674 = vmatpush1.msra.mxu0 0.0
  %1675 = vmatprep.subr.mxu0 0.0
  %1676 = vmatpush1.msra.mxu0 0.0
  %1677 = vmatprep.subr.mxu0 0.0
  %1678 = vmatpush1.msra.mxu0 0.0
  %1679 = vmatprep.subr.mxu0 0.0
  %1680 = vmatpush1.msra.mxu0 0.0
  %1681 = vmatprep.subr.mxu0 0.0
  %1682 = vmatpush1.msra.mxu0 0.0
  %1683 = vmatprep.subr.mxu0 0.0
  %1684 = vmatpush1.msra.mxu0 0.0
  %1685 = vmatprep.subr.mxu0 0.0
  %1686 = vmatpush1.msra.mxu0 0.0
  %1687 = vmatprep.subr.mxu0 0.0
  %1688 = vmatpush1.msra.mxu0 0.0
  %1689 = vmatprep.subr.mxu0 0.0
  %1690 = vmatpush1.msra.mxu0 0.0
  %1691 = vmatprep.subr.mxu0 0.0
  %1692 = vmatpush1.msra.mxu0 0.0
  %1693 = vmatprep.subr.mxu0 0.0
  %1694 = vmatpush1.msra.mxu0 0.0
  %1695 = vmatprep.subr.mxu0 0.0
  %1696 = vmatpush1.msra.mxu0 0.0
  %1697 = vmatprep.subr.mxu0 0.0
  %1698 = vmatpush1.msra.mxu0 0.0
  %1699 = vmatprep.subr.mxu0 0.0
  %1700 = vmatpush1.msra.mxu0 0.0
  %1701 = vmatprep.subr.mxu0 0.0
  %1702 = vmatpush1.msra.mxu0 0.0
  %1703 = vmatprep.subr.mxu0 0.0
  %1704 = vmatpush1.msra.mxu0 0.0
  %1705 = vmatprep.subr.mxu0 0.0
  %1706 = vmatpush1.msra.mxu0 0.0
  %1707 = vmatprep.subr.mxu0 0.0
  %1708 = vmatpush1.msra.mxu0 0.0
  %1709 = vmatprep.subr.mxu0 0.0
  %1710 = vmatpush1.msra.mxu0 0.0
  %1711 = vmatprep.subr.mxu0 0.0
  %1712 = vmatpush1.msra.mxu0 0.0
  %1713 = vmatprep.subr.mxu0 0.0
  %1714 = vmatpush1.msra.mxu0 0.0
  %1715 = vmatprep.mubr.f32.mxu0 0.0
  %1716 = vmatmul.mubr.f32.gmra.mrb[0].mxu0 %v1649
  %v1717 = vpop.f32.mrb[0].mxu0
  %v1718 = vadd.f32 0.0, %v1717
  %v1719 = vpop.f32.mrb[0].mxu0
  %v1720 = vadd.f32 0.0, %v1719
  %1721 = vdwg.mxu0
  %v1723 = vsel %vm179, %v1645, 0
  %1725 = vmatprep.subr.mxu0 0.0
  %1726 = vmatpush1.msra.mxu0 %v135
  %1727 = vmatprep.subr.mxu0 0.0
  %1728 = vmatpush1.msra.mxu0 %v140
  %1729 = vmatprep.subr.mxu0 0.0
  %1730 = vmatpush1.msra.mxu0 %v145
  %1731 = vmatprep.subr.mxu0 0.0
  %1732 = vmatpush1.msra.mxu0 %v185
  %1733 = vmatprep.subr.mxu0 0.0
  %1734 = vmatpush1.msra.mxu0 0.0
  %1735 = vmatprep.subr.mxu0 0.0
  %1736 = vmatpush1.msra.mxu0 0.0
  %1737 = vmatprep.subr.mxu0 0.0
  %1738 = vmatpush1.msra.mxu0 0.0
  %1739 = vmatprep.subr.mxu0 0.0
  %1740 = vmatpush1.msra.mxu0 0.0
  %1741 = vmatprep.subr.mxu0 0.0
  %1742 = vmatpush1.msra.mxu0 0.0
  %1743 = vmatprep.subr.mxu0 0.0
  %1744 = vmatpush1.msra.mxu0 0.0
  %1745 = vmatprep.subr.mxu0 0.0
  %1746 = vmatpush1.msra.mxu0 0.0
  %1747 = vmatprep.subr.mxu0 0.0
  %1748 = vmatpush1.msra.mxu0 0.0
  %1749 = vmatprep.subr.mxu0 0.0
  %1750 = vmatpush1.msra.mxu0 0.0
  %1751 = vmatprep.subr.mxu0 0.0
  %1752 = vmatpush1.msra.mxu0 0.0
  %1753 = vmatprep.subr.mxu0 0.0
  %1754 = vmatpush1.msra.mxu0 0.0
  %1755 = vmatprep.subr.mxu0 0.0
  %1756 = vmatpush1.msra.mxu0 0.0
  %1757 = vmatprep.subr.mxu0 0.0
  %1758 = vmatpush1.msra.mxu0 0.0
  %1759 = vmatprep.subr.mxu0 0.0
  %1760 = vmatpush1.msra.mxu0 0.0
  %1761 = vmatprep.subr.mxu0 0.0
  %1762 = vmatpush1.msra.mxu0 0.0
  %1763 = vmatprep.subr.mxu0 0.0
  %1764 = vmatpush1.msra.mxu0 0.0
  %1765 = vmatprep.subr.mxu0 0.0
  %1766 = vmatpush1.msra.mxu0 0.0
  %1767 = vmatprep.subr.mxu0 0.0
  %1768 = vmatpush1.msra.mxu0 0.0
  %1769 = vmatprep.subr.mxu0 0.0
  %1770 = vmatpush1.msra.mxu0 0.0
  %1771 = vmatprep.subr.mxu0 0.0
  %1772 = vmatpush1.msra.mxu0 0.0
  %1773 = vmatprep.subr.mxu0 0.0
  %1774 = vmatpush1.msra.mxu0 0.0
  %1775 = vmatprep.subr.mxu0 0.0
  %1776 = vmatpush1.msra.mxu0 0.0
  %1777 = vmatprep.subr.mxu0 0.0
  %1778 = vmatpush1.msra.mxu0 0.0
  %1779 = vmatprep.subr.mxu0 0.0
  %1780 = vmatpush1.msra.mxu0 0.0
  %1781 = vmatprep.subr.mxu0 0.0
  %1782 = vmatpush1.msra.mxu0 0.0
  %1783 = vmatprep.subr.mxu0 0.0
  %1784 = vmatpush1.msra.mxu0 0.0
  %1785 = vmatprep.subr.mxu0 0.0
  %1786 = vmatpush1.msra.mxu0 0.0
  %1787 = vmatprep.subr.mxu0 0.0
  %1788 = vmatpush1.msra.mxu0 0.0
  %1789 = vmatprep.mubr.f32.mxu0 0.0
  %1790 = vmatmul.mubr.f32.gmra.mrb[0].mxu0 %v1723
  %v1791 = vpop.f32.mrb[0].mxu0
  %v1792 = vadd.f32 %v1718, %v1791
  %v1793 = vpop.f32.mrb[0].mxu0
  %1794 = vdwg.mxu0
  %v1795 = vadd.f32 %v1720, %v444
  %1797 = vrot.lane.b32.xlu0 %v1611, 32
  %v1798 = vpop.permute.xlu0 %1797
  %v1799 = vsel %vm293, %v1798, 0
  %1801 = vmatprep.subr.mxu0 0.0
  %1802 = vmatpush1.msra.mxu0 %v168
  %1803 = vmatprep.subr.mxu0 0.0
  %1804 = vmatpush1.msra.mxu0 %v169
  %1805 = vmatprep.subr.mxu0 0.0
  %1806 = vmatpush1.msra.mxu0 %v170
  %1807 = vmatprep.subr.mxu0 0.0
  %1808 = vmatpush1.msra.mxu0 %v171
  %1809 = vmatprep.subr.mxu0 0.0
  %1810 = vmatpush1.msra.mxu0 0.0
  %1811 = vmatprep.subr.mxu0 0.0
  %1812 = vmatpush1.msra.mxu0 0.0
  %1813 = vmatprep.subr.mxu0 0.0
  %1814 = vmatpush1.msra.mxu0 0.0
  %1815 = vmatprep.subr.mxu0 0.0
  %1816 = vmatpush1.msra.mxu0 0.0
  %1817 = vmatprep.subr.mxu0 0.0
  %1818 = vmatpush1.msra.mxu0 0.0
  %1819 = vmatprep.subr.mxu0 0.0
  %1820 = vmatpush1.msra.mxu0 0.0
  %1821 = vmatprep.subr.mxu0 0.0
  %1822 = vmatpush1.msra.mxu0 0.0
  %1823 = vmatprep.subr.mxu0 0.0
  %1824 = vmatpush1.msra.mxu0 0.0
  %1825 = vmatprep.subr.mxu0 0.0
  %1826 = vmatpush1.msra.mxu0 0.0
  %1827 = vmatprep.subr.mxu0 0.0
  %1828 = vmatpush1.msra.mxu0 0.0
  %1829 = vmatprep.subr.mxu0 0.0
  %1830 = vmatpush1.msra.mxu0 0.0
  %1831 = vmatprep.subr.mxu0 0.0
  %1832 = vmatpush1.msra.mxu0 0.0
  %1833 = vmatprep.subr.mxu0 0.0
  %1834 = vmatpush1.msra.mxu0 0.0
  %1835 = vmatprep.subr.mxu0 0.0
  %1836 = vmatpush1.msra.mxu0 0.0
  %1837 = vmatprep.subr.mxu0 0.0
  %1838 = vmatpush1.msra.mxu0 0.0
  %1839 = vmatprep.subr.mxu0 0.0
  %1840 = vmatpush1.msra.mxu0 0.0
  %1841 = vmatprep.subr.mxu0 0.0
  %1842 = vmatpush1.msra.mxu0 0.0
  %1843 = vmatprep.subr.mxu0 0.0
  %1844 = vmatpush1.msra.mxu0 0.0
  %1845 = vmatprep.subr.mxu0 0.0
  %1846 = vmatpush1.msra.mxu0 0.0
  %1847 = vmatprep.subr.mxu0 0.0
  %1848 = vmatpush1.msra.mxu0 0.0
  %1849 = vmatprep.subr.mxu0 0.0
  %1850 = vmatpush1.msra.mxu0 0.0
  %1851 = vmatprep.subr.mxu0 0.0
  %1852 = vmatpush1.msra.mxu0 0.0
  %1853 = vmatprep.subr.mxu0 0.0
  %1854 = vmatpush1.msra.mxu0 0.0
  %1855 = vmatprep.subr.mxu0 0.0
  %1856 = vmatpush1.msra.mxu0 0.0
  %1857 = vmatprep.subr.mxu0 0.0
  %1858 = vmatpush1.msra.mxu0 0.0
  %1859 = vmatprep.subr.mxu0 0.0
  %1860 = vmatpush1.msra.mxu0 0.0
  %1861 = vmatprep.subr.mxu0 0.0
  %1862 = vmatpush1.msra.mxu0 0.0
  %1863 = vmatprep.subr.mxu0 0.0
  %1864 = vmatpush1.msra.mxu0 0.0
  %1865 = vmatprep.mubr.f32.mxu0 0.0
  %1866 = vmatmul.mubr.f32.gmra.mrb[0].mxu0 %v1799
  %v1867 = vpop.f32.mrb[0].mxu0
  %v1868 = vadd.f32 0.0, %v1867
  %v1869 = vpop.f32.mrb[0].mxu0
  %1870 = vdwg.mxu0
  %v1871 = vadd.f32 %v1795, %v1868
  %v1872 = vxor.u32 %v1871, 2147483648
  %v1873 = vmul.f32 %v1872, 1.442695
  %v1874 = vpow.pop %v1873
  %v1875 = vadd.f32 %v1874, 1.0
  %v1876 = vrcp.pop %v1875
  %v1877 = vmul.f32 1.0, %v1876
  %v1878 = vtanh.pop %v1871
  %v1879 = vmul.f32 %v1877, %v1612
  %1881 = vrot.lane.b32.xlu0 %v1878, 64
  %v1882 = vpop.permute.xlu0 %1881
  %v1884 = vmul.f32 %v1877, %v1882
  %1886 = vrot.lane.b32.xlu0 %v1884, 32
  %v1887 = vpop.permute.xlu0 %1886
  %v1889 = vadd.f32 %v1879, %v1887
  %v1890 = vtanh.pop %v1889
  %1892 = vrot.lane.b32.xlu0 %v1890, 64
  %v1893 = vpop.permute.xlu0 %1892
  %v1895 = vmul.f32 %v1877, %v1893
  %v1896 = vsel %vm1637, %v1895, %v1611
  %v1897 = vsel %vm1637, %v1889, %v1612
  %v1898 = vxor.u32 %v1792, 2147483648
  %v1899 = vmul.f32 %v1898, 1.442695
  %v1900 = vpow.pop %v1899
  %v1901 = vadd.f32 %v1900, 1.0
  %v1902 = vrcp.pop %v1901
  %v1903 = vmul.f32 1.0, %v1902
  %v1904 = vtanh.pop %v1792
  %v1905 = vmul.f32 %v1903, %v1639
  %1907 = vrot.lane.b32.xlu0 %v1904, 64
  %v1908 = vpop.permute.xlu0 %1907
  %v1910 = vmul.f32 %v1903, %v1908
  %1912 = vrot.lane.b32.xlu0 %v1910, 32
  %v1913 = vpop.permute.xlu0 %1912
  %v1915 = vadd.f32 %v1905, %v1913
  %v1916 = vtanh.pop %v1915
  %1918 = vrot.lane.b32.xlu0 %v1916, 64
  %v1919 = vpop.permute.xlu0 %1918
  %v1921 = vmul.f32 %v1903, %v1919
  %vm1922 = vcmp.gt.s32.totalorder %v158, 6
  %v1923 = vsel %vm1922, %v1921, %v1638
  %v1924 = vsel %vm1922, %v1915, %v1639
  %1925 = vset.pattern.permute.xlu0 7
  %1926 = vperm.xlu0 %1925, %v159
  %v1927 = vpop.permute.xlu0 %1926
  %vm1928 = vcmp.eq.s32.totalorder %v1927, %v154
  %v1929 = vsel %vm1928, 1, 0
  %v1930 = vcvt.s32.f32 %v1929
  %1932 = vrot.lane.b32.xlu0 %v1923, 32
  %v1933 = vpop.permute.xlu0 %1932
  %v1934 = vsel %vm293, %v1933, 0
  %1936 = vmatprep.subr.mxu0 %v161
  %1937 = vmatpush1.msra.mxu0 %v160
  %1938 = vmatprep.subr.mxu0 %v163
  %1939 = vmatpush1.msra.mxu0 %v162
  %1940 = vmatprep.subr.mxu0 %v165
  %1941 = vmatpush1.msra.mxu0 %v164
  %1942 = vmatprep.subr.mxu0 %v167
  %1943 = vmatpush1.msra.mxu0 %v166
  %1944 = vmatprep.subr.mxu0 0.0
  %1945 = vmatpush1.msra.mxu0 0.0
  %1946 = vmatprep.subr.mxu0 0.0
  %1947 = vmatpush1.msra.mxu0 0.0
  %1948 = vmatprep.subr.mxu0 0.0
  %1949 = vmatpush1.msra.mxu0 0.0
  %1950 = vmatprep.subr.mxu0 0.0
  %1951 = vmatpush1.msra.mxu0 0.0
  %1952 = vmatprep.subr.mxu0 0.0
  %1953 = vmatpush1.msra.mxu0 0.0
  %1954 = vmatprep.subr.mxu0 0.0
  %1955 = vmatpush1.msra.mxu0 0.0
  %1956 = vmatprep.subr.mxu0 0.0
  %1957 = vmatpush1.msra.mxu0 0.0
  %1958 = vmatprep.subr.mxu0 0.0
  %1959 = vmatpush1.msra.mxu0 0.0
  %1960 = vmatprep.subr.mxu0 0.0
  %1961 = vmatpush1.msra.mxu0 0.0
  %1962 = vmatprep.subr.mxu0 0.0
  %1963 = vmatpush1.msra.mxu0 0.0
  %1964 = vmatprep.subr.mxu0 0.0
  %1965 = vmatpush1.msra.mxu0 0.0
  %1966 = vmatprep.subr.mxu0 0.0
  %1967 = vmatpush1.msra.mxu0 0.0
  %1968 = vmatprep.subr.mxu0 0.0
  %1969 = vmatpush1.msra.mxu0 0.0
  %1970 = vmatprep.subr.mxu0 0.0
  %1971 = vmatpush1.msra.mxu0 0.0
  %1972 = vmatprep.subr.mxu0 0.0
  %1973 = vmatpush1.msra.mxu0 0.0
  %1974 = vmatprep.subr.mxu0 0.0
  %1975 = vmatpush1.msra.mxu0 0.0
  %1976 = vmatprep.subr.mxu0 0.0
  %1977 = vmatpush1.msra.mxu0 0.0
  %1978 = vmatprep.subr.mxu0 0.0
  %1979 = vmatpush1.msra.mxu0 0.0
  %1980 = vmatprep.subr.mxu0 0.0
  %1981 = vmatpush1.msra.mxu0 0.0
  %1982 = vmatprep.subr.mxu0 0.0
  %1983 = vmatpush1.msra.mxu0 0.0
  %1984 = vmatprep.subr.mxu0 0.0
  %1985 = vmatpush1.msra.mxu0 0.0
  %1986 = vmatprep.subr.mxu0 0.0
  %1987 = vmatpush1.msra.mxu0 0.0
  %1988 = vmatprep.subr.mxu0 0.0
  %1989 = vmatpush1.msra.mxu0 0.0
  %1990 = vmatprep.subr.mxu0 0.0
  %1991 = vmatpush1.msra.mxu0 0.0
  %1992 = vmatprep.subr.mxu0 0.0
  %1993 = vmatpush1.msra.mxu0 0.0
  %1994 = vmatprep.subr.mxu0 0.0
  %1995 = vmatpush1.msra.mxu0 0.0
  %1996 = vmatprep.subr.mxu0 0.0
  %1997 = vmatpush1.msra.mxu0 0.0
  %1998 = vmatprep.subr.mxu0 0.0
  %1999 = vmatpush1.msra.mxu0 0.0
  %2000 = vmatprep.mubr.f32.mxu0 0.0
  %2001 = vmatmul.mubr.f32.gmra.mrb[0].mxu0 %v1934
  %v2002 = vpop.f32.mrb[0].mxu0
  %v2003 = vadd.f32 0.0, %v2002
  %v2004 = vpop.f32.mrb[0].mxu0
  %v2005 = vadd.f32 0.0, %v2004
  %2006 = vdwg.mxu0
  %v2008 = vsel %vm179, %v1930, 0
  %2010 = vmatprep.subr.mxu0 0.0
  %2011 = vmatpush1.msra.mxu0 %v135
  %2012 = vmatprep.subr.mxu0 0.0
  %2013 = vmatpush1.msra.mxu0 %v140
  %2014 = vmatprep.subr.mxu0 0.0
  %2015 = vmatpush1.msra.mxu0 %v145
  %2016 = vmatprep.subr.mxu0 0.0
  %2017 = vmatpush1.msra.mxu0 %v185
  %2018 = vmatprep.subr.mxu0 0.0
  %2019 = vmatpush1.msra.mxu0 0.0
  %2020 = vmatprep.subr.mxu0 0.0
  %2021 = vmatpush1.msra.mxu0 0.0
  %2022 = vmatprep.subr.mxu0 0.0
  %2023 = vmatpush1.msra.mxu0 0.0
  %2024 = vmatprep.subr.mxu0 0.0
  %2025 = vmatpush1.msra.mxu0 0.0
  %2026 = vmatprep.subr.mxu0 0.0
  %2027 = vmatpush1.msra.mxu0 0.0
  %2028 = vmatprep.subr.mxu0 0.0
  %2029 = vmatpush1.msra.mxu0 0.0
  %2030 = vmatprep.subr.mxu0 0.0
  %2031 = vmatpush1.msra.mxu0 0.0
  %2032 = vmatprep.subr.mxu0 0.0
  %2033 = vmatpush1.msra.mxu0 0.0
  %2034 = vmatprep.subr.mxu0 0.0
  %2035 = vmatpush1.msra.mxu0 0.0
  %2036 = vmatprep.subr.mxu0 0.0
  %2037 = vmatpush1.msra.mxu0 0.0
  %2038 = vmatprep.subr.mxu0 0.0
  %2039 = vmatpush1.msra.mxu0 0.0
  %2040 = vmatprep.subr.mxu0 0.0
  %2041 = vmatpush1.msra.mxu0 0.0
  %2042 = vmatprep.subr.mxu0 0.0
  %2043 = vmatpush1.msra.mxu0 0.0
  %2044 = vmatprep.subr.mxu0 0.0
  %2045 = vmatpush1.msra.mxu0 0.0
  %2046 = vmatprep.subr.mxu0 0.0
  %2047 = vmatpush1.msra.mxu0 0.0
  %2048 = vmatprep.subr.mxu0 0.0
  %2049 = vmatpush1.msra.mxu0 0.0
  %2050 = vmatprep.subr.mxu0 0.0
  %2051 = vmatpush1.msra.mxu0 0.0
  %2052 = vmatprep.subr.mxu0 0.0
  %2053 = vmatpush1.msra.mxu0 0.0
  %2054 = vmatprep.subr.mxu0 0.0
  %2055 = vmatpush1.msra.mxu0 0.0
  %2056 = vmatprep.subr.mxu0 0.0
  %2057 = vmatpush1.msra.mxu0 0.0
  %2058 = vmatprep.subr.mxu0 0.0
  %2059 = vmatpush1.msra.mxu0 0.0
  %2060 = vmatprep.subr.mxu0 0.0
  %2061 = vmatpush1.msra.mxu0 0.0
  %2062 = vmatprep.subr.mxu0 0.0
  %2063 = vmatpush1.msra.mxu0 0.0
  %2064 = vmatprep.subr.mxu0 0.0
  %2065 = vmatpush1.msra.mxu0 0.0
  %2066 = vmatprep.subr.mxu0 0.0
  %2067 = vmatpush1.msra.mxu0 0.0
  %2068 = vmatprep.subr.mxu0 0.0
  %2069 = vmatpush1.msra.mxu0 0.0
  %2070 = vmatprep.subr.mxu0 0.0
  %2071 = vmatpush1.msra.mxu0 0.0
  %2072 = vmatprep.subr.mxu0 0.0
  %2073 = vmatpush1.msra.mxu0 0.0
  %2074 = vmatprep.mubr.f32.mxu0 0.0
  %2075 = vmatmul.mubr.f32.gmra.mrb[0].mxu0 %v2008
  %v2076 = vpop.f32.mrb[0].mxu0
  %v2077 = vadd.f32 %v2003, %v2076
  %v2078 = vpop.f32.mrb[0].mxu0
  %2079 = vdwg.mxu0
  %v2080 = vadd.f32 %v2005, %v444
  %2082 = vrot.lane.b32.xlu0 %v1896, 32
  %v2083 = vpop.permute.xlu0 %2082
  %v2084 = vsel %vm293, %v2083, 0
  %2086 = vmatprep.subr.mxu0 0.0
  %2087 = vmatpush1.msra.mxu0 %v168
  %2088 = vmatprep.subr.mxu0 0.0
  %2089 = vmatpush1.msra.mxu0 %v169
  %2090 = vmatprep.subr.mxu0 0.0
  %2091 = vmatpush1.msra.mxu0 %v170
  %2092 = vmatprep.subr.mxu0 0.0
  %2093 = vmatpush1.msra.mxu0 %v171
  %2094 = vmatprep.subr.mxu0 0.0
  %2095 = vmatpush1.msra.mxu0 0.0
  %2096 = vmatprep.subr.mxu0 0.0
  %2097 = vmatpush1.msra.mxu0 0.0
  %2098 = vmatprep.subr.mxu0 0.0
  %2099 = vmatpush1.msra.mxu0 0.0
  %2100 = vmatprep.subr.mxu0 0.0
  %2101 = vmatpush1.msra.mxu0 0.0
  %2102 = vmatprep.subr.mxu0 0.0
  %2103 = vmatpush1.msra.mxu0 0.0
  %2104 = vmatprep.subr.mxu0 0.0
  %2105 = vmatpush1.msra.mxu0 0.0
  %2106 = vmatprep.subr.mxu0 0.0
  %2107 = vmatpush1.msra.mxu0 0.0
  %2108 = vmatprep.subr.mxu0 0.0
  %2109 = vmatpush1.msra.mxu0 0.0
  %2110 = vmatprep.subr.mxu0 0.0
  %2111 = vmatpush1.msra.mxu0 0.0
  %2112 = vmatprep.subr.mxu0 0.0
  %2113 = vmatpush1.msra.mxu0 0.0
  %2114 = vmatprep.subr.mxu0 0.0
  %2115 = vmatpush1.msra.mxu0 0.0
  %2116 = vmatprep.subr.mxu0 0.0
  %2117 = vmatpush1.msra.mxu0 0.0
  %2118 = vmatprep.subr.mxu0 0.0
  %2119 = vmatpush1.msra.mxu0 0.0
  %2120 = vmatprep.subr.mxu0 0.0
  %2121 = vmatpush1.msra.mxu0 0.0
  %2122 = vmatprep.subr.mxu0 0.0
  %2123 = vmatpush1.msra.mxu0 0.0
  %2124 = vmatprep.subr.mxu0 0.0
  %2125 = vmatpush1.msra.mxu0 0.0
  %2126 = vmatprep.subr.mxu0 0.0
  %2127 = vmatpush1.msra.mxu0 0.0
  %2128 = vmatprep.subr.mxu0 0.0
  %2129 = vmatpush1.msra.mxu0 0.0
  %2130 = vmatprep.subr.mxu0 0.0
  %2131 = vmatpush1.msra.mxu0 0.0
  %2132 = vmatprep.subr.mxu0 0.0
  %2133 = vmatpush1.msra.mxu0 0.0
  %2134 = vmatprep.subr.mxu0 0.0
  %2135 = vmatpush1.msra.mxu0 0.0
  %2136 = vmatprep.subr.mxu0 0.0
  %2137 = vmatpush1.msra.mxu0 0.0
  %2138 = vmatprep.subr.mxu0 0.0
  %2139 = vmatpush1.msra.mxu0 0.0
  %2140 = vmatprep.subr.mxu0 0.0
  %2141 = vmatpush1.msra.mxu0 0.0
  %2142 = vmatprep.subr.mxu0 0.0
  %2143 = vmatpush1.msra.mxu0 0.0
  %2144 = vmatprep.subr.mxu0 0.0
  %2145 = vmatpush1.msra.mxu0 0.0
  %2146 = vmatprep.subr.mxu0 0.0
  %2147 = vmatpush1.msra.mxu0 0.0
  %2148 = vmatprep.subr.mxu0 0.0
  %2149 = vmatpush1.msra.mxu0 0.0
  %2150 = vmatprep.mubr.f32.mxu0 0.0
  %2151 = vmatmul.mubr.f32.gmra.mrb[0].mxu0 %v2084
  %v2152 = vpop.f32.mrb[0].mxu0
  %v2153 = vadd.f32 0.0, %v2152
  %v2154 = vpop.f32.mrb[0].mxu0
  %2155 = vdwg.mxu0
  %v2156 = vadd.f32 %v2080, %v2153
  %v2157 = vxor.u32 %v2156, 2147483648
  %v2158 = vmul.f32 %v2157, 1.442695
  %v2159 = vpow.pop %v2158
  %v2160 = vadd.f32 %v2159, 1.0
  %v2161 = vrcp.pop %v2160
  %v2162 = vmul.f32 1.0, %v2161
  %v2163 = vtanh.pop %v2156
  %v2164 = vmul.f32 %v2162, %v1897
  %2166 = vrot.lane.b32.xlu0 %v2163, 64
  %v2167 = vpop.permute.xlu0 %2166
  %v2169 = vmul.f32 %v2162, %v2167
  %2171 = vrot.lane.b32.xlu0 %v2169, 32
  %v2172 = vpop.permute.xlu0 %2171
  %v2174 = vadd.f32 %v2164, %v2172
  %v2175 = vtanh.pop %v2174
  %2177 = vrot.lane.b32.xlu0 %v2175, 64
  %v2178 = vpop.permute.xlu0 %2177
  %v2180 = vmul.f32 %v2162, %v2178
  %v2181 = vsel %vm1922, %v2180, %v1896
  %v2182 = vsel %vm1922, %v2174, %v1897
  %v2183 = vxor.u32 %v2077, 2147483648
  %v2184 = vmul.f32 %v2183, 1.442695
  %v2185 = vpow.pop %v2184
  %v2186 = vadd.f32 %v2185, 1.0
  %v2187 = vrcp.pop %v2186
  %v2188 = vmul.f32 1.0, %v2187
  %v2189 = vtanh.pop %v2077
  %v2190 = vmul.f32 %v2188, %v1924
  %2192 = vrot.lane.b32.xlu0 %v2189, 64
  %v2193 = vpop.permute.xlu0 %2192
  %v2195 = vmul.f32 %v2188, %v2193
  %2197 = vrot.lane.b32.xlu0 %v2195, 32
  %v2198 = vpop.permute.xlu0 %2197
  %v2200 = vadd.f32 %v2190, %v2198
  %v2201 = vtanh.pop %v2200
  %2203 = vrot.lane.b32.xlu0 %v2201, 64
  %v2204 = vpop.permute.xlu0 %2203
  %v2206 = vmul.f32 %v2188, %v2204
  %vm2207 = vcmp.gt.s32.totalorder %v158, 7
  %v2208 = vsel %vm2207, %v2206, %v1923
  %v2209 = vsel %vm2207, %v2200, %v1924
  %2210 = vset.pattern.permute.xlu0 8
  %2211 = vperm.xlu0 %2210, %v159
  %v2212 = vpop.permute.xlu0 %2211
  %vm2213 = vcmp.eq.s32.totalorder %v2212, %v154
  %v2214 = vsel %vm2213, 1, 0
  %v2215 = vcvt.s32.f32 %v2214
  %2217 = vrot.lane.b32.xlu0 %v2208, 32
  %v2218 = vpop.permute.xlu0 %2217
  %v2219 = vsel %vm293, %v2218, 0
  %2221 = vmatprep.subr.mxu0 %v161
  %2222 = vmatpush1.msra.mxu0 %v160
  %2223 = vmatprep.subr.mxu0 %v163
  %2224 = vmatpush1.msra.mxu0 %v162
  %2225 = vmatprep.subr.mxu0 %v165
  %2226 = vmatpush1.msra.mxu0 %v164
  %2227 = vmatprep.subr.mxu0 %v167
  %2228 = vmatpush1.msra.mxu0 %v166
  %2229 = vmatprep.subr.mxu0 0.0
  %2230 = vmatpush1.msra.mxu0 0.0
  %2231 = vmatprep.subr.mxu0 0.0
  %2232 = vmatpush1.msra.mxu0 0.0
  %2233 = vmatprep.subr.mxu0 0.0
  %2234 = vmatpush1.msra.mxu0 0.0
  %2235 = vmatprep.subr.mxu0 0.0
  %2236 = vmatpush1.msra.mxu0 0.0
  %2237 = vmatprep.subr.mxu0 0.0
  %2238 = vmatpush1.msra.mxu0 0.0
  %2239 = vmatprep.subr.mxu0 0.0
  %2240 = vmatpush1.msra.mxu0 0.0
  %2241 = vmatprep.subr.mxu0 0.0
  %2242 = vmatpush1.msra.mxu0 0.0
  %2243 = vmatprep.subr.mxu0 0.0
  %2244 = vmatpush1.msra.mxu0 0.0
  %2245 = vmatprep.subr.mxu0 0.0
  %2246 = vmatpush1.msra.mxu0 0.0
  %2247 = vmatprep.subr.mxu0 0.0
  %2248 = vmatpush1.msra.mxu0 0.0
  %2249 = vmatprep.subr.mxu0 0.0
  %2250 = vmatpush1.msra.mxu0 0.0
  %2251 = vmatprep.subr.mxu0 0.0
  %2252 = vmatpush1.msra.mxu0 0.0
  %2253 = vmatprep.subr.mxu0 0.0
  %2254 = vmatpush1.msra.mxu0 0.0
  %2255 = vmatprep.subr.mxu0 0.0
  %2256 = vmatpush1.msra.mxu0 0.0
  %2257 = vmatprep.subr.mxu0 0.0
  %2258 = vmatpush1.msra.mxu0 0.0
  %2259 = vmatprep.subr.mxu0 0.0
  %2260 = vmatpush1.msra.mxu0 0.0
  %2261 = vmatprep.subr.mxu0 0.0
  %2262 = vmatpush1.msra.mxu0 0.0
  %2263 = vmatprep.subr.mxu0 0.0
  %2264 = vmatpush1.msra.mxu0 0.0
  %2265 = vmatprep.subr.mxu0 0.0
  %2266 = vmatpush1.msra.mxu0 0.0
  %2267 = vmatprep.subr.mxu0 0.0
  %2268 = vmatpush1.msra.mxu0 0.0
  %2269 = vmatprep.subr.mxu0 0.0
  %2270 = vmatpush1.msra.mxu0 0.0
  %2271 = vmatprep.subr.mxu0 0.0
  %2272 = vmatpush1.msra.mxu0 0.0
  %2273 = vmatprep.subr.mxu0 0.0
  %2274 = vmatpush1.msra.mxu0 0.0
  %2275 = vmatprep.subr.mxu0 0.0
  %2276 = vmatpush1.msra.mxu0 0.0
  %2277 = vmatprep.subr.mxu0 0.0
  %2278 = vmatpush1.msra.mxu0 0.0
  %2279 = vmatprep.subr.mxu0 0.0
  %2280 = vmatpush1.msra.mxu0 0.0
  %2281 = vmatprep.subr.mxu0 0.0
  %2282 = vmatpush1.msra.mxu0 0.0
  %2283 = vmatprep.subr.mxu0 0.0
  %2284 = vmatpush1.msra.mxu0 0.0
  %2285 = vmatprep.mubr.f32.mxu0 0.0
  %2286 = vmatmul.mubr.f32.gmra.mrb[0].mxu0 %v2219
  %v2287 = vpop.f32.mrb[0].mxu0
  %v2288 = vadd.f32 0.0, %v2287
  %v2289 = vpop.f32.mrb[0].mxu0
  %v2290 = vadd.f32 0.0, %v2289
  %2291 = vdwg.mxu0
  %v2293 = vsel %vm179, %v2215, 0
  %2295 = vmatprep.subr.mxu0 0.0
  %2296 = vmatpush1.msra.mxu0 %v135
  %2297 = vmatprep.subr.mxu0 0.0
  %2298 = vmatpush1.msra.mxu0 %v140
  %2299 = vmatprep.subr.mxu0 0.0
  %2300 = vmatpush1.msra.mxu0 %v145
  %2301 = vmatprep.subr.mxu0 0.0
  %2302 = vmatpush1.msra.mxu0 %v185
  %2303 = vmatprep.subr.mxu0 0.0
  %2304 = vmatpush1.msra.mxu0 0.0
  %2305 = vmatprep.subr.mxu0 0.0
  %2306 = vmatpush1.msra.mxu0 0.0
  %2307 = vmatprep.subr.mxu0 0.0
  %2308 = vmatpush1.msra.mxu0 0.0
  %2309 = vmatprep.subr.mxu0 0.0
  %2310 = vmatpush1.msra.mxu0 0.0
  %2311 = vmatprep.subr.mxu0 0.0
  %2312 = vmatpush1.msra.mxu0 0.0
  %2313 = vmatprep.subr.mxu0 0.0
  %2314 = vmatpush1.msra.mxu0 0.0
  %2315 = vmatprep.subr.mxu0 0.0
  %2316 = vmatpush1.msra.mxu0 0.0
  %2317 = vmatprep.subr.mxu0 0.0
  %2318 = vmatpush1.msra.mxu0 0.0
  %2319 = vmatprep.subr.mxu0 0.0
  %2320 = vmatpush1.msra.mxu0 0.0
  %2321 = vmatprep.subr.mxu0 0.0
  %2322 = vmatpush1.msra.mxu0 0.0
  %2323 = vmatprep.subr.mxu0 0.0
  %2324 = vmatpush1.msra.mxu0 0.0
  %2325 = vmatprep.subr.mxu0 0.0
  %2326 = vmatpush1.msra.mxu0 0.0
  %2327 = vmatprep.subr.mxu0 0.0
  %2328 = vmatpush1.msra.mxu0 0.0
  %2329 = vmatprep.subr.mxu0 0.0
  %2330 = vmatpush1.msra.mxu0 0.0
  %2331 = vmatprep.subr.mxu0 0.0
  %2332 = vmatpush1.msra.mxu0 0.0
  %2333 = vmatprep.subr.mxu0 0.0
  %2334 = vmatpush1.msra.mxu0 0.0
  %2335 = vmatprep.subr.mxu0 0.0
  %2336 = vmatpush1.msra.mxu0 0.0
  %2337 = vmatprep.subr.mxu0 0.0
  %2338 = vmatpush1.msra.mxu0 0.0
  %2339 = vmatprep.subr.mxu0 0.0
  %2340 = vmatpush1.msra.mxu0 0.0
  %2341 = vmatprep.subr.mxu0 0.0
  %2342 = vmatpush1.msra.mxu0 0.0
  %2343 = vmatprep.subr.mxu0 0.0
  %2344 = vmatpush1.msra.mxu0 0.0
  %2345 = vmatprep.subr.mxu0 0.0
  %2346 = vmatpush1.msra.mxu0 0.0
  %2347 = vmatprep.subr.mxu0 0.0
  %2348 = vmatpush1.msra.mxu0 0.0
  %2349 = vmatprep.subr.mxu0 0.0
  %2350 = vmatpush1.msra.mxu0 0.0
  %2351 = vmatprep.subr.mxu0 0.0
  %2352 = vmatpush1.msra.mxu0 0.0
  %2353 = vmatprep.subr.mxu0 0.0
  %2354 = vmatpush1.msra.mxu0 0.0
  %2355 = vmatprep.subr.mxu0 0.0
  %2356 = vmatpush1.msra.mxu0 0.0
  %2357 = vmatprep.subr.mxu0 0.0
  %2358 = vmatpush1.msra.mxu0 0.0
  %2359 = vmatprep.mubr.f32.mxu0 0.0
  %2360 = vmatmul.mubr.f32.gmra.mrb[0].mxu0 %v2293
  %v2361 = vpop.f32.mrb[0].mxu0
  %v2362 = vadd.f32 %v2288, %v2361
  %v2363 = vpop.f32.mrb[0].mxu0
  %2364 = vdwg.mxu0
  %v2365 = vadd.f32 %v2290, %v444
  %2367 = vrot.lane.b32.xlu0 %v2181, 32
  %v2368 = vpop.permute.xlu0 %2367
  %v2369 = vsel %vm293, %v2368, 0
  %2371 = vmatprep.subr.mxu0 0.0
  %2372 = vmatpush1.msra.mxu0 %v168
  %2373 = vmatprep.subr.mxu0 0.0
  %2374 = vmatpush1.msra.mxu0 %v169
  %2375 = vmatprep.subr.mxu0 0.0
  %2376 = vmatpush1.msra.mxu0 %v170
  %2377 = vmatprep.subr.mxu0 0.0
  %2378 = vmatpush1.msra.mxu0 %v171
  %2379 = vmatprep.subr.mxu0 0.0
  %2380 = vmatpush1.msra.mxu0 0.0
  %2381 = vmatprep.subr.mxu0 0.0
  %2382 = vmatpush1.msra.mxu0 0.0
  %2383 = vmatprep.subr.mxu0 0.0
  %2384 = vmatpush1.msra.mxu0 0.0
  %2385 = vmatprep.subr.mxu0 0.0
  %2386 = vmatpush1.msra.mxu0 0.0
  %2387 = vmatprep.subr.mxu0 0.0
  %2388 = vmatpush1.msra.mxu0 0.0
  %2389 = vmatprep.subr.mxu0 0.0
  %2390 = vmatpush1.msra.mxu0 0.0
  %2391 = vmatprep.subr.mxu0 0.0
  %2392 = vmatpush1.msra.mxu0 0.0
  %2393 = vmatprep.subr.mxu0 0.0
  %2394 = vmatpush1.msra.mxu0 0.0
  %2395 = vmatprep.subr.mxu0 0.0
  %2396 = vmatpush1.msra.mxu0 0.0
  %2397 = vmatprep.subr.mxu0 0.0
  %2398 = vmatpush1.msra.mxu0 0.0
  %2399 = vmatprep.subr.mxu0 0.0
  %2400 = vmatpush1.msra.mxu0 0.0
  %2401 = vmatprep.subr.mxu0 0.0
  %2402 = vmatpush1.msra.mxu0 0.0
  %2403 = vmatprep.subr.mxu0 0.0
  %2404 = vmatpush1.msra.mxu0 0.0
  %2405 = vmatprep.subr.mxu0 0.0
  %2406 = vmatpush1.msra.mxu0 0.0
  %2407 = vmatprep.subr.mxu0 0.0
  %2408 = vmatpush1.msra.mxu0 0.0
  %2409 = vmatprep.subr.mxu0 0.0
  %2410 = vmatpush1.msra.mxu0 0.0
  %2411 = vmatprep.subr.mxu0 0.0
  %2412 = vmatpush1.msra.mxu0 0.0
  %2413 = vmatprep.subr.mxu0 0.0
  %2414 = vmatpush1.msra.mxu0 0.0
  %2415 = vmatprep.subr.mxu0 0.0
  %2416 = vmatpush1.msra.mxu0 0.0
  %2417 = vmatprep.subr.mxu0 0.0
  %2418 = vmatpush1.msra.mxu0 0.0
  %2419 = vmatprep.subr.mxu0 0.0
  %2420 = vmatpush1.msra.mxu0 0.0
  %2421 = vmatprep.subr.mxu0 0.0
  %2422 = vmatpush1.msra.mxu0 0.0
  %2423 = vmatprep.subr.mxu0 0.0
  %2424 = vmatpush1.msra.mxu0 0.0
  %2425 = vmatprep.subr.mxu0 0.0
  %2426 = vmatpush1.msra.mxu0 0.0
  %2427 = vmatprep.subr.mxu0 0.0
  %2428 = vmatpush1.msra.mxu0 0.0
  %2429 = vmatprep.subr.mxu0 0.0
  %2430 = vmatpush1.msra.mxu0 0.0
  %2431 = vmatprep.subr.mxu0 0.0
  %2432 = vmatpush1.msra.mxu0 0.0
  %2433 = vmatprep.subr.mxu0 0.0
  %2434 = vmatpush1.msra.mxu0 0.0
  %2435 = vmatprep.mubr.f32.mxu0 0.0
  %2436 = vmatmul.mubr.f32.gmra.mrb[0].mxu0 %v2369
  %v2437 = vpop.f32.mrb[0].mxu0
  %v2438 = vadd.f32 0.0, %v2437
  %v2439 = vpop.f32.mrb[0].mxu0
  %2440 = vdwg.mxu0
  %v2441 = vadd.f32 %v2365, %v2438
  %v2442 = vxor.u32 %v2441, 2147483648
  %v2443 = vmul.f32 %v2442, 1.442695
  %v2444 = vpow.pop %v2443
  %v2445 = vadd.f32 %v2444, 1.0
  %v2446 = vrcp.pop %v2445
  %v2447 = vmul.f32 1.0, %v2446
  %v2448 = vtanh.pop %v2441
  %v2449 = vmul.f32 %v2447, %v2182
  %2451 = vrot.lane.b32.xlu0 %v2448, 64
  %v2452 = vpop.permute.xlu0 %2451
  %v2454 = vmul.f32 %v2447, %v2452
  %2456 = vrot.lane.b32.xlu0 %v2454, 32
  %v2457 = vpop.permute.xlu0 %2456
  %v2459 = vadd.f32 %v2449, %v2457
  %v2460 = vtanh.pop %v2459
  %2462 = vrot.lane.b32.xlu0 %v2460, 64
  %v2463 = vpop.permute.xlu0 %2462
  %v2465 = vmul.f32 %v2447, %v2463
  %v2466 = vsel %vm2207, %v2465, %v2181
  %v2467 = vsel %vm2207, %v2459, %v2182
  %v2468 = vxor.u32 %v2362, 2147483648
  %v2469 = vmul.f32 %v2468, 1.442695
  %v2470 = vpow.pop %v2469
  %v2471 = vadd.f32 %v2470, 1.0
  %v2472 = vrcp.pop %v2471
  %v2473 = vmul.f32 1.0, %v2472
  %v2474 = vtanh.pop %v2362
  %v2475 = vmul.f32 %v2473, %v2209
  %2477 = vrot.lane.b32.xlu0 %v2474, 64
  %v2478 = vpop.permute.xlu0 %2477
  %v2480 = vmul.f32 %v2473, %v2478
  %2482 = vrot.lane.b32.xlu0 %v2480, 32
  %v2483 = vpop.permute.xlu0 %2482
  %v2485 = vadd.f32 %v2475, %v2483
  %v2486 = vtanh.pop %v2485
  %2488 = vrot.lane.b32.xlu0 %v2486, 64
  %v2489 = vpop.permute.xlu0 %2488
  %v2491 = vmul.f32 %v2473, %v2489
  %vm2492 = vcmp.gt.s32.totalorder %v158, 8
  %v2493 = vsel %vm2492, %v2491, %v2208
  %v2494 = vsel %vm2492, %v2485, %v2209
  %2495 = vset.pattern.permute.xlu0 9
  %2496 = vperm.xlu0 %2495, %v159
  %v2497 = vpop.permute.xlu0 %2496
  %vm2498 = vcmp.eq.s32.totalorder %v2497, %v154
  %v2499 = vsel %vm2498, 1, 0
  %v2500 = vcvt.s32.f32 %v2499
  %2502 = vrot.lane.b32.xlu0 %v2493, 32
  %v2503 = vpop.permute.xlu0 %2502
  %v2504 = vsel %vm293, %v2503, 0
  %2506 = vmatprep.subr.mxu0 %v161
  %2507 = vmatpush1.msra.mxu0 %v160
  %2508 = vmatprep.subr.mxu0 %v163
  %2509 = vmatpush1.msra.mxu0 %v162
  %2510 = vmatprep.subr.mxu0 %v165
  %2511 = vmatpush1.msra.mxu0 %v164
  %2512 = vmatprep.subr.mxu0 %v167
  %2513 = vmatpush1.msra.mxu0 %v166
  %2514 = vmatprep.subr.mxu0 0.0
  %2515 = vmatpush1.msra.mxu0 0.0
  %2516 = vmatprep.subr.mxu0 0.0
  %2517 = vmatpush1.msra.mxu0 0.0
  %2518 = vmatprep.subr.mxu0 0.0
  %2519 = vmatpush1.msra.mxu0 0.0
  %2520 = vmatprep.subr.mxu0 0.0
  %2521 = vmatpush1.msra.mxu0 0.0
  %2522 = vmatprep.subr.mxu0 0.0
  %2523 = vmatpush1.msra.mxu0 0.0
  %2524 = vmatprep.subr.mxu0 0.0
  %2525 = vmatpush1.msra.mxu0 0.0
  %2526 = vmatprep.subr.mxu0 0.0
  %2527 = vmatpush1.msra.mxu0 0.0
  %2528 = vmatprep.subr.mxu0 0.0
  %2529 = vmatpush1.msra.mxu0 0.0
  %2530 = vmatprep.subr.mxu0 0.0
  %2531 = vmatpush1.msra.mxu0 0.0
  %2532 = vmatprep.subr.mxu0 0.0
  %2533 = vmatpush1.msra.mxu0 0.0
  %2534 = vmatprep.subr.mxu0 0.0
  %2535 = vmatpush1.msra.mxu0 0.0
  %2536 = vmatprep.subr.mxu0 0.0
  %2537 = vmatpush1.msra.mxu0 0.0
  %2538 = vmatprep.subr.mxu0 0.0
  %2539 = vmatpush1.msra.mxu0 0.0
  %2540 = vmatprep.subr.mxu0 0.0
  %2541 = vmatpush1.msra.mxu0 0.0
  %2542 = vmatprep.subr.mxu0 0.0
  %2543 = vmatpush1.msra.mxu0 0.0
  %2544 = vmatprep.subr.mxu0 0.0
  %2545 = vmatpush1.msra.mxu0 0.0
  %2546 = vmatprep.subr.mxu0 0.0
  %2547 = vmatpush1.msra.mxu0 0.0
  %2548 = vmatprep.subr.mxu0 0.0
  %2549 = vmatpush1.msra.mxu0 0.0
  %2550 = vmatprep.subr.mxu0 0.0
  %2551 = vmatpush1.msra.mxu0 0.0
  %2552 = vmatprep.subr.mxu0 0.0
  %2553 = vmatpush1.msra.mxu0 0.0
  %2554 = vmatprep.subr.mxu0 0.0
  %2555 = vmatpush1.msra.mxu0 0.0
  %2556 = vmatprep.subr.mxu0 0.0
  %2557 = vmatpush1.msra.mxu0 0.0
  %2558 = vmatprep.subr.mxu0 0.0
  %2559 = vmatpush1.msra.mxu0 0.0
  %2560 = vmatprep.subr.mxu0 0.0
  %2561 = vmatpush1.msra.mxu0 0.0
  %2562 = vmatprep.subr.mxu0 0.0
  %2563 = vmatpush1.msra.mxu0 0.0
  %2564 = vmatprep.subr.mxu0 0.0
  %2565 = vmatpush1.msra.mxu0 0.0
  %2566 = vmatprep.subr.mxu0 0.0
  %2567 = vmatpush1.msra.mxu0 0.0
  %2568 = vmatprep.subr.mxu0 0.0
  %2569 = vmatpush1.msra.mxu0 0.0
  %2570 = vmatprep.mubr.f32.mxu0 0.0
  %2571 = vmatmul.mubr.f32.gmra.mrb[0].mxu0 %v2504
  %v2572 = vpop.f32.mrb[0].mxu0
  %v2573 = vadd.f32 0.0, %v2572
  %v2574 = vpop.f32.mrb[0].mxu0
  %v2575 = vadd.f32 0.0, %v2574
  %2576 = vdwg.mxu0
  %v2578 = vsel %vm179, %v2500, 0
  %2580 = vmatprep.subr.mxu0 0.0
  %2581 = vmatpush1.msra.mxu0 %v135
  %2582 = vmatprep.subr.mxu0 0.0
  %2583 = vmatpush1.msra.mxu0 %v140
  %2584 = vmatprep.subr.mxu0 0.0
  %2585 = vmatpush1.msra.mxu0 %v145
  %2586 = vmatprep.subr.mxu0 0.0
  %2587 = vmatpush1.msra.mxu0 %v185
  %2588 = vmatprep.subr.mxu0 0.0
  %2589 = vmatpush1.msra.mxu0 0.0
  %2590 = vmatprep.subr.mxu0 0.0
  %2591 = vmatpush1.msra.mxu0 0.0
  %2592 = vmatprep.subr.mxu0 0.0
  %2593 = vmatpush1.msra.mxu0 0.0
  %2594 = vmatprep.subr.mxu0 0.0
  %2595 = vmatpush1.msra.mxu0 0.0
  %2596 = vmatprep.subr.mxu0 0.0
  %2597 = vmatpush1.msra.mxu0 0.0
  %2598 = vmatprep.subr.mxu0 0.0
  %2599 = vmatpush1.msra.mxu0 0.0
  %2600 = vmatprep.subr.mxu0 0.0
  %2601 = vmatpush1.msra.mxu0 0.0
  %2602 = vmatprep.subr.mxu0 0.0
  %2603 = vmatpush1.msra.mxu0 0.0
  %2604 = vmatprep.subr.mxu0 0.0
  %2605 = vmatpush1.msra.mxu0 0.0
  %2606 = vmatprep.subr.mxu0 0.0
  %2607 = vmatpush1.msra.mxu0 0.0
  %2608 = vmatprep.subr.mxu0 0.0
  %2609 = vmatpush1.msra.mxu0 0.0
  %2610 = vmatprep.subr.mxu0 0.0
  %2611 = vmatpush1.msra.mxu0 0.0
  %2612 = vmatprep.subr.mxu0 0.0
  %2613 = vmatpush1.msra.mxu0 0.0
  %2614 = vmatprep.subr.mxu0 0.0
  %2615 = vmatpush1.msra.mxu0 0.0
  %2616 = vmatprep.subr.mxu0 0.0
  %2617 = vmatpush1.msra.mxu0 0.0
  %2618 = vmatprep.subr.mxu0 0.0
  %2619 = vmatpush1.msra.mxu0 0.0
  %2620 = vmatprep.subr.mxu0 0.0
  %2621 = vmatpush1.msra.mxu0 0.0
  %2622 = vmatprep.subr.mxu0 0.0
  %2623 = vmatpush1.msra.mxu0 0.0
  %2624 = vmatprep.subr.mxu0 0.0
  %2625 = vmatpush1.msra.mxu0 0.0
  %2626 = vmatprep.subr.mxu0 0.0
  %2627 = vmatpush1.msra.mxu0 0.0
  %2628 = vmatprep.subr.mxu0 0.0
  %2629 = vmatpush1.msra.mxu0 0.0
  %2630 = vmatprep.subr.mxu0 0.0
  %2631 = vmatpush1.msra.mxu0 0.0
  %2632 = vmatprep.subr.mxu0 0.0
  %2633 = vmatpush1.msra.mxu0 0.0
  %2634 = vmatprep.subr.mxu0 0.0
  %2635 = vmatpush1.msra.mxu0 0.0
  %2636 = vmatprep.subr.mxu0 0.0
  %2637 = vmatpush1.msra.mxu0 0.0
  %2638 = vmatprep.subr.mxu0 0.0
  %2639 = vmatpush1.msra.mxu0 0.0
  %2640 = vmatprep.subr.mxu0 0.0
  %2641 = vmatpush1.msra.mxu0 0.0
  %2642 = vmatprep.subr.mxu0 0.0
  %2643 = vmatpush1.msra.mxu0 0.0
  %2644 = vmatprep.mubr.f32.mxu0 0.0
  %2645 = vmatmul.mubr.f32.gmra.mrb[0].mxu0 %v2578
  %v2646 = vpop.f32.mrb[0].mxu0
  %v2647 = vadd.f32 %v2573, %v2646
  %v2648 = vpop.f32.mrb[0].mxu0
  %2649 = vdwg.mxu0
  %v2650 = vadd.f32 %v2575, %v444
  %2652 = vrot.lane.b32.xlu0 %v2466, 32
  %v2653 = vpop.permute.xlu0 %2652
  %v2654 = vsel %vm293, %v2653, 0
  %2656 = vmatprep.subr.mxu0 0.0
  %2657 = vmatpush1.msra.mxu0 %v168
  %2658 = vmatprep.subr.mxu0 0.0
  %2659 = vmatpush1.msra.mxu0 %v169
  %2660 = vmatprep.subr.mxu0 0.0
  %2661 = vmatpush1.msra.mxu0 %v170
  %2662 = vmatprep.subr.mxu0 0.0
  %2663 = vmatpush1.msra.mxu0 %v171
  %2664 = vmatprep.subr.mxu0 0.0
  %2665 = vmatpush1.msra.mxu0 0.0
  %2666 = vmatprep.subr.mxu0 0.0
  %2667 = vmatpush1.msra.mxu0 0.0
  %2668 = vmatprep.subr.mxu0 0.0
  %2669 = vmatpush1.msra.mxu0 0.0
  %2670 = vmatprep.subr.mxu0 0.0
  %2671 = vmatpush1.msra.mxu0 0.0
  %2672 = vmatprep.subr.mxu0 0.0
  %2673 = vmatpush1.msra.mxu0 0.0
  %2674 = vmatprep.subr.mxu0 0.0
  %2675 = vmatpush1.msra.mxu0 0.0
  %2676 = vmatprep.subr.mxu0 0.0
  %2677 = vmatpush1.msra.mxu0 0.0
  %2678 = vmatprep.subr.mxu0 0.0
  %2679 = vmatpush1.msra.mxu0 0.0
  %2680 = vmatprep.subr.mxu0 0.0
  %2681 = vmatpush1.msra.mxu0 0.0
  %2682 = vmatprep.subr.mxu0 0.0
  %2683 = vmatpush1.msra.mxu0 0.0
  %2684 = vmatprep.subr.mxu0 0.0
  %2685 = vmatpush1.msra.mxu0 0.0
  %2686 = vmatprep.subr.mxu0 0.0
  %2687 = vmatpush1.msra.mxu0 0.0
  %2688 = vmatprep.subr.mxu0 0.0
  %2689 = vmatpush1.msra.mxu0 0.0
  %2690 = vmatprep.subr.mxu0 0.0
  %2691 = vmatpush1.msra.mxu0 0.0
  %2692 = vmatprep.subr.mxu0 0.0
  %2693 = vmatpush1.msra.mxu0 0.0
  %2694 = vmatprep.subr.mxu0 0.0
  %2695 = vmatpush1.msra.mxu0 0.0
  %2696 = vmatprep.subr.mxu0 0.0
  %2697 = vmatpush1.msra.mxu0 0.0
  %2698 = vmatprep.subr.mxu0 0.0
  %2699 = vmatpush1.msra.mxu0 0.0
  %2700 = vmatprep.subr.mxu0 0.0
  %2701 = vmatpush1.msra.mxu0 0.0
  %2702 = vmatprep.subr.mxu0 0.0
  %2703 = vmatpush1.msra.mxu0 0.0
  %2704 = vmatprep.subr.mxu0 0.0
  %2705 = vmatpush1.msra.mxu0 0.0
  %2706 = vmatprep.subr.mxu0 0.0
  %2707 = vmatpush1.msra.mxu0 0.0
  %2708 = vmatprep.subr.mxu0 0.0
  %2709 = vmatpush1.msra.mxu0 0.0
  %2710 = vmatprep.subr.mxu0 0.0
  %2711 = vmatpush1.msra.mxu0 0.0
  %2712 = vmatprep.subr.mxu0 0.0
  %2713 = vmatpush1.msra.mxu0 0.0
  %2714 = vmatprep.subr.mxu0 0.0
  %2715 = vmatpush1.msra.mxu0 0.0
  %2716 = vmatprep.subr.mxu0 0.0
  %2717 = vmatpush1.msra.mxu0 0.0
  %2718 = vmatprep.subr.mxu0 0.0
  %2719 = vmatpush1.msra.mxu0 0.0
  %2720 = vmatprep.mubr.f32.mxu0 0.0
  %2721 = vmatmul.mubr.f32.gmra.mrb[0].mxu0 %v2654
  %v2722 = vpop.f32.mrb[0].mxu0
  %v2723 = vadd.f32 0.0, %v2722
  %v2724 = vpop.f32.mrb[0].mxu0
  %2725 = vdwg.mxu0
  %v2726 = vadd.f32 %v2650, %v2723
  %v2727 = vxor.u32 %v2726, 2147483648
  %v2728 = vmul.f32 %v2727, 1.442695
  %v2729 = vpow.pop %v2728
  %v2730 = vadd.f32 %v2729, 1.0
  %v2731 = vrcp.pop %v2730
  %v2732 = vmul.f32 1.0, %v2731
  %v2733 = vtanh.pop %v2726
  %v2734 = vmul.f32 %v2732, %v2467
  %2736 = vrot.lane.b32.xlu0 %v2733, 64
  %v2737 = vpop.permute.xlu0 %2736
  %v2739 = vmul.f32 %v2732, %v2737
  %2741 = vrot.lane.b32.xlu0 %v2739, 32
  %v2742 = vpop.permute.xlu0 %2741
  %v2744 = vadd.f32 %v2734, %v2742
  %v2745 = vtanh.pop %v2744
  %2747 = vrot.lane.b32.xlu0 %v2745, 64
  %v2748 = vpop.permute.xlu0 %2747
  %v2750 = vmul.f32 %v2732, %v2748
  %v2751 = vsel %vm2492, %v2750, %v2466
  %v2752 = vsel %vm2492, %v2744, %v2467
  %v2753 = vxor.u32 %v2647, 2147483648
  %v2754 = vmul.f32 %v2753, 1.442695
  %v2755 = vpow.pop %v2754
  %v2756 = vadd.f32 %v2755, 1.0
  %v2757 = vrcp.pop %v2756
  %v2758 = vmul.f32 1.0, %v2757
  %v2759 = vtanh.pop %v2647
  %v2760 = vmul.f32 %v2758, %v2494
  %2762 = vrot.lane.b32.xlu0 %v2759, 64
  %v2763 = vpop.permute.xlu0 %2762
  %v2765 = vmul.f32 %v2758, %v2763
  %2767 = vrot.lane.b32.xlu0 %v2765, 32
  %v2768 = vpop.permute.xlu0 %2767
  %v2770 = vadd.f32 %v2760, %v2768
  %v2771 = vtanh.pop %v2770
  %2773 = vrot.lane.b32.xlu0 %v2771, 64
  %v2774 = vpop.permute.xlu0 %2773
  %v2776 = vmul.f32 %v2758, %v2774
  %vm2777 = vcmp.gt.s32.totalorder %v158, 9
  %v2778 = vsel %vm2777, %v2776, %v2493
  %v2779 = vsel %vm2777, %v2770, %v2494
  %2780 = vset.pattern.permute.xlu0 10
  %2781 = vperm.xlu0 %2780, %v159
  %v2782 = vpop.permute.xlu0 %2781
  %vm2783 = vcmp.eq.s32.totalorder %v2782, %v154
  %v2784 = vsel %vm2783, 1, 0
  %v2785 = vcvt.s32.f32 %v2784
  %2787 = vrot.lane.b32.xlu0 %v2778, 32
  %v2788 = vpop.permute.xlu0 %2787
  %v2789 = vsel %vm293, %v2788, 0
  %2791 = vmatprep.subr.mxu0 %v161
  %2792 = vmatpush1.msra.mxu0 %v160
  %2793 = vmatprep.subr.mxu0 %v163
  %2794 = vmatpush1.msra.mxu0 %v162
  %2795 = vmatprep.subr.mxu0 %v165
  %2796 = vmatpush1.msra.mxu0 %v164
  %2797 = vmatprep.subr.mxu0 %v167
  %2798 = vmatpush1.msra.mxu0 %v166
  %2799 = vmatprep.subr.mxu0 0.0
  %2800 = vmatpush1.msra.mxu0 0.0
  %2801 = vmatprep.subr.mxu0 0.0
  %2802 = vmatpush1.msra.mxu0 0.0
  %2803 = vmatprep.subr.mxu0 0.0
  %2804 = vmatpush1.msra.mxu0 0.0
  %2805 = vmatprep.subr.mxu0 0.0
  %2806 = vmatpush1.msra.mxu0 0.0
  %2807 = vmatprep.subr.mxu0 0.0
  %2808 = vmatpush1.msra.mxu0 0.0
  %2809 = vmatprep.subr.mxu0 0.0
  %2810 = vmatpush1.msra.mxu0 0.0
  %2811 = vmatprep.subr.mxu0 0.0
  %2812 = vmatpush1.msra.mxu0 0.0
  %2813 = vmatprep.subr.mxu0 0.0
  %2814 = vmatpush1.msra.mxu0 0.0
  %2815 = vmatprep.subr.mxu0 0.0
  %2816 = vmatpush1.msra.mxu0 0.0
  %2817 = vmatprep.subr.mxu0 0.0
  %2818 = vmatpush1.msra.mxu0 0.0
  %2819 = vmatprep.subr.mxu0 0.0
  %2820 = vmatpush1.msra.mxu0 0.0
  %2821 = vmatprep.subr.mxu0 0.0
  %2822 = vmatpush1.msra.mxu0 0.0
  %2823 = vmatprep.subr.mxu0 0.0
  %2824 = vmatpush1.msra.mxu0 0.0
  %2825 = vmatprep.subr.mxu0 0.0
  %2826 = vmatpush1.msra.mxu0 0.0
  %2827 = vmatprep.subr.mxu0 0.0
  %2828 = vmatpush1.msra.mxu0 0.0
  %2829 = vmatprep.subr.mxu0 0.0
  %2830 = vmatpush1.msra.mxu0 0.0
  %2831 = vmatprep.subr.mxu0 0.0
  %2832 = vmatpush1.msra.mxu0 0.0
  %2833 = vmatprep.subr.mxu0 0.0
  %2834 = vmatpush1.msra.mxu0 0.0
  %2835 = vmatprep.subr.mxu0 0.0
  %2836 = vmatpush1.msra.mxu0 0.0
  %2837 = vmatprep.subr.mxu0 0.0
  %2838 = vmatpush1.msra.mxu0 0.0
  %2839 = vmatprep.subr.mxu0 0.0
  %2840 = vmatpush1.msra.mxu0 0.0
  %2841 = vmatprep.subr.mxu0 0.0
  %2842 = vmatpush1.msra.mxu0 0.0
  %2843 = vmatprep.subr.mxu0 0.0
  %2844 = vmatpush1.msra.mxu0 0.0
  %2845 = vmatprep.subr.mxu0 0.0
  %2846 = vmatpush1.msra.mxu0 0.0
  %2847 = vmatprep.subr.mxu0 0.0
  %2848 = vmatpush1.msra.mxu0 0.0
  %2849 = vmatprep.subr.mxu0 0.0
  %2850 = vmatpush1.msra.mxu0 0.0
  %2851 = vmatprep.subr.mxu0 0.0
  %2852 = vmatpush1.msra.mxu0 0.0
  %2853 = vmatprep.subr.mxu0 0.0
  %2854 = vmatpush1.msra.mxu0 0.0
  %2855 = vmatprep.mubr.f32.mxu0 0.0
  %2856 = vmatmul.mubr.f32.gmra.mrb[0].mxu0 %v2789
  %v2857 = vpop.f32.mrb[0].mxu0
  %v2858 = vadd.f32 0.0, %v2857
  %v2859 = vpop.f32.mrb[0].mxu0
  %v2860 = vadd.f32 0.0, %v2859
  %2861 = vdwg.mxu0
  %v2863 = vsel %vm179, %v2785, 0
  %2865 = vmatprep.subr.mxu0 0.0
  %2866 = vmatpush1.msra.mxu0 %v135
  %2867 = vmatprep.subr.mxu0 0.0
  %2868 = vmatpush1.msra.mxu0 %v140
  %2869 = vmatprep.subr.mxu0 0.0
  %2870 = vmatpush1.msra.mxu0 %v145
  %2871 = vmatprep.subr.mxu0 0.0
  %2872 = vmatpush1.msra.mxu0 %v185
  %2873 = vmatprep.subr.mxu0 0.0
  %2874 = vmatpush1.msra.mxu0 0.0
  %2875 = vmatprep.subr.mxu0 0.0
  %2876 = vmatpush1.msra.mxu0 0.0
  %2877 = vmatprep.subr.mxu0 0.0
  %2878 = vmatpush1.msra.mxu0 0.0
  %2879 = vmatprep.subr.mxu0 0.0
  %2880 = vmatpush1.msra.mxu0 0.0
  %2881 = vmatprep.subr.mxu0 0.0
  %2882 = vmatpush1.msra.mxu0 0.0
  %2883 = vmatprep.subr.mxu0 0.0
  %2884 = vmatpush1.msra.mxu0 0.0
  %2885 = vmatprep.subr.mxu0 0.0
  %2886 = vmatpush1.msra.mxu0 0.0
  %2887 = vmatprep.subr.mxu0 0.0
  %2888 = vmatpush1.msra.mxu0 0.0
  %2889 = vmatprep.subr.mxu0 0.0
  %2890 = vmatpush1.msra.mxu0 0.0
  %2891 = vmatprep.subr.mxu0 0.0
  %2892 = vmatpush1.msra.mxu0 0.0
  %2893 = vmatprep.subr.mxu0 0.0
  %2894 = vmatpush1.msra.mxu0 0.0
  %2895 = vmatprep.subr.mxu0 0.0
  %2896 = vmatpush1.msra.mxu0 0.0
  %2897 = vmatprep.subr.mxu0 0.0
  %2898 = vmatpush1.msra.mxu0 0.0
  %2899 = vmatprep.subr.mxu0 0.0
  %2900 = vmatpush1.msra.mxu0 0.0
  %2901 = vmatprep.subr.mxu0 0.0
  %2902 = vmatpush1.msra.mxu0 0.0
  %2903 = vmatprep.subr.mxu0 0.0
  %2904 = vmatpush1.msra.mxu0 0.0
  %2905 = vmatprep.subr.mxu0 0.0
  %2906 = vmatpush1.msra.mxu0 0.0
  %2907 = vmatprep.subr.mxu0 0.0
  %2908 = vmatpush1.msra.mxu0 0.0
  %2909 = vmatprep.subr.mxu0 0.0
  %2910 = vmatpush1.msra.mxu0 0.0
  %2911 = vmatprep.subr.mxu0 0.0
  %2912 = vmatpush1.msra.mxu0 0.0
  %2913 = vmatprep.subr.mxu0 0.0
  %2914 = vmatpush1.msra.mxu0 0.0
  %2915 = vmatprep.subr.mxu0 0.0
  %2916 = vmatpush1.msra.mxu0 0.0
  %2917 = vmatprep.subr.mxu0 0.0
  %2918 = vmatpush1.msra.mxu0 0.0
  %2919 = vmatprep.subr.mxu0 0.0
  %2920 = vmatpush1.msra.mxu0 0.0
  %2921 = vmatprep.subr.mxu0 0.0
  %2922 = vmatpush1.msra.mxu0 0.0
  %2923 = vmatprep.subr.mxu0 0.0
  %2924 = vmatpush1.msra.mxu0 0.0
  %2925 = vmatprep.subr.mxu0 0.0
  %2926 = vmatpush1.msra.mxu0 0.0
  %2927 = vmatprep.subr.mxu0 0.0
  %2928 = vmatpush1.msra.mxu0 0.0
  %2929 = vmatprep.mubr.f32.mxu0 0.0
  %2930 = vmatmul.mubr.f32.gmra.mrb[0].mxu0 %v2863
  %v2931 = vpop.f32.mrb[0].mxu0
  %v2932 = vadd.f32 %v2858, %v2931
  %v2933 = vpop.f32.mrb[0].mxu0
  %2934 = vdwg.mxu0
  %v2935 = vadd.f32 %v2860, %v444
  %2937 = vrot.lane.b32.xlu0 %v2751, 32
  %v2938 = vpop.permute.xlu0 %2937
  %v2939 = vsel %vm293, %v2938, 0
  %2941 = vmatprep.subr.mxu0 0.0
  %2942 = vmatpush1.msra.mxu0 %v168
  %2943 = vmatprep.subr.mxu0 0.0
  %2944 = vmatpush1.msra.mxu0 %v169
  %2945 = vmatprep.subr.mxu0 0.0
  %2946 = vmatpush1.msra.mxu0 %v170
  %2947 = vmatprep.subr.mxu0 0.0
  %2948 = vmatpush1.msra.mxu0 %v171
  %2949 = vmatprep.subr.mxu0 0.0
  %2950 = vmatpush1.msra.mxu0 0.0
  %2951 = vmatprep.subr.mxu0 0.0
  %2952 = vmatpush1.msra.mxu0 0.0
  %2953 = vmatprep.subr.mxu0 0.0
  %2954 = vmatpush1.msra.mxu0 0.0
  %2955 = vmatprep.subr.mxu0 0.0
  %2956 = vmatpush1.msra.mxu0 0.0
  %2957 = vmatprep.subr.mxu0 0.0
  %2958 = vmatpush1.msra.mxu0 0.0
  %2959 = vmatprep.subr.mxu0 0.0
  %2960 = vmatpush1.msra.mxu0 0.0
  %2961 = vmatprep.subr.mxu0 0.0
  %2962 = vmatpush1.msra.mxu0 0.0
  %2963 = vmatprep.subr.mxu0 0.0
  %2964 = vmatpush1.msra.mxu0 0.0
  %2965 = vmatprep.subr.mxu0 0.0
  %2966 = vmatpush1.msra.mxu0 0.0
  %2967 = vmatprep.subr.mxu0 0.0
  %2968 = vmatpush1.msra.mxu0 0.0
  %2969 = vmatprep.subr.mxu0 0.0
  %2970 = vmatpush1.msra.mxu0 0.0
  %2971 = vmatprep.subr.mxu0 0.0
  %2972 = vmatpush1.msra.mxu0 0.0
  %2973 = vmatprep.subr.mxu0 0.0
  %2974 = vmatpush1.msra.mxu0 0.0
  %2975 = vmatprep.subr.mxu0 0.0
  %2976 = vmatpush1.msra.mxu0 0.0
  %2977 = vmatprep.subr.mxu0 0.0
  %2978 = vmatpush1.msra.mxu0 0.0
  %2979 = vmatprep.subr.mxu0 0.0
  %2980 = vmatpush1.msra.mxu0 0.0
  %2981 = vmatprep.subr.mxu0 0.0
  %2982 = vmatpush1.msra.mxu0 0.0
  %2983 = vmatprep.subr.mxu0 0.0
  %2984 = vmatpush1.msra.mxu0 0.0
  %2985 = vmatprep.subr.mxu0 0.0
  %2986 = vmatpush1.msra.mxu0 0.0
  %2987 = vmatprep.subr.mxu0 0.0
  %2988 = vmatpush1.msra.mxu0 0.0
  %2989 = vmatprep.subr.mxu0 0.0
  %2990 = vmatpush1.msra.mxu0 0.0
  %2991 = vmatprep.subr.mxu0 0.0
  %2992 = vmatpush1.msra.mxu0 0.0
  %2993 = vmatprep.subr.mxu0 0.0
  %2994 = vmatpush1.msra.mxu0 0.0
  %2995 = vmatprep.subr.mxu0 0.0
  %2996 = vmatpush1.msra.mxu0 0.0
  %2997 = vmatprep.subr.mxu0 0.0
  %2998 = vmatpush1.msra.mxu0 0.0
  %2999 = vmatprep.subr.mxu0 0.0
  %3000 = vmatpush1.msra.mxu0 0.0
  %3001 = vmatprep.subr.mxu0 0.0
  %3002 = vmatpush1.msra.mxu0 0.0
  %3003 = vmatprep.subr.mxu0 0.0
  %3004 = vmatpush1.msra.mxu0 0.0
  %3005 = vmatprep.mubr.f32.mxu0 0.0
  %3006 = vmatmul.mubr.f32.gmra.mrb[0].mxu0 %v2939
  %v3007 = vpop.f32.mrb[0].mxu0
  %v3008 = vadd.f32 0.0, %v3007
  %v3009 = vpop.f32.mrb[0].mxu0
  %3010 = vdwg.mxu0
  %v3011 = vadd.f32 %v2935, %v3008
  %v3012 = vxor.u32 %v3011, 2147483648
  %v3013 = vmul.f32 %v3012, 1.442695
  %v3014 = vpow.pop %v3013
  %v3015 = vadd.f32 %v3014, 1.0
  %v3016 = vrcp.pop %v3015
  %v3017 = vmul.f32 1.0, %v3016
  %v3018 = vtanh.pop %v3011
  %v3019 = vmul.f32 %v3017, %v2752
  %3021 = vrot.lane.b32.xlu0 %v3018, 64
  %v3022 = vpop.permute.xlu0 %3021
  %v3024 = vmul.f32 %v3017, %v3022
  %3026 = vrot.lane.b32.xlu0 %v3024, 32
  %v3027 = vpop.permute.xlu0 %3026
  %v3029 = vadd.f32 %v3019, %v3027
  %v3030 = vtanh.pop %v3029
  %3032 = vrot.lane.b32.xlu0 %v3030, 64
  %v3033 = vpop.permute.xlu0 %3032
  %v3035 = vmul.f32 %v3017, %v3033
  %v3036 = vsel %vm2777, %v3035, %v2751
  %v3037 = vsel %vm2777, %v3029, %v2752
  %v3038 = vxor.u32 %v2932, 2147483648
  %v3039 = vmul.f32 %v3038, 1.442695
  %v3040 = vpow.pop %v3039
  %v3041 = vadd.f32 %v3040, 1.0
  %v3042 = vrcp.pop %v3041
  %v3043 = vmul.f32 1.0, %v3042
  %v3044 = vtanh.pop %v2932
  %v3045 = vmul.f32 %v3043, %v2779
  %3047 = vrot.lane.b32.xlu0 %v3044, 64
  %v3048 = vpop.permute.xlu0 %3047
  %v3050 = vmul.f32 %v3043, %v3048
  %3052 = vrot.lane.b32.xlu0 %v3050, 32
  %v3053 = vpop.permute.xlu0 %3052
  %v3055 = vadd.f32 %v3045, %v3053
  %v3056 = vtanh.pop %v3055
  %3058 = vrot.lane.b32.xlu0 %v3056, 64
  %v3059 = vpop.permute.xlu0 %3058
  %v3061 = vmul.f32 %v3043, %v3059
  %vm3062 = vcmp.gt.s32.totalorder %v158, 10
  %v3063 = vsel %vm3062, %v3061, %v2778
  %v3064 = vsel %vm3062, %v3055, %v2779
  %3065 = vset.pattern.permute.xlu0 11
  %3066 = vperm.xlu0 %3065, %v159
  %v3067 = vpop.permute.xlu0 %3066
  %vm3068 = vcmp.eq.s32.totalorder %v3067, %v154
  %v3069 = vsel %vm3068, 1, 0
  %v3070 = vcvt.s32.f32 %v3069
  %3072 = vrot.lane.b32.xlu0 %v3063, 32
  %v3073 = vpop.permute.xlu0 %3072
  %v3074 = vsel %vm293, %v3073, 0
  %3076 = vmatprep.subr.mxu0 %v161
  %3077 = vmatpush1.msra.mxu0 %v160
  %3078 = vmatprep.subr.mxu0 %v163
  %3079 = vmatpush1.msra.mxu0 %v162
  %3080 = vmatprep.subr.mxu0 %v165
  %3081 = vmatpush1.msra.mxu0 %v164
  %3082 = vmatprep.subr.mxu0 %v167
  %3083 = vmatpush1.msra.mxu0 %v166
  %3084 = vmatprep.subr.mxu0 0.0
  %3085 = vmatpush1.msra.mxu0 0.0
  %3086 = vmatprep.subr.mxu0 0.0
  %3087 = vmatpush1.msra.mxu0 0.0
  %3088 = vmatprep.subr.mxu0 0.0
  %3089 = vmatpush1.msra.mxu0 0.0
  %3090 = vmatprep.subr.mxu0 0.0
  %3091 = vmatpush1.msra.mxu0 0.0
  %3092 = vmatprep.subr.mxu0 0.0
  %3093 = vmatpush1.msra.mxu0 0.0
  %3094 = vmatprep.subr.mxu0 0.0
  %3095 = vmatpush1.msra.mxu0 0.0
  %3096 = vmatprep.subr.mxu0 0.0
  %3097 = vmatpush1.msra.mxu0 0.0
  %3098 = vmatprep.subr.mxu0 0.0
  %3099 = vmatpush1.msra.mxu0 0.0
  %3100 = vmatprep.subr.mxu0 0.0
  %3101 = vmatpush1.msra.mxu0 0.0
  %3102 = vmatprep.subr.mxu0 0.0
  %3103 = vmatpush1.msra.mxu0 0.0
  %3104 = vmatprep.subr.mxu0 0.0
  %3105 = vmatpush1.msra.mxu0 0.0
  %3106 = vmatprep.subr.mxu0 0.0
  %3107 = vmatpush1.msra.mxu0 0.0
  %3108 = vmatprep.subr.mxu0 0.0
  %3109 = vmatpush1.msra.mxu0 0.0
  %3110 = vmatprep.subr.mxu0 0.0
  %3111 = vmatpush1.msra.mxu0 0.0
  %3112 = vmatprep.subr.mxu0 0.0
  %3113 = vmatpush1.msra.mxu0 0.0
  %3114 = vmatprep.subr.mxu0 0.0
  %3115 = vmatpush1.msra.mxu0 0.0
  %3116 = vmatprep.subr.mxu0 0.0
  %3117 = vmatpush1.msra.mxu0 0.0
  %3118 = vmatprep.subr.mxu0 0.0
  %3119 = vmatpush1.msra.mxu0 0.0
  %3120 = vmatprep.subr.mxu0 0.0
  %3121 = vmatpush1.msra.mxu0 0.0
  %3122 = vmatprep.subr.mxu0 0.0
  %3123 = vmatpush1.msra.mxu0 0.0
  %3124 = vmatprep.subr.mxu0 0.0
  %3125 = vmatpush1.msra.mxu0 0.0
  %3126 = vmatprep.subr.mxu0 0.0
  %3127 = vmatpush1.msra.mxu0 0.0
  %3128 = vmatprep.subr.mxu0 0.0
  %3129 = vmatpush1.msra.mxu0 0.0
  %3130 = vmatprep.subr.mxu0 0.0
  %3131 = vmatpush1.msra.mxu0 0.0
  %3132 = vmatprep.subr.mxu0 0.0
  %3133 = vmatpush1.msra.mxu0 0.0
  %3134 = vmatprep.subr.mxu0 0.0
  %3135 = vmatpush1.msra.mxu0 0.0
  %3136 = vmatprep.subr.mxu0 0.0
  %3137 = vmatpush1.msra.mxu0 0.0
  %3138 = vmatprep.subr.mxu0 0.0
  %3139 = vmatpush1.msra.mxu0 0.0
  %3140 = vmatprep.mubr.f32.mxu0 0.0
  %3141 = vmatmul.mubr.f32.gmra.mrb[0].mxu0 %v3074
  %v3142 = vpop.f32.mrb[0].mxu0
  %v3143 = vadd.f32 0.0, %v3142
  %v3144 = vpop.f32.mrb[0].mxu0
  %v3145 = vadd.f32 0.0, %v3144
  %3146 = vdwg.mxu0
  %v3148 = vsel %vm179, %v3070, 0
  %3150 = vmatprep.subr.mxu0 0.0
  %3151 = vmatpush1.msra.mxu0 %v135
  %3152 = vmatprep.subr.mxu0 0.0
  %3153 = vmatpush1.msra.mxu0 %v140
  %3154 = vmatprep.subr.mxu0 0.0
  %3155 = vmatpush1.msra.mxu0 %v145
  %3156 = vmatprep.subr.mxu0 0.0
  %3157 = vmatpush1.msra.mxu0 %v185
  %3158 = vmatprep.subr.mxu0 0.0
  %3159 = vmatpush1.msra.mxu0 0.0
  %3160 = vmatprep.subr.mxu0 0.0
  %3161 = vmatpush1.msra.mxu0 0.0
  %3162 = vmatprep.subr.mxu0 0.0
  %3163 = vmatpush1.msra.mxu0 0.0
  %3164 = vmatprep.subr.mxu0 0.0
  %3165 = vmatpush1.msra.mxu0 0.0
  %3166 = vmatprep.subr.mxu0 0.0
  %3167 = vmatpush1.msra.mxu0 0.0
  %3168 = vmatprep.subr.mxu0 0.0
  %3169 = vmatpush1.msra.mxu0 0.0
  %3170 = vmatprep.subr.mxu0 0.0
  %3171 = vmatpush1.msra.mxu0 0.0
  %3172 = vmatprep.subr.mxu0 0.0
  %3173 = vmatpush1.msra.mxu0 0.0
  %3174 = vmatprep.subr.mxu0 0.0
  %3175 = vmatpush1.msra.mxu0 0.0
  %3176 = vmatprep.subr.mxu0 0.0
  %3177 = vmatpush1.msra.mxu0 0.0
  %3178 = vmatprep.subr.mxu0 0.0
  %3179 = vmatpush1.msra.mxu0 0.0
  %3180 = vmatprep.subr.mxu0 0.0
  %3181 = vmatpush1.msra.mxu0 0.0
  %3182 = vmatprep.subr.mxu0 0.0
  %3183 = vmatpush1.msra.mxu0 0.0
  %3184 = vmatprep.subr.mxu0 0.0
  %3185 = vmatpush1.msra.mxu0 0.0
  %3186 = vmatprep.subr.mxu0 0.0
  %3187 = vmatpush1.msra.mxu0 0.0
  %3188 = vmatprep.subr.mxu0 0.0
  %3189 = vmatpush1.msra.mxu0 0.0
  %3190 = vmatprep.subr.mxu0 0.0
  %3191 = vmatpush1.msra.mxu0 0.0
  %3192 = vmatprep.subr.mxu0 0.0
  %3193 = vmatpush1.msra.mxu0 0.0
  %3194 = vmatprep.subr.mxu0 0.0
  %3195 = vmatpush1.msra.mxu0 0.0
  %3196 = vmatprep.subr.mxu0 0.0
  %3197 = vmatpush1.msra.mxu0 0.0
  %3198 = vmatprep.subr.mxu0 0.0
  %3199 = vmatpush1.msra.mxu0 0.0
  %3200 = vmatprep.subr.mxu0 0.0
  %3201 = vmatpush1.msra.mxu0 0.0
  %3202 = vmatprep.subr.mxu0 0.0
  %3203 = vmatpush1.msra.mxu0 0.0
  %3204 = vmatprep.subr.mxu0 0.0
  %3205 = vmatpush1.msra.mxu0 0.0
  %3206 = vmatprep.subr.mxu0 0.0
  %3207 = vmatpush1.msra.mxu0 0.0
  %3208 = vmatprep.subr.mxu0 0.0
  %3209 = vmatpush1.msra.mxu0 0.0
  %3210 = vmatprep.subr.mxu0 0.0
  %3211 = vmatpush1.msra.mxu0 0.0
  %3212 = vmatprep.subr.mxu0 0.0
  %3213 = vmatpush1.msra.mxu0 0.0
  %3214 = vmatprep.mubr.f32.mxu0 0.0
  %3215 = vmatmul.mubr.f32.gmra.mrb[0].mxu0 %v3148
  %v3216 = vpop.f32.mrb[0].mxu0
  %v3217 = vadd.f32 %v3143, %v3216
  %v3218 = vpop.f32.mrb[0].mxu0
  %3219 = vdwg.mxu0
  %v3220 = vadd.f32 %v3145, %v444
  %3222 = vrot.lane.b32.xlu0 %v3036, 32
  %v3223 = vpop.permute.xlu0 %3222
  %v3224 = vsel %vm293, %v3223, 0
  %3226 = vmatprep.subr.mxu0 0.0
  %3227 = vmatpush1.msra.mxu0 %v168
  %3228 = vmatprep.subr.mxu0 0.0
  %3229 = vmatpush1.msra.mxu0 %v169
  %3230 = vmatprep.subr.mxu0 0.0
  %3231 = vmatpush1.msra.mxu0 %v170
  %3232 = vmatprep.subr.mxu0 0.0
  %3233 = vmatpush1.msra.mxu0 %v171
  %3234 = vmatprep.subr.mxu0 0.0
  %3235 = vmatpush1.msra.mxu0 0.0
  %3236 = vmatprep.subr.mxu0 0.0
  %3237 = vmatpush1.msra.mxu0 0.0
  %3238 = vmatprep.subr.mxu0 0.0
  %3239 = vmatpush1.msra.mxu0 0.0
  %3240 = vmatprep.subr.mxu0 0.0
  %3241 = vmatpush1.msra.mxu0 0.0
  %3242 = vmatprep.subr.mxu0 0.0
  %3243 = vmatpush1.msra.mxu0 0.0
  %3244 = vmatprep.subr.mxu0 0.0
  %3245 = vmatpush1.msra.mxu0 0.0
  %3246 = vmatprep.subr.mxu0 0.0
  %3247 = vmatpush1.msra.mxu0 0.0
  %3248 = vmatprep.subr.mxu0 0.0
  %3249 = vmatpush1.msra.mxu0 0.0
  %3250 = vmatprep.subr.mxu0 0.0
  %3251 = vmatpush1.msra.mxu0 0.0
  %3252 = vmatprep.subr.mxu0 0.0
  %3253 = vmatpush1.msra.mxu0 0.0
  %3254 = vmatprep.subr.mxu0 0.0
  %3255 = vmatpush1.msra.mxu0 0.0
  %3256 = vmatprep.subr.mxu0 0.0
  %3257 = vmatpush1.msra.mxu0 0.0
  %3258 = vmatprep.subr.mxu0 0.0
  %3259 = vmatpush1.msra.mxu0 0.0
  %3260 = vmatprep.subr.mxu0 0.0
  %3261 = vmatpush1.msra.mxu0 0.0
  %3262 = vmatprep.subr.mxu0 0.0
  %3263 = vmatpush1.msra.mxu0 0.0
  %3264 = vmatprep.subr.mxu0 0.0
  %3265 = vmatpush1.msra.mxu0 0.0
  %3266 = vmatprep.subr.mxu0 0.0
  %3267 = vmatpush1.msra.mxu0 0.0
  %3268 = vmatprep.subr.mxu0 0.0
  %3269 = vmatpush1.msra.mxu0 0.0
  %3270 = vmatprep.subr.mxu0 0.0
  %3271 = vmatpush1.msra.mxu0 0.0
  %3272 = vmatprep.subr.mxu0 0.0
  %3273 = vmatpush1.msra.mxu0 0.0
  %3274 = vmatprep.subr.mxu0 0.0
  %3275 = vmatpush1.msra.mxu0 0.0
  %3276 = vmatprep.subr.mxu0 0.0
  %3277 = vmatpush1.msra.mxu0 0.0
  %3278 = vmatprep.subr.mxu0 0.0
  %3279 = vmatpush1.msra.mxu0 0.0
  %3280 = vmatprep.subr.mxu0 0.0
  %3281 = vmatpush1.msra.mxu0 0.0
  %3282 = vmatprep.subr.mxu0 0.0
  %3283 = vmatpush1.msra.mxu0 0.0
  %3284 = vmatprep.subr.mxu0 0.0
  %3285 = vmatpush1.msra.mxu0 0.0
  %3286 = vmatprep.subr.mxu0 0.0
  %3287 = vmatpush1.msra.mxu0 0.0
  %3288 = vmatprep.subr.mxu0 0.0
  %3289 = vmatpush1.msra.mxu0 0.0
  %3290 = vmatprep.mubr.f32.mxu0 0.0
  %3291 = vmatmul.mubr.f32.gmra.mrb[0].mxu0 %v3224
  %v3292 = vpop.f32.mrb[0].mxu0
  %v3293 = vadd.f32 0.0, %v3292
  %v3294 = vpop.f32.mrb[0].mxu0
  %3295 = vdwg.mxu0
  %v3296 = vadd.f32 %v3220, %v3293
  %v3297 = vxor.u32 %v3296, 2147483648
  %v3298 = vmul.f32 %v3297, 1.442695
  %v3299 = vpow.pop %v3298
  %v3300 = vadd.f32 %v3299, 1.0
  %v3301 = vrcp.pop %v3300
  %v3302 = vmul.f32 1.0, %v3301
  %v3303 = vtanh.pop %v3296
  %v3304 = vmul.f32 %v3302, %v3037
  %3306 = vrot.lane.b32.xlu0 %v3303, 64
  %v3307 = vpop.permute.xlu0 %3306
  %v3309 = vmul.f32 %v3302, %v3307
  %3311 = vrot.lane.b32.xlu0 %v3309, 32
  %v3312 = vpop.permute.xlu0 %3311
  %v3314 = vadd.f32 %v3304, %v3312
  %v3315 = vtanh.pop %v3314
  %3317 = vrot.lane.b32.xlu0 %v3315, 64
  %v3318 = vpop.permute.xlu0 %3317
  %v3320 = vmul.f32 %v3302, %v3318
  %v3321 = vsel %vm3062, %v3320, %v3036
  %v3322 = vsel %vm3062, %v3314, %v3037
  %v3323 = vxor.u32 %v3217, 2147483648
  %v3324 = vmul.f32 %v3323, 1.442695
  %v3325 = vpow.pop %v3324
  %v3326 = vadd.f32 %v3325, 1.0
  %v3327 = vrcp.pop %v3326
  %v3328 = vmul.f32 1.0, %v3327
  %v3329 = vtanh.pop %v3217
  %v3330 = vmul.f32 %v3328, %v3064
  %3332 = vrot.lane.b32.xlu0 %v3329, 64
  %v3333 = vpop.permute.xlu0 %3332
  %v3335 = vmul.f32 %v3328, %v3333
  %3337 = vrot.lane.b32.xlu0 %v3335, 32
  %v3338 = vpop.permute.xlu0 %3337
  %v3340 = vadd.f32 %v3330, %v3338
  %v3341 = vtanh.pop %v3340
  %3343 = vrot.lane.b32.xlu0 %v3341, 64
  %v3344 = vpop.permute.xlu0 %3343
  %v3346 = vmul.f32 %v3328, %v3344
  %vm3347 = vcmp.gt.s32.totalorder %v158, 11
  %v3348 = vsel %vm3347, %v3346, %v3063
  %3350 = vrot.lane.b32.xlu0 %v3348, 32
  %v3351 = vpop.permute.xlu0 %3350
  %v3352 = vsel %vm293, %v3351, 0
  %3354 = vmatprep.subr.mxu0 %v161
  %3355 = vmatpush1.msra.mxu0 %v160
  %3356 = vmatprep.subr.mxu0 %v163
  %3357 = vmatpush1.msra.mxu0 %v162
  %3358 = vmatprep.subr.mxu0 %v165
  %3359 = vmatpush1.msra.mxu0 %v164
  %3360 = vmatprep.subr.mxu0 %v167
  %3361 = vmatpush1.msra.mxu0 %v166
  %3362 = vmatprep.subr.mxu0 0.0
  %3363 = vmatpush1.msra.mxu0 0.0
  %3364 = vmatprep.subr.mxu0 0.0
  %3365 = vmatpush1.msra.mxu0 0.0
  %3366 = vmatprep.subr.mxu0 0.0
  %3367 = vmatpush1.msra.mxu0 0.0
  %3368 = vmatprep.subr.mxu0 0.0
  %3369 = vmatpush1.msra.mxu0 0.0
  %3370 = vmatprep.subr.mxu0 0.0
  %3371 = vmatpush1.msra.mxu0 0.0
  %3372 = vmatprep.subr.mxu0 0.0
  %3373 = vmatpush1.msra.mxu0 0.0
  %3374 = vmatprep.subr.mxu0 0.0
  %3375 = vmatpush1.msra.mxu0 0.0
  %3376 = vmatprep.subr.mxu0 0.0
  %3377 = vmatpush1.msra.mxu0 0.0
  %3378 = vmatprep.subr.mxu0 0.0
  %3379 = vmatpush1.msra.mxu0 0.0
  %3380 = vmatprep.subr.mxu0 0.0
  %3381 = vmatpush1.msra.mxu0 0.0
  %3382 = vmatprep.subr.mxu0 0.0
  %3383 = vmatpush1.msra.mxu0 0.0
  %3384 = vmatprep.subr.mxu0 0.0
  %3385 = vmatpush1.msra.mxu0 0.0
  %3386 = vmatprep.subr.mxu0 0.0
  %3387 = vmatpush1.msra.mxu0 0.0
  %3388 = vmatprep.subr.mxu0 0.0
  %3389 = vmatpush1.msra.mxu0 0.0
  %3390 = vmatprep.subr.mxu0 0.0
  %3391 = vmatpush1.msra.mxu0 0.0
  %3392 = vmatprep.subr.mxu0 0.0
  %3393 = vmatpush1.msra.mxu0 0.0
  %3394 = vmatprep.subr.mxu0 0.0
  %3395 = vmatpush1.msra.mxu0 0.0
  %3396 = vmatprep.subr.mxu0 0.0
  %3397 = vmatpush1.msra.mxu0 0.0
  %3398 = vmatprep.subr.mxu0 0.0
  %3399 = vmatpush1.msra.mxu0 0.0
  %3400 = vmatprep.subr.mxu0 0.0
  %3401 = vmatpush1.msra.mxu0 0.0
  %3402 = vmatprep.subr.mxu0 0.0
  %3403 = vmatpush1.msra.mxu0 0.0
  %3404 = vmatprep.subr.mxu0 0.0
  %3405 = vmatpush1.msra.mxu0 0.0
  %3406 = vmatprep.subr.mxu0 0.0
  %3407 = vmatpush1.msra.mxu0 0.0
  %3408 = vmatprep.subr.mxu0 0.0
  %3409 = vmatpush1.msra.mxu0 0.0
  %3410 = vmatprep.subr.mxu0 0.0
  %3411 = vmatpush1.msra.mxu0 0.0
  %3412 = vmatprep.subr.mxu0 0.0
  %3413 = vmatpush1.msra.mxu0 0.0
  %3414 = vmatprep.subr.mxu0 0.0
  %3415 = vmatpush1.msra.mxu0 0.0
  %3416 = vmatprep.subr.mxu0 0.0
  %3417 = vmatpush1.msra.mxu0 0.0
  %3418 = vmatprep.mubr.f32.mxu0 0.0
  %3419 = vmatmul.mubr.f32.gmra.mrb[0].mxu0 %v3352
  %v3420 = vpop.f32.mrb[0].mxu0
  %v3421 = vpop.f32.mrb[0].mxu0
  %v3422 = vadd.f32 0.0, %v3421
  %3423 = vdwg.mxu0
  %v3424 = vadd.f32 %v3422, %v444
  %3426 = vrot.lane.b32.xlu0 %v3321, 32
  %v3427 = vpop.permute.xlu0 %3426
  %v3428 = vsel %vm293, %v3427, 0
  %3430 = vmatprep.subr.mxu0 0.0
  %3431 = vmatpush1.msra.mxu0 %v168
  %3432 = vmatprep.subr.mxu0 0.0
  %3433 = vmatpush1.msra.mxu0 %v169
  %3434 = vmatprep.subr.mxu0 0.0
  %3435 = vmatpush1.msra.mxu0 %v170
  %3436 = vmatprep.subr.mxu0 0.0
  %3437 = vmatpush1.msra.mxu0 %v171
  %3438 = vmatprep.subr.mxu0 0.0
  %3439 = vmatpush1.msra.mxu0 0.0
  %3440 = vmatprep.subr.mxu0 0.0
  %3441 = vmatpush1.msra.mxu0 0.0
  %3442 = vmatprep.subr.mxu0 0.0
  %3443 = vmatpush1.msra.mxu0 0.0
  %3444 = vmatprep.subr.mxu0 0.0
  %3445 = vmatpush1.msra.mxu0 0.0
  %3446 = vmatprep.subr.mxu0 0.0
  %3447 = vmatpush1.msra.mxu0 0.0
  %3448 = vmatprep.subr.mxu0 0.0
  %3449 = vmatpush1.msra.mxu0 0.0
  %3450 = vmatprep.subr.mxu0 0.0
  %3451 = vmatpush1.msra.mxu0 0.0
  %3452 = vmatprep.subr.mxu0 0.0
  %3453 = vmatpush1.msra.mxu0 0.0
  %3454 = vmatprep.subr.mxu0 0.0
  %3455 = vmatpush1.msra.mxu0 0.0
  %3456 = vmatprep.subr.mxu0 0.0
  %3457 = vmatpush1.msra.mxu0 0.0
  %3458 = vmatprep.subr.mxu0 0.0
  %3459 = vmatpush1.msra.mxu0 0.0
  %3460 = vmatprep.subr.mxu0 0.0
  %3461 = vmatpush1.msra.mxu0 0.0
  %3462 = vmatprep.subr.mxu0 0.0
  %3463 = vmatpush1.msra.mxu0 0.0
  %3464 = vmatprep.subr.mxu0 0.0
  %3465 = vmatpush1.msra.mxu0 0.0
  %3466 = vmatprep.subr.mxu0 0.0
  %3467 = vmatpush1.msra.mxu0 0.0
  %3468 = vmatprep.subr.mxu0 0.0
  %3469 = vmatpush1.msra.mxu0 0.0
  %3470 = vmatprep.subr.mxu0 0.0
  %3471 = vmatpush1.msra.mxu0 0.0
  %3472 = vmatprep.subr.mxu0 0.0
  %3473 = vmatpush1.msra.mxu0 0.0
  %3474 = vmatprep.subr.mxu0 0.0
  %3475 = vmatpush1.msra.mxu0 0.0
  %3476 = vmatprep.subr.mxu0 0.0
  %3477 = vmatpush1.msra.mxu0 0.0
  %3478 = vmatprep.subr.mxu0 0.0
  %3479 = vmatpush1.msra.mxu0 0.0
  %3480 = vmatprep.subr.mxu0 0.0
  %3481 = vmatpush1.msra.mxu0 0.0
  %3482 = vmatprep.subr.mxu0 0.0
  %3483 = vmatpush1.msra.mxu0 0.0
  %3484 = vmatprep.subr.mxu0 0.0
  %3485 = vmatpush1.msra.mxu0 0.0
  %3486 = vmatprep.subr.mxu0 0.0
  %3487 = vmatpush1.msra.mxu0 0.0
  %3488 = vmatprep.subr.mxu0 0.0
  %3489 = vmatpush1.msra.mxu0 0.0
  %3490 = vmatprep.subr.mxu0 0.0
  %3491 = vmatpush1.msra.mxu0 0.0
  %3492 = vmatprep.subr.mxu0 0.0
  %3493 = vmatpush1.msra.mxu0 0.0
  %3494 = vmatprep.mubr.f32.mxu0 0.0
  %3495 = vmatmul.mubr.f32.gmra.mrb[0].mxu0 %v3428
  %v3496 = vpop.f32.mrb[0].mxu0
  %v3497 = vadd.f32 0.0, %v3496
  %v3498 = vpop.f32.mrb[0].mxu0
  %3499 = vdwg.mxu0
  %v3500 = vadd.f32 %v3424, %v3497
  %v3501 = vxor.u32 %v3500, 2147483648
  %v3502 = vmul.f32 %v3501, 1.442695
  %v3503 = vpow.pop %v3502
  %v3504 = vadd.f32 %v3503, 1.0
  %v3505 = vrcp.pop %v3504
  %v3506 = vmul.f32 1.0, %v3505
  %v3507 = vtanh.pop %v3500
  %v3508 = vmul.f32 %v3506, %v3322
  %3510 = vrot.lane.b32.xlu0 %v3507, 64
  %v3511 = vpop.permute.xlu0 %3510
  %v3513 = vmul.f32 %v3506, %v3511
  %3515 = vrot.lane.b32.xlu0 %v3513, 32
  %v3516 = vpop.permute.xlu0 %3515
  %v3518 = vadd.f32 %v3508, %v3516
  %v3519 = vtanh.pop %v3518
  %3521 = vrot.lane.b32.xlu0 %v3519, 64
  %v3522 = vpop.permute.xlu0 %3521
  %v3524 = vmul.f32 %v3506, %v3522
  %v3525 = vsel %vm3347, %v3524, %v3321
  %3528 = vrot.lane.b32.xlu0 %v3525, 64
  %v3529 = vpop.permute.xlu0 %3528
  %v3531 = vsel %vm293, %v3351, %v3529
  %v3532 = vld [vmem:[%s8] sm:$0xff]
  %v3533 = vld [vmem:[%s8 + $0x8] sm:$0xff]
  %v3534 = vld [vmem:[%s8 + $0x10] sm:$0xff]
  %v3535 = vld [vmem:[%s8 + $0x18] sm:$0xff]
  %v3536 = vld [vmem:[%s8 + $0x20] sm:$0xff]
  %v3537 = vld [vmem:[%s8 + $0x28] sm:$0xff]
  %v3538 = vld [vmem:[%s8 + $0x30] sm:$0xff]
  %v3539 = vld [vmem:[%s8 + $0x38] sm:$0xff]
  %v3540 = vld [vmem:[%s9] sm:$0x1]
  %v3542 = vlaneseq
  %v3543 = vshrl.u32 %v3542, 7
  %v3544 = vsub.s32 0, %v3543
  %v3545 = vrot.slane %v3540, %v3544
  %vm3547 = vcmask 523264
  %v3549 = vsel %vm3547, %v3531, 0
  %3551 = vmatprep.subr.mxu0 0.0
  %3552 = vmatpush1.msra.mxu0 %v3532
  %3553 = vmatprep.subr.mxu0 0.0
  %3554 = vmatpush1.msra.mxu0 %v3533
  %3555 = vmatprep.subr.mxu0 0.0
  %3556 = vmatpush1.msra.mxu0 %v3534
  %3557 = vmatprep.subr.mxu0 0.0
  %3558 = vmatpush1.msra.mxu0 %v3535
  %3559 = vmatprep.subr.mxu0 0.0
  %3560 = vmatpush1.msra.mxu0 %v3536
  %3561 = vmatprep.subr.mxu0 0.0
  %3562 = vmatpush1.msra.mxu0 %v3537
  %3563 = vmatprep.subr.mxu0 0.0
  %3564 = vmatpush1.msra.mxu0 %v3538
  %3565 = vmatprep.subr.mxu0 0.0
  %3566 = vmatpush1.msra.mxu0 %v3539
  %3567 = vmatprep.subr.mxu0 0.0
  %3568 = vmatpush1.msra.mxu0 0.0
  %3569 = vmatprep.subr.mxu0 0.0
  %3570 = vmatpush1.msra.mxu0 0.0
  %3571 = vmatprep.subr.mxu0 0.0
  %3572 = vmatpush1.msra.mxu0 0.0
  %3573 = vmatprep.subr.mxu0 0.0
  %3574 = vmatpush1.msra.mxu0 0.0
  %3575 = vmatprep.subr.mxu0 0.0
  %3576 = vmatpush1.msra.mxu0 0.0
  %3577 = vmatprep.subr.mxu0 0.0
  %3578 = vmatpush1.msra.mxu0 0.0
  %3579 = vmatprep.subr.mxu0 0.0
  %3580 = vmatpush1.msra.mxu0 0.0
  %3581 = vmatprep.subr.mxu0 0.0
  %3582 = vmatpush1.msra.mxu0 0.0
  %3583 = vmatprep.subr.mxu0 0.0
  %3584 = vmatpush1.msra.mxu0 0.0
  %3585 = vmatprep.subr.mxu0 0.0
  %3586 = vmatpush1.msra.mxu0 0.0
  %3587 = vmatprep.subr.mxu0 0.0
  %3588 = vmatpush1.msra.mxu0 0.0
  %3589 = vmatprep.subr.mxu0 0.0
  %3590 = vmatpush1.msra.mxu0 0.0
  %3591 = vmatprep.subr.mxu0 0.0
  %3592 = vmatpush1.msra.mxu0 0.0
  %3593 = vmatprep.subr.mxu0 0.0
  %3594 = vmatpush1.msra.mxu0 0.0
  %3595 = vmatprep.subr.mxu0 0.0
  %3596 = vmatpush1.msra.mxu0 0.0
  %3597 = vmatprep.subr.mxu0 0.0
  %3598 = vmatpush1.msra.mxu0 0.0
  %3599 = vmatprep.subr.mxu0 0.0
  %3600 = vmatpush1.msra.mxu0 0.0
  %3601 = vmatprep.subr.mxu0 0.0
  %3602 = vmatpush1.msra.mxu0 0.0
  %3603 = vmatprep.subr.mxu0 0.0
  %3604 = vmatpush1.msra.mxu0 0.0
  %3605 = vmatprep.subr.mxu0 0.0
  %3606 = vmatpush1.msra.mxu0 0.0
  %3607 = vmatprep.subr.mxu0 0.0
  %3608 = vmatpush1.msra.mxu0 0.0
  %3609 = vmatprep.subr.mxu0 0.0
  %3610 = vmatpush1.msra.mxu0 0.0
  %3611 = vmatprep.subr.mxu0 0.0
  %3612 = vmatpush1.msra.mxu0 0.0
  %3613 = vmatprep.subr.mxu0 0.0
  %3614 = vmatpush1.msra.mxu0 0.0
  %3615 = vmatprep.mubr.f32.mxu0 0.0
  %3616 = vmatmul.mubr.f32.gmra.mrb[0].mxu0 %v3549
  %v3617 = vpop.f32.mrb[0].mxu0
  %v3618 = vadd.f32 %v3545, %v3617
  %v3619 = vpop.f32.mrb[0].mxu0
  %3620 = vdwg.mxu0
  %v3621 = vmax.f32 %v3618, 0.0
  %v3622 = vld [vmem:[%s10] sm:$0x1]
  %v3624 = vlaneseq
  %v3625 = vshrl.u32 %v3624, 7
  %v3626 = vsub.s32 0, %v3625
  %v3627 = vrot.slane %v3622, %v3626
  %v3629 = vmul.f32 %v3621, %v3627
  %vm3630 = vcmask 123904
  %v3631 = vsel %vm3630, %v3629, 0.0
  %3632 = vadd.xlane.f32.xlu0 %v3631
  %v3633 = vpop.xlane.xlu0 %3632
  %v3634 = vld [vmem:[#allocation2] sm:$0x1]
  %v3636 = vlaneseq
  %v3637 = vshrl.u32 %v3636, 7
  %v3638 = vsub.s32 0, %v3637
  %v3639 = vrot.slane %v3634, %v3638
  %v3641 = vadd.f32 %v3633, %v3639
  %vm3642 = vcmask 1024
  %3643 = vst.msk [vmem:[%s12] sm:$0x3] %vm3642, %v3641
  // Predicated region
  $region50: #{net_forward.1} parent=0 // pred_check
    _
  $region51: #{net_forward.1} parent=0 // pred_check_branch
    %3645 = sbr.rel (0) target = $region53
  $region52: #{net_forward.1} parent=0 // pred_region
    _
  $region53: #{net_forward.1} parent=0 // pred_fallthru
    _
  // Predicated region
  $region54: #{net_forward.1} parent=0 // pred_check
    _
  $region55: #{net_forward.1} parent=0 // pred_check_branch
    %3647 = sbr.rel (0) target = $region57
  $region56: #{net_forward.1} parent=0 // pred_region
    _
  $region57: #{net_forward.1} parent=0 // pred_fallthru
    _

</llo_original>
